<compile_context>
chip_gen: v6e
topology: v6e:2x2x1
jax: 0.10.0
libtpu: 0.0.40
codegen_flags: <defaults>
</compile_context>

<pallas_src>
import functools

import jax
import jax.numpy as jnp
from jax.experimental import pallas as pl
from jax.experimental.pallas import tpu as pltpu

# ----- hyperparameters (the undefined globals / args of the torch script) -----
N = 16            # number of samples (rows of W / LM);  N == n_sample here
N_SAMPLE = 16
N_VIEW = 3
N_CLUSTER = 4
D_LM = 8          # per-view feature width of LM
MODEL_DIM = 64
NUM_HEADS = 8
DIM_PER_HEAD = MODEL_DIM // NUM_HEADS
FFN_DIM = 512
R_EXP = 2.0       # args.r
LN_EPS = 1e-5


def _full_spec(shape):
    """BlockSpec covering the whole array (single grid point)."""
    nd = len(shape)
    return pl.BlockSpec(tuple(shape), lambda i, _nd=nd: (0,) * _nd)


# ------------------------------ Pallas kernels ------------------------------
def _prologue_kernel(vw_ref, w_ref, lm_ref, seq_w_ref, seq_b_ref,
                     wqkv_ref, bqkv_ref,
                     s_ref, wnew_ref, emb_ref, qkv_ref, *, inv_nview):
    """S_fusion, W_new, seq embedding and fused QKV projection in one kernel."""
    n_view = w_ref.shape[0]
    acc_s = None
    acc_w = None
    for vi in range(n_view):                       # static 3-iteration loop
        lmv = lm_ref[vi]                           # (N, d_lm)
        # per-view gram; sum over views == r_fusion @ r_fusion.T
        gv = jax.lax.dot_general(lmv, lmv, (((1,), (1,)), ((), ())),
                                 preferred_element_type=jnp.float32)
        wv = vw_ref[vi] * w_ref[vi]                # (N, n_sample), SMEM scalar weight
        acc_s = gv if acc_s is None else acc_s + gv
        acc_w = wv if acc_w is None else acc_w + wv

    s_ref[...] = acc_s * inv_nview                 # S_fusion = r r^T / n_view
    wnew_ref[...] = acc_w                          # W_new

    # Encoder seq embedding:  emb = W_new @ Wemb + b
    emb = jnp.dot(acc_w, seq_w_ref[...],
                  preferred_element_type=jnp.float32) + seq_b_ref[...]
    emb_ref[...] = emb

    # Fused K|V|Q projection: one (64,192) matmul instead of three 64x64.
    qkv_ref[...] = jnp.dot(emb, wqkv_ref[...],
                           preferred_element_type=jnp.float32) + bqkv_ref[...]


def _mha_kernel(q_ref, k_ref, v_ref, o_ref, *, scale):
    """Scaled-dot-product attention, all heads batched in one invocation."""
    q = q_ref[...]                                 # (H, n, d)
    k = k_ref[...]
    v = v_ref[...]
    s = jnp.einsum("hnd,hmd->hnm", q, k,
                   preferred_element_type=jnp.float32) * scale
    s = s - jnp.max(s, axis=-1, keepdims=True)
    e = jnp.exp(s)
    p = e * pl.reciprocal(jnp.sum(e, axis=-1, keepdims=True), approx=True)
    o_ref[...] = jnp.einsum("hnm,hmd->hnd", p, v,
                            preferred_element_type=jnp.float32)


def _layernorm(z, gamma, beta, eps):
    mean = jnp.mean(z, axis=-1, keepdims=True)
    var = jnp.mean((z - mean) ** 2, axis=-1, keepdims=True)
    return (z - mean) * jax.lax.rsqrt(var + eps) * gamma + beta


def _epilogue_kernel(res_ref, ctx_ref, wf_ref, bf_ref, g1_ref, be1_ref,
                     w1_ref, b1_ref, w2_ref, b2_ref, g2_ref, be2_ref,
                     l1w_ref, l1b_ref, cf_ref, *, eps):
    """final proj + LN1 + FFN + LN2 + classifier + softmax, fully fused."""
    mha = jnp.dot(ctx_ref[...], wf_ref[...],
                  preferred_element_type=jnp.float32) + bf_ref[...]
    # dropout == identity (inference); LayerNorm(residual + mha_out)
    x1 = _layernorm(res_ref[...] + mha, g1_ref[...], be1_ref[...], eps)

    h = jnp.dot(x1, w1_ref[...], preferred_element_type=jnp.float32) + b1_ref[...]
    h = jnp.maximum(h, 0.0)                        # ReLU, (N, 512) stays in VMEM
    ff = jnp.dot(h, w2_ref[...], preferred_element_type=jnp.float32) + b2_ref[...]
    x2 = _layernorm(x1 + ff, g2_ref[...], be2_ref[...], eps)

    logits = jnp.dot(x2, l1w_ref[...],
                     preferred_element_type=jnp.float32) + l1b_ref[...]
    logits = logits - jnp.max(logits, axis=-1, keepdims=True)
    e = jnp.exp(logits)
    cf_ref[...] = e / jnp.sum(e, axis=-1, keepdims=True)


# ------------------------------ kernel wrappers ------------------------------
def _fused_prologue(vw, Wt, LMt, seq_w, seq_b, wqkv, bqkv):
    v, n, n_sample = Wt.shape
    model_dim = seq_w.shape[1]
    qkv_dim = wqkv.shape[1]
    return pl.pallas_call(
        functools.partial(_prologue_kernel, inv_nview=1.0 / v),
        out_shape=(
            jax.ShapeDtypeStruct((n, n), jnp.float32),           # S_fusion
            jax.ShapeDtypeStruct((n, n_sample), jnp.float32),    # W_new
            jax.ShapeDtypeStruct((n, model_dim), jnp.float32),   # emb (residual)
            jax.ShapeDtypeStruct((n, qkv_dim), jnp.float32),     # fused K|V|Q
        ),
        grid=(1,),
        in_specs=[
            pl.BlockSpec(memory_space=pltpu.MemorySpace.SMEM),   # view weights
            _full_spec(Wt.shape),
            _full_spec(LMt.shape),
            _full_spec(seq_w.shape),
            _full_spec(seq_b.shape),
            _full_spec(wqkv.shape),
            _full_spec(bqkv.shape),
        ],
        out_specs=(
            _full_spec((n, n)),
            _full_spec((n, n_sample)),
            _full_spec((n, model_dim)),
            _full_spec((n, qkv_dim)),
        ),
    )(vw, Wt, LMt, seq_w, seq_b, wqkv, bqkv)


def _fused_attention(q3, k3, v3, scale):
    h, n, d = q3.shape
    return pl.pallas_call(
        functools.partial(_mha_kernel, scale=scale),
        out_shape=jax.ShapeDtypeStruct((h, n, d), jnp.float32),
        grid=(1,),
        in_specs=[_full_spec((h, n, d))] * 3,
        out_specs=_full_spec((h, n, d)),
    )(q3, k3, v3)


def _fused_epilogue(residual, ctx, wf, bf, g1, be1, w1, b1, w2, b2, g2, be2,
                    l1w, l1b):
    n, _ = residual.shape
    n_cluster = l1w.shape[1]
    operands = (residual, ctx, wf, bf, g1, be1, w1, b1, w2, b2, g2, be2, l1w, l1b)
    return pl.pallas_call(
        functools.partial(_epilogue_kernel, eps=LN_EPS),
        out_shape=jax.ShapeDtypeStruct((n, n_cluster), jnp.float32),
        grid=(1,),
        in_specs=[_full_spec(op.shape) for op in operands],
        out_specs=_full_spec((n, n_cluster)),
    )(*operands)


# ------------------------------ parameters -----------------------------------
def init_params(key):
    keys = jax.random.split(key, 8)

    def normal_linear(k, fan_in, fan_out):          # _initialize_weights: N(0, 0.01), b=0
        w = 0.01 * jax.random.normal(k, (fan_in, fan_out), jnp.float32)
        return w, jnp.zeros((fan_out,), jnp.float32)

    def default_linear(k, fan_in, fan_out):         # torch default-ish uniform init
        k1, k2 = jax.random.split(k)
        bound = 1.0 / (fan_in ** 0.5)
        w = jax.random.uniform(k1, (fan_in, fan_out), jnp.float32, -bound, bound)
        b = jax.random.uniform(k2, (fan_out,), jnp.float32, -bound, bound)
        return w, b

    return {
        "seq_emb": default_linear(keys[0], N_SAMPLE, MODEL_DIM),
        "wk": normal_linear(keys[1], MODEL_DIM, MODEL_DIM),
        "wv": normal_linear(keys[2], MODEL_DIM, MODEL_DIM),
        "wq": normal_linear(keys[3], MODEL_DIM, MODEL_DIM),
        "w_final": normal_linear(keys[4], MODEL_DIM, MODEL_DIM),
        "ln1": (jnp.ones((MODEL_DIM,), jnp.float32), jnp.zeros((MODEL_DIM,), jnp.float32)),
        "ffn_w1": normal_linear(keys[5], MODEL_DIM, FFN_DIM),
        "ffn_w2": normal_linear(keys[6], FFN_DIM, MODEL_DIM),
        "ln2": (jnp.ones((MODEL_DIM,), jnp.float32), jnp.zeros((MODEL_DIM,), jnp.float32)),
        "l1": default_linear(keys[7], MODEL_DIM, N_CLUSTER),
        "view_weight": jnp.ones((N_VIEW,), jnp.float32),   # nn.Parameter(full((n_view,), 1.))
    }


# ------------------------------ forward pass ----------------------------------
def grtrans_forward(params, W, LM):
    model_dim = MODEL_DIM

    # weight = softmax(self.weight) ** args.r   (3-element parameter transform)
    vw = jax.nn.softmax(params["view_weight"]) ** R_EXP

    # (N, ·, V) -> (V, N, ·): done once on the inputs so the fused kernel can
    # index views via the leading dim (no lane-dim slicing inside the kernel).
    Wt = jnp.transpose(W, (2, 0, 1))              # (V, N, n_sample)
    LMt = jnp.transpose(LM, (2, 0, 1))            # (V, N, d_lm)

    seq_w, seq_b = params["seq_emb"]
    wk, bk = params["wk"]
    wv_, bv = params["wv"]
    wq, bq = params["wq"]
    wqkv = jnp.concatenate([wk, wv_, wq], axis=1)                 # (64, 192)
    bqkv = jnp.concatenate([bk, bv, bq], axis=0).reshape(1, -1)   # (1, 192)

    # --- kernel A: S_fusion, W_new, emb, fused K|V|Q ---
    S_fusion, W_new, emb, qkv = _fused_prologue(
        vw, Wt, LMt, seq_w, seq_b.reshape(1, -1), wqkv, bqkv)

    # torch: k/v/q.view(num_heads, -1, dim_per_head)   (row-major, faithful)
    # TODO(synk): these lane<->sublane reshapes stay as XLA glue; doing them
    #             inside the Mosaic kernel risks unsupported-reshape lowering.
    k3 = qkv[:, 0 * model_dim:1 * model_dim].reshape(NUM_HEADS, -1, DIM_PER_HEAD)
    v3 = qkv[:, 1 * model_dim:2 * model_dim].reshape(NUM_HEADS, -1, DIM_PER_HEAD)
    q3 = qkv[:, 2 * model_dim:3 * model_dim].reshape(NUM_HEADS, -1, DIM_PER_HEAD)

    # faithful to the torch module: scale = (dim_per_head // num_heads) ** -0.5 == 1.0
    scale = float(DIM_PER_HEAD // NUM_HEADS) ** (-0.5)

    # --- kernel B: batched multi-head attention ---
    ctx3 = _fused_attention(q3, k3, v3, scale)                    # (H, ·, d)
    ctx = ctx3.reshape(-1, NUM_HEADS * DIM_PER_HEAD)              # (N, 64)

    g1, be1 = params["ln1"]
    g2, be2 = params["ln2"]
    wf, bf = params["w_final"]
    w1, b1 = params["ffn_w1"]
    w2, b2 = params["ffn_w2"]
    l1w, l1b = params["l1"]

    # --- kernel C: final proj + LN1 + FFN + LN2 + classifier softmax ---
    CF = _fused_epilogue(
        emb, ctx, wf, bf.reshape(1, -1),
        g1.reshape(1, -1), be1.reshape(1, -1),
        w1, b1.reshape(1, -1), w2, b2.reshape(1, -1),
        g2.reshape(1, -1), be2.reshape(1, -1),
        l1w, l1b.reshape(1, -1))

    return CF, W_new, S_fusion


# ------------------------------------ main ------------------------------------
if __name__ == "__main__":
    key = jax.random.PRNGKey(0)
    kp, kw, kl = jax.random.split(key, 3)
    params = init_params(kp)
    W = jax.random.normal(kw, (N, N_SAMPLE, N_VIEW), jnp.float32)
    LM = jax.random.normal(kl, (N, D_LM, N_VIEW), jnp.float32)

    CF, W_new, S_fusion = jax.jit(grtrans_forward)(params, W, LM)
    jax.block_until_ready((CF, W_new, S_fusion))

    assert CF.shape == (N, N_CLUSTER)
    assert W_new.shape == (N, N_SAMPLE)
    assert S_fusion.shape == (N, N)
    assert bool(jnp.all(jnp.isfinite(CF)))
    assert bool(jnp.all(jnp.isfinite(S_fusion)))
    print("KERNEL_OK")
</pallas_src>

<mosaic_0001>
module attributes {stable_mosaic.version = 11 : i64} {
  func.func @_prologue_kernel(%arg0: i32, %arg1: memref<3xf32, #tpu.memory_space<smem>>, %arg2: memref<3x16x16xf32, #tpu.memory_space<vmem>>, %arg3: memref<3x16x8xf32, #tpu.memory_space<vmem>>, %arg4: memref<16x64xf32, #tpu.memory_space<vmem>>, %arg5: memref<1x64xf32, #tpu.memory_space<vmem>>, %arg6: memref<64x192xf32, #tpu.memory_space<vmem>>, %arg7: memref<1x192xf32, #tpu.memory_space<vmem>>, %arg8: memref<16x16xf32, #tpu.memory_space<vmem>>, %arg9: memref<16x16xf32, #tpu.memory_space<vmem>>, %arg10: memref<16x64xf32, #tpu.memory_space<vmem>>, %arg11: memref<16x192xf32, #tpu.memory_space<vmem>>) attributes {dimension_semantics = [#tpu.dimension_semantics<arbitrary>], iteration_bounds = array<i64: 1>, scalar_prefetch = 0 : i64, scratch_operands = 0 : i64, tpu.core_type = #tpu.core_type<tc>, window_params = [{transform_indices = @transform_0, window_bounds = array<i64: 3>}, {pipeline_mode = #tpu.pipeline_mode<synchronous>, transform_indices = @transform_1, window_bounds = array<i64: 3, 16, 16>}, {pipeline_mode = #tpu.pipeline_mode<synchronous>, transform_indices = @transform_2, window_bounds = array<i64: 3, 16, 8>}, {pipeline_mode = #tpu.pipeline_mode<synchronous>, transform_indices = @transform_3, window_bounds = array<i64: 16, 64>}, {pipeline_mode = #tpu.pipeline_mode<synchronous>, transform_indices = @transform_4, window_bounds = array<i64: 1, 64>}, {pipeline_mode = #tpu.pipeline_mode<synchronous>, transform_indices = @transform_5, window_bounds = array<i64: 64, 192>}, {pipeline_mode = #tpu.pipeline_mode<synchronous>, transform_indices = @transform_6, window_bounds = array<i64: 1, 192>}, {pipeline_mode = #tpu.pipeline_mode<synchronous>, transform_indices = @transform_7, window_bounds = array<i64: 16, 16>}, {pipeline_mode = #tpu.pipeline_mode<synchronous>, transform_indices = @transform_8, window_bounds = array<i64: 16, 16>}, {pipeline_mode = #tpu.pipeline_mode<synchronous>, transform_indices = @transform_9, window_bounds = array<i64: 16, 64>}, {pipeline_mode = #tpu.pipeline_mode<synchronous>, transform_indices = @transform_10, window_bounds = array<i64: 16, 192>}]} {
    %c0 = arith.constant 0 : index
    %c0_0 = arith.constant 0 : index
    %c0_1 = arith.constant 0 : index
    %0 = vector.load %arg3[%c0, %c0_0, %c0_1] : memref<3x16x8xf32, #tpu.memory_space<vmem>>, vector<1x16x8xf32>
    %1 = vector.shape_cast %0 : vector<1x16x8xf32> to vector<16x8xf32>
    %cst = arith.constant dense<0.000000e+00> : vector<16x16xf32>
    %2 = tpu.matmul %1, %1, %cst {dimension_numbers = #tpu.dot_dimension_numbers<[1], [1], [0], [0], [0, 0, 1, 0], [], []>} : vector<16x8xf32>, vector<16x8xf32>, vector<16x16xf32> -> vector<16x16xf32>
    %c0_2 = arith.constant 0 : index
    %3 = memref.load %arg1[%c0_2] : memref<3xf32, #tpu.memory_space<smem>>
    %c0_3 = arith.constant 0 : index
    %c0_4 = arith.constant 0 : index
    %c0_5 = arith.constant 0 : index
    %4 = vector.load %arg2[%c0_3, %c0_4, %c0_5] : memref<3x16x16xf32, #tpu.memory_space<vmem>>, vector<1x16x16xf32>
    %5 = vector.shape_cast %4 : vector<1x16x16xf32> to vector<16x16xf32>
    %6 = vector.broadcast %3 : f32 to vector<16x16xf32>
    %7 = arith.mulf %6, %5 : vector<16x16xf32>
    %c1 = arith.constant 1 : index
    %c0_6 = arith.constant 0 : index
    %c0_7 = arith.constant 0 : index
    %8 = vector.load %arg3[%c1, %c0_6, %c0_7] : memref<3x16x8xf32, #tpu.memory_space<vmem>>, vector<1x16x8xf32>
    %9 = vector.shape_cast %8 : vector<1x16x8xf32> to vector<16x8xf32>
    %cst_8 = arith.constant dense<0.000000e+00> : vector<16x16xf32>
    %10 = tpu.matmul %9, %9, %cst_8 {dimension_numbers = #tpu.dot_dimension_numbers<[1], [1], [0], [0], [0, 0, 1, 0], [], []>} : vector<16x8xf32>, vector<16x8xf32>, vector<16x16xf32> -> vector<16x16xf32>
    %c1_9 = arith.constant 1 : index
    %11 = memref.load %arg1[%c1_9] : memref<3xf32, #tpu.memory_space<smem>>
    %c1_10 = arith.constant 1 : index
    %c0_11 = arith.constant 0 : index
    %c0_12 = arith.constant 0 : index
    %12 = vector.load %arg2[%c1_10, %c0_11, %c0_12] : memref<3x16x16xf32, #tpu.memory_space<vmem>>, vector<1x16x16xf32>
    %13 = vector.shape_cast %12 : vector<1x16x16xf32> to vector<16x16xf32>
    %14 = vector.broadcast %11 : f32 to vector<16x16xf32>
    %15 = arith.mulf %14, %13 : vector<16x16xf32>
    %16 = arith.addf %2, %10 : vector<16x16xf32>
    %17 = arith.addf %7, %15 : vector<16x16xf32>
    %c2 = arith.constant 2 : index
    %c0_13 = arith.constant 0 : index
    %c0_14 = arith.constant 0 : index
    %18 = vector.load %arg3[%c2, %c0_13, %c0_14] : memref<3x16x8xf32, #tpu.memory_space<vmem>>, vector<1x16x8xf32>
    %19 = vector.shape_cast %18 : vector<1x16x8xf32> to vector<16x8xf32>
    %cst_15 = arith.constant dense<0.000000e+00> : vector<16x16xf32>
    %20 = tpu.matmul %19, %19, %cst_15 {dimension_numbers = #tpu.dot_dimension_numbers<[1], [1], [0], [0], [0, 0, 1, 0], [], []>} : vector<16x8xf32>, vector<16x8xf32>, vector<16x16xf32> -> vector<16x16xf32>
    %c2_16 = arith.constant 2 : index
    %21 = memref.load %arg1[%c2_16] : memref<3xf32, #tpu.memory_space<smem>>
    %c2_17 = arith.constant 2 : index
    %c0_18 = arith.constant 0 : index
    %c0_19 = arith.constant 0 : index
    %22 = vector.load %arg2[%c2_17, %c0_18, %c0_19] : memref<3x16x16xf32, #tpu.memory_space<vmem>>, vector<1x16x16xf32>
    %23 = vector.shape_cast %22 : vector<1x16x16xf32> to vector<16x16xf32>
    %24 = vector.broadcast %21 : f32 to vector<16x16xf32>
    %25 = arith.mulf %24, %23 : vector<16x16xf32>
    %26 = arith.addf %16, %20 : vector<16x16xf32>
    %27 = arith.addf %17, %25 : vector<16x16xf32>
    %cst_20 = arith.constant 0.333333343 : f32
    %28 = vector.broadcast %cst_20 : f32 to vector<16x16xf32>
    %29 = arith.mulf %26, %28 : vector<16x16xf32>
    %c0_21 = arith.constant 0 : index
    %c0_22 = arith.constant 0 : index
    %30 = vector.load %arg8[%c0_21, %c0_22] : memref<16x16xf32, #tpu.memory_space<vmem>>, vector<16x16xf32>
    tpu.vector_store %arg8[%c0_21, %c0_22], %29 {strides = array<i32>} : memref<16x16xf32, #tpu.memory_space<vmem>>, vector<16x16xf32>,
    %c0_23 = arith.constant 0 : index
    %c0_24 = arith.constant 0 : index
    %31 = vector.load %arg9[%c0_23, %c0_24] : memref<16x16xf32, #tpu.memory_space<vmem>>, vector<16x16xf32>
    tpu.vector_store %arg9[%c0_23, %c0_24], %27 {strides = array<i32>} : memref<16x16xf32, #tpu.memory_space<vmem>>, vector<16x16xf32>,
    %c0_25 = arith.constant 0 : index
    %c0_26 = arith.constant 0 : index
    %32 = vector.load %arg4[%c0_25, %c0_26] : memref<16x64xf32, #tpu.memory_space<vmem>>, vector<16x64xf32>
    %cst_27 = arith.constant dense<0.000000e+00> : vector<16x64xf32>
    %33 = tpu.matmul %27, %32, %cst_27 {dimension_numbers = #tpu.dot_dimension_numbers<[1], [0], [0], [1], [0, 0, 1, 1], [], []>} : vector<16x16xf32>, vector<16x64xf32>, vector<16x64xf32> -> vector<16x64xf32>
    %c0_28 = arith.constant 0 : index
    %c0_29 = arith.constant 0 : index
    %34 = vector.load %arg5[%c0_28, %c0_29] : memref<1x64xf32, #tpu.memory_space<vmem>>, vector<1x64xf32>
    %35 = vector.broadcast %34 : vector<1x64xf32> to vector<16x64xf32>
    %36 = arith.addf %33, %35 : vector<16x64xf32>
    %c0_30 = arith.constant 0 : index
    %c0_31 = arith.constant 0 : index
    %37 = vector.load %arg10[%c0_30, %c0_31] : memref<16x64xf32, #tpu.memory_space<vmem>>, vector<16x64xf32>
    tpu.vector_store %arg10[%c0_30, %c0_31], %36 {strides = array<i32>} : memref<16x64xf32, #tpu.memory_space<vmem>>, vector<16x64xf32>,
    %c0_32 = arith.constant 0 : index
    %c0_33 = arith.constant 0 : index
    %38 = vector.load %arg6[%c0_32, %c0_33] : memref<64x192xf32, #tpu.memory_space<vmem>>, vector<64x192xf32>
    %cst_34 = arith.constant dense<0.000000e+00> : vector<16x192xf32>
    %39 = tpu.matmul %36, %38, %cst_34 {dimension_numbers = #tpu.dot_dimension_numbers<[1], [0], [0], [1], [0, 0, 1, 1], [], []>} : vector<16x64xf32>, vector<64x192xf32>, vector<16x192xf32> -> vector<16x192xf32>
    %c0_35 = arith.constant 0 : index
    %c0_36 = arith.constant 0 : index
    %40 = vector.load %arg7[%c0_35, %c0_36] : memref<1x192xf32, #tpu.memory_space<vmem>>, vector<1x192xf32>
    %41 = vector.broadcast %40 : vector<1x192xf32> to vector<16x192xf32>
    %42 = arith.addf %39, %41 : vector<16x192xf32>
    %c0_37 = arith.constant 0 : index
    %c0_38 = arith.constant 0 : index
    %43 = vector.load %arg11[%c0_37, %c0_38] : memref<16x192xf32, #tpu.memory_space<vmem>>, vector<16x192xf32>
    tpu.vector_store %arg11[%c0_37, %c0_38], %42 {strides = array<i32>} : memref<16x192xf32, #tpu.memory_space<vmem>>, vector<16x192xf32>,
    return
  }
  func.func @transform_0(%arg0: i32) -> i32 {
    %c0_i32 = arith.constant 0 : i32
    %c0_i32_0 = arith.constant 0 : i32
    return %c0_i32 : i32
  }
  func.func @transform_1(%arg0: i32) -> (i32, i32, i32) {
    %c0_i32 = arith.constant 0 : i32
    %c0_i32_0 = arith.constant 0 : i32
    %c0_i32_1 = arith.constant 0 : i32
    %c0_i32_2 = arith.constant 0 : i32
    return %c0_i32, %c0_i32_0, %c0_i32_1 : i32, i32, i32
  }
  func.func @transform_2(%arg0: i32) -> (i32, i32, i32) {
    %c0_i32 = arith.constant 0 : i32
    %c0_i32_0 = arith.constant 0 : i32
    %c0_i32_1 = arith.constant 0 : i32
    %c0_i32_2 = arith.constant 0 : i32
    return %c0_i32, %c0_i32_0, %c0_i32_1 : i32, i32, i32
  }
  func.func @transform_3(%arg0: i32) -> (i32, i32) {
    %c0_i32 = arith.constant 0 : i32
    %c0_i32_0 = arith.constant 0 : i32
    %c0_i32_1 = arith.constant 0 : i32
    return %c0_i32, %c0_i32_0 : i32, i32
  }
  func.func @transform_4(%arg0: i32) -> (i32, i32) {
    %c0_i32 = arith.constant 0 : i32
    %c0_i32_0 = arith.constant 0 : i32
    %c0_i32_1 = arith.constant 0 : i32
    return %c0_i32, %c0_i32_0 : i32, i32
  }
  func.func @transform_5(%arg0: i32) -> (i32, i32) {
    %c0_i32 = arith.constant 0 : i32
    %c0_i32_0 = arith.constant 0 : i32
    %c0_i32_1 = arith.constant 0 : i32
    return %c0_i32, %c0_i32_0 : i32, i32
  }
  func.func @transform_6(%arg0: i32) -> (i32, i32) {
    %c0_i32 = arith.constant 0 : i32
    %c0_i32_0 = arith.constant 0 : i32
    %c0_i32_1 = arith.constant 0 : i32
    return %c0_i32, %c0_i32_0 : i32, i32
  }
  func.func @transform_7(%arg0: i32) -> (i32, i32) {
    %c0_i32 = arith.constant 0 : i32
    %c0_i32_0 = arith.constant 0 : i32
    %c0_i32_1 = arith.constant 0 : i32
    return %c0_i32, %c0_i32_0 : i32, i32
  }
  func.func @transform_8(%arg0: i32) -> (i32, i32) {
    %c0_i32 = arith.constant 0 : i32
    %c0_i32_0 = arith.constant 0 : i32
    %c0_i32_1 = arith.constant 0 : i32
    return %c0_i32, %c0_i32_0 : i32, i32
  }
  func.func @transform_9(%arg0: i32) -> (i32, i32) {
    %c0_i32 = arith.constant 0 : i32
    %c0_i32_0 = arith.constant 0 : i32
    %c0_i32_1 = arith.constant 0 : i32
    return %c0_i32, %c0_i32_0 : i32, i32
  }
  func.func @transform_10(%arg0: i32) -> (i32, i32) {
    %c0_i32 = arith.constant 0 : i32
    %c0_i32_0 = arith.constant 0 : i32
    %c0_i32_1 = arith.constant 0 : i32
    return %c0_i32, %c0_i32_0 : i32, i32
  }
}

module attributes {stable_mosaic.version = 11 : i64} {
  func.func @_mha_kernel(%arg0: i32, %arg1: memref<8x16x8xf32, #tpu.memory_space<vmem>>, %arg2: memref<8x16x8xf32, #tpu.memory_space<vmem>>, %arg3: memref<8x16x8xf32, #tpu.memory_space<vmem>>, %arg4: memref<8x16x8xf32, #tpu.memory_space<vmem>>) attributes {dimension_semantics = [#tpu.dimension_semantics<arbitrary>], iteration_bounds = array<i64: 1>, scalar_prefetch = 0 : i64, scratch_operands = 0 : i64, tpu.core_type = #tpu.core_type<tc>, window_params = [{pipeline_mode = #tpu.pipeline_mode<synchronous>, transform_indices = @transform_0, window_bounds = array<i64: 8, 16, 8>}, {pipeline_mode = #tpu.pipeline_mode<synchronous>, transform_indices = @transform_1, window_bounds = array<i64: 8, 16, 8>}, {pipeline_mode = #tpu.pipeline_mode<synchronous>, transform_indices = @transform_2, window_bounds = array<i64: 8, 16, 8>}, {pipeline_mode = #tpu.pipeline_mode<synchronous>, transform_indices = @transform_3, window_bounds = array<i64: 8, 16, 8>}]} {
    %c0 = arith.constant 0 : index
    %c0_0 = arith.constant 0 : index
    %c0_1 = arith.constant 0 : index
    %0 = vector.load %arg1[%c0, %c0_0, %c0_1] : memref<8x16x8xf32, #tpu.memory_space<vmem>>, vector<8x16x8xf32>
    %c0_2 = arith.constant 0 : index
    %c0_3 = arith.constant 0 : index
    %c0_4 = arith.constant 0 : index
    %1 = vector.load %arg2[%c0_2, %c0_3, %c0_4] : memref<8x16x8xf32, #tpu.memory_space<vmem>>, vector<8x16x8xf32>
    %c0_5 = arith.constant 0 : index
    %c0_6 = arith.constant 0 : index
    %c0_7 = arith.constant 0 : index
    %2 = vector.load %arg3[%c0_5, %c0_6, %c0_7] : memref<8x16x8xf32, #tpu.memory_space<vmem>>, vector<8x16x8xf32>
    "tpu.trace_start"() <{level = 10 : i32, message = "hnd,hmd->hnm"}> : () -> ()
    %cst = arith.constant dense<0.000000e+00> : vector<8x16x16xf32>
    %3 = tpu.matmul %0, %1, %cst {dimension_numbers = #tpu.dot_dimension_numbers<[2], [2], [1], [1], [0, 0, 0, 1, 1, 1], [0], [0]>} : vector<8x16x8xf32>, vector<8x16x8xf32>, vector<8x16x16xf32> -> vector<8x16x16xf32>
    "tpu.trace_stop"() : () -> ()
    %cst_8 = arith.constant 1.000000e+00 : f32
    %4 = vector.broadcast %cst_8 : f32 to vector<8x16x16xf32>
    %5 = arith.mulf %3, %4 : vector<8x16x16xf32>
    %cst_9 = arith.constant dense<0xFF800000> : vector<8x16xf32>
    %6 = vector.multi_reduction <maximumf>, %5, %cst_9 [2] : vector<8x16x16xf32> to vector<8x16xf32>
    %7 = vector.shape_cast %6 : vector<8x16xf32> to vector<8x16x1xf32>
    %8 = vector.broadcast %7 : vector<8x16x1xf32> to vector<8x16x16xf32>
    %9 = arith.subf %5, %8 : vector<8x16x16xf32>
    %10 = math.exp %9 : vector<8x16x16xf32>
    %cst_10 = arith.constant dense<0.000000e+00> : vector<8x16xf32>
    %11 = vector.multi_reduction <add>, %10, %cst_10 [2] : vector<8x16x16xf32> to vector<8x16xf32>
    %12 = vector.shape_cast %11 : vector<8x16xf32> to vector<8x16x1xf32>
    %13 = tpu.reciprocal %12 {approx = true} : vector<8x16x1xf32> -> vector<8x16x1xf32>
    %14 = vector.broadcast %13 : vector<8x16x1xf32> to vector<8x16x16xf32>
    %15 = arith.mulf %10, %14 : vector<8x16x16xf32>
    "tpu.trace_start"() <{level = 10 : i32, message = "hnm,hmd->hnd"}> : () -> ()
    %cst_11 = arith.constant dense<0.000000e+00> : vector<8x16x8xf32>
    %16 = tpu.matmul %15, %2, %cst_11 {dimension_numbers = #tpu.dot_dimension_numbers<[2], [1], [1], [2], [0, 0, 0, 1, 1, 2], [0], [0]>} : vector<8x16x16xf32>, vector<8x16x8xf32>, vector<8x16x8xf32> -> vector<8x16x8xf32>
    "tpu.trace_stop"() : () -> ()
    %c0_12 = arith.constant 0 : index
    %c0_13 = arith.constant 0 : index
    %c0_14 = arith.constant 0 : index
    %17 = vector.load %arg4[%c0_12, %c0_13, %c0_14] : memref<8x16x8xf32, #tpu.memory_space<vmem>>, vector<8x16x8xf32>
    tpu.vector_store %arg4[%c0_12, %c0_13, %c0_14], %16 {strides = array<i32>} : memref<8x16x8xf32, #tpu.memory_space<vmem>>, vector<8x16x8xf32>,
    return
  }
  func.func @transform_0(%arg0: i32) -> (i32, i32, i32) {
    %c0_i32 = arith.constant 0 : i32
    %c0_i32_0 = arith.constant 0 : i32
    %c0_i32_1 = arith.constant 0 : i32
    %c0_i32_2 = arith.constant 0 : i32
    return %c0_i32, %c0_i32_0, %c0_i32_1 : i32, i32, i32
  }
  func.func @transform_1(%arg0: i32) -> (i32, i32, i32) {
    %c0_i32 = arith.constant 0 : i32
    %c0_i32_0 = arith.constant 0 : i32
    %c0_i32_1 = arith.constant 0 : i32
    %c0_i32_2 = arith.constant 0 : i32
    return %c0_i32, %c0_i32_0, %c0_i32_1 : i32, i32, i32
  }
  func.func @transform_2(%arg0: i32) -> (i32, i32, i32) {
    %c0_i32 = arith.constant 0 : i32
    %c0_i32_0 = arith.constant 0 : i32
    %c0_i32_1 = arith.constant 0 : i32
    %c0_i32_2 = arith.constant 0 : i32
    return %c0_i32, %c0_i32_0, %c0_i32_1 : i32, i32, i32
  }
  func.func @transform_3(%arg0: i32) -> (i32, i32, i32) {
    %c0_i32 = arith.constant 0 : i32
    %c0_i32_0 = arith.constant 0 : i32
    %c0_i32_1 = arith.constant 0 : i32
    %c0_i32_2 = arith.constant 0 : i32
    return %c0_i32, %c0_i32_0, %c0_i32_1 : i32, i32, i32
  }
}

module attributes {stable_mosaic.version = 11 : i64} {
  func.func @_epilogue_kernel(%arg0: i32, %arg1: memref<16x64xf32, #tpu.memory_space<vmem>>, %arg2: memref<16x64xf32, #tpu.memory_space<vmem>>, %arg3: memref<64x64xf32, #tpu.memory_space<vmem>>, %arg4: memref<1x64xf32, #tpu.memory_space<vmem>>, %arg5: memref<1x64xf32, #tpu.memory_space<vmem>>, %arg6: memref<1x64xf32, #tpu.memory_space<vmem>>, %arg7: memref<64x512xf32, #tpu.memory_space<vmem>>, %arg8: memref<1x512xf32, #tpu.memory_space<vmem>>, %arg9: memref<512x64xf32, #tpu.memory_space<vmem>>, %arg10: memref<1x64xf32, #tpu.memory_space<vmem>>, %arg11: memref<1x64xf32, #tpu.memory_space<vmem>>, %arg12: memref<1x64xf32, #tpu.memory_space<vmem>>, %arg13: memref<64x4xf32, #tpu.memory_space<vmem>>, %arg14: memref<1x4xf32, #tpu.memory_space<vmem>>, %arg15: memref<16x4xf32, #tpu.memory_space<vmem>>) attributes {dimension_semantics = [#tpu.dimension_semantics<arbitrary>], iteration_bounds = array<i64: 1>, scalar_prefetch = 0 : i64, scratch_operands = 0 : i64, tpu.core_type = #tpu.core_type<tc>, window_params = [{pipeline_mode = #tpu.pipeline_mode<synchronous>, transform_indices = @transform_0, window_bounds = array<i64: 16, 64>}, {pipeline_mode = #tpu.pipeline_mode<synchronous>, transform_indices = @transform_1, window_bounds = array<i64: 16, 64>}, {pipeline_mode = #tpu.pipeline_mode<synchronous>, transform_indices = @transform_2, window_bounds = array<i64: 64, 64>}, {pipeline_mode = #tpu.pipeline_mode<synchronous>, transform_indices = @transform_3, window_bounds = array<i64: 1, 64>}, {pipeline_mode = #tpu.pipeline_mode<synchronous>, transform_indices = @transform_4, window_bounds = array<i64: 1, 64>}, {pipeline_mode = #tpu.pipeline_mode<synchronous>, transform_indices = @transform_5, window_bounds = array<i64: 1, 64>}, {pipeline_mode = #tpu.pipeline_mode<synchronous>, transform_indices = @transform_6, window_bounds = array<i64: 64, 512>}, {pipeline_mode = #tpu.pipeline_mode<synchronous>, transform_indices = @transform_7, window_bounds = array<i64: 1, 512>}, {pipeline_mode = #tpu.pipeline_mode<synchronous>, transform_indices = @transform_8, window_bounds = array<i64: 512, 64>}, {pipeline_mode = #tpu.pipeline_mode<synchronous>, transform_indices = @transform_9, window_bounds = array<i64: 1, 64>}, {pipeline_mode = #tpu.pipeline_mode<synchronous>, transform_indices = @transform_10, window_bounds = array<i64: 1, 64>}, {pipeline_mode = #tpu.pipeline_mode<synchronous>, transform_indices = @transform_11, window_bounds = array<i64: 1, 64>}, {pipeline_mode = #tpu.pipeline_mode<synchronous>, transform_indices = @transform_12, window_bounds = array<i64: 64, 4>}, {pipeline_mode = #tpu.pipeline_mode<synchronous>, transform_indices = @transform_13, window_bounds = array<i64: 1, 4>}, {pipeline_mode = #tpu.pipeline_mode<synchronous>, transform_indices = @transform_14, window_bounds = array<i64: 16, 4>}]} {
    %c0 = arith.constant 0 : index
    %c0_0 = arith.constant 0 : index
    %0 = vector.load %arg2[%c0, %c0_0] : memref<16x64xf32, #tpu.memory_space<vmem>>, vector<16x64xf32>
    %c0_1 = arith.constant 0 : index
    %c0_2 = arith.constant 0 : index
    %1 = vector.load %arg3[%c0_1, %c0_2] : memref<64x64xf32, #tpu.memory_space<vmem>>, vector<64x64xf32>
    %cst = arith.constant dense<0.000000e+00> : vector<16x64xf32>
    %2 = tpu.matmul %0, %1, %cst {dimension_numbers = #tpu.dot_dimension_numbers<[1], [0], [0], [1], [0, 0, 1, 1], [], []>} : vector<16x64xf32>, vector<64x64xf32>, vector<16x64xf32> -> vector<16x64xf32>
    %c0_3 = arith.constant 0 : index
    %c0_4 = arith.constant 0 : index
    %3 = vector.load %arg4[%c0_3, %c0_4] : memref<1x64xf32, #tpu.memory_space<vmem>>, vector<1x64xf32>
    %4 = vector.broadcast %3 : vector<1x64xf32> to vector<16x64xf32>
    %5 = arith.addf %2, %4 : vector<16x64xf32>
    %c0_5 = arith.constant 0 : index
    %c0_6 = arith.constant 0 : index
    %6 = vector.load %arg1[%c0_5, %c0_6] : memref<16x64xf32, #tpu.memory_space<vmem>>, vector<16x64xf32>
    %7 = arith.addf %6, %5 : vector<16x64xf32>
    %c0_7 = arith.constant 0 : index
    %c0_8 = arith.constant 0 : index
    %8 = vector.load %arg5[%c0_7, %c0_8] : memref<1x64xf32, #tpu.memory_space<vmem>>, vector<1x64xf32>
    %c0_9 = arith.constant 0 : index
    %c0_10 = arith.constant 0 : index
    %9 = vector.load %arg6[%c0_9, %c0_10] : memref<1x64xf32, #tpu.memory_space<vmem>>, vector<1x64xf32>
    %cst_11 = arith.constant dense<0.000000e+00> : vector<16xf32>
    %10 = vector.multi_reduction <add>, %7, %cst_11 [1] : vector<16x64xf32> to vector<16xf32>
    %11 = vector.shape_cast %10 : vector<16xf32> to vector<16x1xf32>
    %cst_12 = arith.constant 6.400000e+01 : f32
    %12 = vector.broadcast %cst_12 : f32 to vector<16x1xf32>
    %13 = arith.divf %11, %12 : vector<16x1xf32>
    %14 = vector.broadcast %13 : vector<16x1xf32> to vector<16x64xf32>
    %15 = arith.subf %7, %14 : vector<16x64xf32>
    %16 = arith.mulf %15, %15 : vector<16x64xf32>
    %cst_13 = arith.constant dense<0.000000e+00> : vector<16xf32>
    %17 = vector.multi_reduction <add>, %16, %cst_13 [1] : vector<16x64xf32> to vector<16xf32>
    %18 = vector.shape_cast %17 : vector<16xf32> to vector<16x1xf32>
    %cst_14 = arith.constant 6.400000e+01 : f32
    %19 = vector.broadcast %cst_14 : f32 to vector<16x1xf32>
    %20 = arith.divf %18, %19 : vector<16x1xf32>
    %21 = vector.broadcast %13 : vector<16x1xf32> to vector<16x64xf32>
    %22 = arith.subf %7, %21 : vector<16x64xf32>
    %cst_15 = arith.constant 9.99999974E-6 : f32
    %23 = vector.broadcast %cst_15 : f32 to vector<16x1xf32>
    %24 = arith.addf %20, %23 : vector<16x1xf32>
    %25 = math.rsqrt %24 : vector<16x1xf32>
    %26 = vector.broadcast %25 : vector<16x1xf32> to vector<16x64xf32>
    %27 = arith.mulf %22, %26 : vector<16x64xf32>
    %28 = vector.broadcast %8 : vector<1x64xf32> to vector<16x64xf32>
    %29 = arith.mulf %27, %28 : vector<16x64xf32>
    %30 = vector.broadcast %9 : vector<1x64xf32> to vector<16x64xf32>
    %31 = arith.addf %29, %30 : vector<16x64xf32>
    %c0_16 = arith.constant 0 : index
    %c0_17 = arith.constant 0 : index
    %32 = vector.load %arg7[%c0_16, %c0_17] : memref<64x512xf32, #tpu.memory_space<vmem>>, vector<64x512xf32>
    %cst_18 = arith.constant dense<0.000000e+00> : vector<16x512xf32>
    %33 = tpu.matmul %31, %32, %cst_18 {dimension_numbers = #tpu.dot_dimension_numbers<[1], [0], [0], [1], [0, 0, 1, 1], [], []>} : vector<16x64xf32>, vector<64x512xf32>, vector<16x512xf32> -> vector<16x512xf32>
    %c0_19 = arith.constant 0 : index
    %c0_20 = arith.constant 0 : index
    %34 = vector.load %arg8[%c0_19, %c0_20] : memref<1x512xf32, #tpu.memory_space<vmem>>, vector<1x512xf32>
    %35 = vector.broadcast %34 : vector<1x512xf32> to vector<16x512xf32>
    %36 = arith.addf %33, %35 : vector<16x512xf32>
    %cst_21 = arith.constant 0.000000e+00 : f32
    %37 = vector.broadcast %cst_21 : f32 to vector<16x512xf32>
    %38 = arith.maximumf %36, %37 : vector<16x512xf32>
    %c0_22 = arith.constant 0 : index
    %c0_23 = arith.constant 0 : index
    %39 = vector.load %arg9[%c0_22, %c0_23] : memref<512x64xf32, #tpu.memory_space<vmem>>, vector<512x64xf32>
    %cst_24 = arith.constant dense<0.000000e+00> : vector<16x64xf32>
    %40 = tpu.matmul %38, %39, %cst_24 {dimension_numbers = #tpu.dot_dimension_numbers<[1], [0], [0], [1], [0, 0, 1, 1], [], []>} : vector<16x512xf32>, vector<512x64xf32>, vector<16x64xf32> -> vector<16x64xf32>
    %c0_25 = arith.constant 0 : index
    %c0_26 = arith.constant 0 : index
    %41 = vector.load %arg10[%c0_25, %c0_26] : memref<1x64xf32, #tpu.memory_space<vmem>>, vector<1x64xf32>
    %42 = vector.broadcast %41 : vector<1x64xf32> to vector<16x64xf32>
    %43 = arith.addf %40, %42 : vector<16x64xf32>
    %44 = arith.addf %31, %43 : vector<16x64xf32>
    %c0_27 = arith.constant 0 : index
    %c0_28 = arith.constant 0 : index
    %45 = vector.load %arg11[%c0_27, %c0_28] : memref<1x64xf32, #tpu.memory_space<vmem>>, vector<1x64xf32>
    %c0_29 = arith.constant 0 : index
    %c0_30 = arith.constant 0 : index
    %46 = vector.load %arg12[%c0_29, %c0_30] : memref<1x64xf32, #tpu.memory_space<vmem>>, vector<1x64xf32>
    %cst_31 = arith.constant dense<0.000000e+00> : vector<16xf32>
    %47 = vector.multi_reduction <add>, %44, %cst_31 [1] : vector<16x64xf32> to vector<16xf32>
    %48 = vector.shape_cast %47 : vector<16xf32> to vector<16x1xf32>
    %cst_32 = arith.constant 6.400000e+01 : f32
    %49 = vector.broadcast %cst_32 : f32 to vector<16x1xf32>
    %50 = arith.divf %48, %49 : vector<16x1xf32>
    %51 = vector.broadcast %50 : vector<16x1xf32> to vector<16x64xf32>
    %52 = arith.subf %44, %51 : vector<16x64xf32>
    %53 = arith.mulf %52, %52 : vector<16x64xf32>
    %cst_33 = arith.constant dense<0.000000e+00> : vector<16xf32>
    %54 = vector.multi_reduction <add>, %53, %cst_33 [1] : vector<16x64xf32> to vector<16xf32>
    %55 = vector.shape_cast %54 : vector<16xf32> to vector<16x1xf32>
    %cst_34 = arith.constant 6.400000e+01 : f32
    %56 = vector.broadcast %cst_34 : f32 to vector<16x1xf32>
    %57 = arith.divf %55, %56 : vector<16x1xf32>
    %58 = vector.broadcast %50 : vector<16x1xf32> to vector<16x64xf32>
    %59 = arith.subf %44, %58 : vector<16x64xf32>
    %cst_35 = arith.constant 9.99999974E-6 : f32
    %60 = vector.broadcast %cst_35 : f32 to vector<16x1xf32>
    %61 = arith.addf %57, %60 : vector<16x1xf32>
    %62 = math.rsqrt %61 : vector<16x1xf32>
    %63 = vector.broadcast %62 : vector<16x1xf32> to vector<16x64xf32>
    %64 = arith.mulf %59, %63 : vector<16x64xf32>
    %65 = vector.broadcast %45 : vector<1x64xf32> to vector<16x64xf32>
    %66 = arith.mulf %64, %65 : vector<16x64xf32>
    %67 = vector.broadcast %46 : vector<1x64xf32> to vector<16x64xf32>
    %68 = arith.addf %66, %67 : vector<16x64xf32>
    %c0_36 = arith.constant 0 : index
    %c0_37 = arith.constant 0 : index
    %69 = vector.load %arg13[%c0_36, %c0_37] : memref<64x4xf32, #tpu.memory_space<vmem>>, vector<64x4xf32>
    %cst_38 = arith.constant dense<0.000000e+00> : vector<16x4xf32>
    %70 = tpu.matmul %68, %69, %cst_38 {dimension_numbers = #tpu.dot_dimension_numbers<[1], [0], [0], [1], [0, 0, 1, 1], [], []>} : vector<16x64xf32>, vector<64x4xf32>, vector<16x4xf32> -> vector<16x4xf32>
    %c0_39 = arith.constant 0 : index
    %c0_40 = arith.constant 0 : index
    %71 = vector.load %arg14[%c0_39, %c0_40] : memref<1x4xf32, #tpu.memory_space<vmem>>, vector<1x4xf32>
    %72 = vector.broadcast %71 : vector<1x4xf32> to vector<16x4xf32>
    %73 = arith.addf %70, %72 : vector<16x4xf32>
    %cst_41 = arith.constant dense<0xFF800000> : vector<16xf32>
    %74 = vector.multi_reduction <maximumf>, %73, %cst_41 [1] : vector<16x4xf32> to vector<16xf32>
    %75 = vector.shape_cast %74 : vector<16xf32> to vector<16x1xf32>
    %76 = vector.broadcast %75 : vector<16x1xf32> to vector<16x4xf32>
    %77 = arith.subf %73, %76 : vector<16x4xf32>
    %78 = math.exp %77 : vector<16x4xf32>
    %cst_42 = arith.constant dense<0.000000e+00> : vector<16xf32>
    %79 = vector.multi_reduction <add>, %78, %cst_42 [1] : vector<16x4xf32> to vector<16xf32>
    %80 = vector.shape_cast %79 : vector<16xf32> to vector<16x1xf32>
    %81 = vector.broadcast %80 : vector<16x1xf32> to vector<16x4xf32>
    %82 = arith.divf %78, %81 : vector<16x4xf32>
    %c0_43 = arith.constant 0 : index
    %c0_44 = arith.constant 0 : index
    %83 = vector.load %arg15[%c0_43, %c0_44] : memref<16x4xf32, #tpu.memory_space<vmem>>, vector<16x4xf32>
    tpu.vector_store %arg15[%c0_43, %c0_44], %82 {strides = array<i32>} : memref<16x4xf32, #tpu.memory_space<vmem>>, vector<16x4xf32>,
    return
  }
  func.func @transform_0(%arg0: i32) -> (i32, i32) {
    %c0_i32 = arith.constant 0 : i32
    %c0_i32_0 = arith.constant 0 : i32
    %c0_i32_1 = arith.constant 0 : i32
    return %c0_i32, %c0_i32_0 : i32, i32
  }
  func.func @transform_1(%arg0: i32) -> (i32, i32) {
    %c0_i32 = arith.constant 0 : i32
    %c0_i32_0 = arith.constant 0 : i32
    %c0_i32_1 = arith.constant 0 : i32
    return %c0_i32, %c0_i32_0 : i32, i32
  }
  func.func @transform_2(%arg0: i32) -> (i32, i32) {
    %c0_i32 = arith.constant 0 : i32
    %c0_i32_0 = arith.constant 0 : i32
    %c0_i32_1 = arith.constant 0 : i32
    return %c0_i32, %c0_i32_0 : i32, i32
  }
  func.func @transform_3(%arg0: i32) -> (i32, i32) {
    %c0_i32 = arith.constant 0 : i32
    %c0_i32_0 = arith.constant 0 : i32
    %c0_i32_1 = arith.constant 0 : i32
    return %c0_i32, %c0_i32_0 : i32, i32
  }
  func.func @transform_4(%arg0: i32) -> (i32, i32) {
    %c0_i32 = arith.constant 0 : i32
    %c0_i32_0 = arith.constant 0 : i32
    %c0_i32_1 = arith.constant 0 : i32
    return %c0_i32, %c0_i32_0 : i32, i32
  }
  func.func @transform_5(%arg0: i32) -> (i32, i32) {
    %c0_i32 = arith.constant 0 : i32
    %c0_i32_0 = arith.constant 0 : i32
    %c0_i32_1 = arith.constant 0 : i32
    return %c0_i32, %c0_i32_0 : i32, i32
  }
  func.func @transform_6(%arg0: i32) -> (i32, i32) {
    %c0_i32 = arith.constant 0 : i32
    %c0_i32_0 = arith.constant 0 : i32
    %c0_i32_1 = arith.constant 0 : i32
    return %c0_i32, %c0_i32_0 : i32, i32
  }
  func.func @transform_7(%arg0: i32) -> (i32, i32) {
    %c0_i32 = arith.constant 0 : i32
    %c0_i32_0 = arith.constant 0 : i32
    %c0_i32_1 = arith.constant 0 : i32
    return %c0_i32, %c0_i32_0 : i32, i32
  }
  func.func @transform_8(%arg0: i32) -> (i32, i32) {
    %c0_i32 = arith.constant 0 : i32
    %c0_i32_0 = arith.constant 0 : i32
    %c0_i32_1 = arith.constant 0 : i32
    return %c0_i32, %c0_i32_0 : i32, i32
  }
  func.func @transform_9(%arg0: i32) -> (i32, i32) {
    %c0_i32 = arith.constant 0 : i32
    %c0_i32_0 = arith.constant 0 : i32
    %c0_i32_1 = arith.constant 0 : i32
    return %c0_i32, %c0_i32_0 : i32, i32
  }
  func.func @transform_10(%arg0: i32) -> (i32, i32) {
    %c0_i32 = arith.constant 0 : i32
    %c0_i32_0 = arith.constant 0 : i32
    %c0_i32_1 = arith.constant 0 : i32
    return %c0_i32, %c0_i32_0 : i32, i32
  }
  func.func @transform_11(%arg0: i32) -> (i32, i32) {
    %c0_i32 = arith.constant 0 : i32
    %c0_i32_0 = arith.constant 0 : i32
    %c0_i32_1 = arith.constant 0 : i32
    return %c0_i32, %c0_i32_0 : i32, i32
  }
  func.func @transform_12(%arg0: i32) -> (i32, i32) {
    %c0_i32 = arith.constant 0 : i32
    %c0_i32_0 = arith.constant 0 : i32
    %c0_i32_1 = arith.constant 0 : i32
    return %c0_i32, %c0_i32_0 : i32, i32
  }
  func.func @transform_13(%arg0: i32) -> (i32, i32) {
    %c0_i32 = arith.constant 0 : i32
    %c0_i32_0 = arith.constant 0 : i32
    %c0_i32_1 = arith.constant 0 : i32
    return %c0_i32, %c0_i32_0 : i32, i32
  }
  func.func @transform_14(%arg0: i32) -> (i32, i32) {
    %c0_i32 = arith.constant 0 : i32
    %c0_i32_0 = arith.constant 0 : i32
    %c0_i32_1 = arith.constant 0 : i32
    return %c0_i32, %c0_i32_0 : i32, i32
  }
}

</mosaic_0001>

<llo_original>
// kernel: grtrans_forward.5
$region0: #{grtrans_forward.5}
  #allocation0 [shape = 'u32[]', space=smem, size = 0x4, offset = 0x4, fixed_abs, tag = 'smem constant byte address 0x4 - core index']
  #allocation1 [shape = 'u32[144,128]{1,0:T(1,128)}', space=vmem, size = 0x12000, scoped, tag = 'internal scratch']
  %s0 = inlined_call_operand.vmem [shape: f32[16,64], index: 0, kind: input, shape index: {}]
  %s1 = inlined_call_operand.vmem [shape: f32[16,64], index: 1, kind: input, shape index: {}]
  %s2 = inlined_call_operand.vmem [shape: f32[64,64], index: 2, kind: input, shape index: {}]
  %s3 = inlined_call_operand.vmem [shape: f32[1,64], index: 3, kind: input, shape index: {}]
  %s4 = inlined_call_operand.vmem [shape: f32[1,64], index: 4, kind: input, shape index: {}]
  %s5 = inlined_call_operand.vmem [shape: f32[1,64], index: 5, kind: input, shape index: {}]
  %s6 = inlined_call_operand.vmem [shape: f32[64,512], index: 6, kind: input, shape index: {}]
  %s7 = inlined_call_operand.vmem [shape: f32[1,512], index: 7, kind: input, shape index: {}]
  %s8 = inlined_call_operand.vmem [shape: f32[512,64], index: 8, kind: input, shape index: {}]
  %s9 = inlined_call_operand.vmem [shape: f32[1,64], index: 9, kind: input, shape index: {}]
  %s10 = inlined_call_operand.vmem [shape: f32[1,64], index: 10, kind: input, shape index: {}]
  %s11 = inlined_call_operand.vmem [shape: f32[1,64], index: 11, kind: input, shape index: {}]
  %s12 = inlined_call_operand.vmem [shape: f32[64,4], index: 12, kind: input, shape index: {}]
  %s13 = inlined_call_operand.vmem [shape: f32[1,4], index: 13, kind: input, shape index: {}]
  %s14 = inlined_call_operand.vmem [shape: f32[16,4], index: 14, kind: output, shape index: {}]
  %s15 = sld [smem:[#allocation0]]
  $region66: #{grtrans_forward.5} parent=0
    _
  %s17 = ssub.s32 1, %s15
  %s18 = scalar_select 0, %s17, %s15
  // Predicated region
  $region2: #{grtrans_forward.5} parent=0 // pred_check
    _
  $region3: #{grtrans_forward.5} parent=0 // pred_check_branch
    %20 = sbr.rel (0) target = $region5
  $region4: #{grtrans_forward.5} parent=0 // pred_region
    _
  $region5: #{grtrans_forward.5} parent=0 // pred_fallthru
    _
  // Predicated region
  $region6: #{grtrans_forward.5} parent=0 // pred_check
    _
  $region7: #{grtrans_forward.5} parent=0 // pred_check_branch
    %22 = sbr.rel (0) target = $region9
  $region8: #{grtrans_forward.5} parent=0 // pred_region
    _
  $region9: #{grtrans_forward.5} parent=0 // pred_fallthru
    _
  // Predicated region
  $region10: #{grtrans_forward.5} parent=0 // pred_check
    _
  $region11: #{grtrans_forward.5} parent=0 // pred_check_branch
    %24 = sbr.rel (0) target = $region13
  $region12: #{grtrans_forward.5} parent=0 // pred_region
    _
  $region13: #{grtrans_forward.5} parent=0 // pred_fallthru
    _
  // Predicated region
  $region14: #{grtrans_forward.5} parent=0 // pred_check
    _
  $region15: #{grtrans_forward.5} parent=0 // pred_check_branch
    %26 = sbr.rel (0) target = $region17
  $region16: #{grtrans_forward.5} parent=0 // pred_region
    _
  $region17: #{grtrans_forward.5} parent=0 // pred_fallthru
    _
  // Predicated region
  $region18: #{grtrans_forward.5} parent=0 // pred_check
    _
  $region19: #{grtrans_forward.5} parent=0 // pred_check_branch
    %28 = sbr.rel (0) target = $region21
  $region20: #{grtrans_forward.5} parent=0 // pred_region
    _
  $region21: #{grtrans_forward.5} parent=0 // pred_fallthru
    _
  // Predicated region
  $region22: #{grtrans_forward.5} parent=0 // pred_check
    _
  $region23: #{grtrans_forward.5} parent=0 // pred_check_branch
    %30 = sbr.rel (0) target = $region25
  $region24: #{grtrans_forward.5} parent=0 // pred_region
    _
  $region25: #{grtrans_forward.5} parent=0 // pred_fallthru
    _
  // Predicated region
  $region26: #{grtrans_forward.5} parent=0 // pred_check
    _
  $region27: #{grtrans_forward.5} parent=0 // pred_check_branch
    %32 = sbr.rel (0) target = $region29
  $region28: #{grtrans_forward.5} parent=0 // pred_region
    _
  $region29: #{grtrans_forward.5} parent=0 // pred_fallthru
    _
  // Predicated region
  $region30: #{grtrans_forward.5} parent=0 // pred_check
    _
  $region31: #{grtrans_forward.5} parent=0 // pred_check_branch
    %34 = sbr.rel (0) target = $region33
  $region32: #{grtrans_forward.5} parent=0 // pred_region
    _
  $region33: #{grtrans_forward.5} parent=0 // pred_fallthru
    _
  // Predicated region
  $region34: #{grtrans_forward.5} parent=0 // pred_check
    _
  $region35: #{grtrans_forward.5} parent=0 // pred_check_branch
    %36 = sbr.rel (0) target = $region37
  $region36: #{grtrans_forward.5} parent=0 // pred_region
    _
  $region37: #{grtrans_forward.5} parent=0 // pred_fallthru
    _
  // Predicated region
  $region38: #{grtrans_forward.5} parent=0 // pred_check
    _
  $region39: #{grtrans_forward.5} parent=0 // pred_check_branch
    %38 = sbr.rel (0) target = $region41
  $region40: #{grtrans_forward.5} parent=0 // pred_region
    _
  $region41: #{grtrans_forward.5} parent=0 // pred_fallthru
    _
  // Predicated region
  $region42: #{grtrans_forward.5} parent=0 // pred_check
    _
  $region43: #{grtrans_forward.5} parent=0 // pred_check_branch
    %40 = sbr.rel (0) target = $region45
  $region44: #{grtrans_forward.5} parent=0 // pred_region
    _
  $region45: #{grtrans_forward.5} parent=0 // pred_fallthru
    _
  // Predicated region
  $region46: #{grtrans_forward.5} parent=0 // pred_check
    _
  $region47: #{grtrans_forward.5} parent=0 // pred_check_branch
    %42 = sbr.rel (0) target = $region49
  $region48: #{grtrans_forward.5} parent=0 // pred_region
    _
  $region49: #{grtrans_forward.5} parent=0 // pred_fallthru
    _
  // Predicated region
  $region50: #{grtrans_forward.5} parent=0 // pred_check
    _
  $region51: #{grtrans_forward.5} parent=0 // pred_check_branch
    %44 = sbr.rel (0) target = $region53
  $region52: #{grtrans_forward.5} parent=0 // pred_region
    _
  $region53: #{grtrans_forward.5} parent=0 // pred_fallthru
    _
  // Predicated region
  $region54: #{grtrans_forward.5} parent=0 // pred_check
    _
  $region55: #{grtrans_forward.5} parent=0 // pred_check_branch
    %46 = sbr.rel (0) target = $region57
  $region56: #{grtrans_forward.5} parent=0 // pred_region
    _
  $region57: #{grtrans_forward.5} parent=0 // pred_fallthru
    _
  %v47 = vld [vmem:[%s1] sm:$0xff]
  %v48 = vld [vmem:[%s1 + $0x8] sm:$0xff]
  %v49 = vld [vmem:[%s2] sm:$0xff]
  %v50 = vld [vmem:[%s2 + $0x8] sm:$0xff]
  %v51 = vld [vmem:[%s2 + $0x10] sm:$0xff]
  %v52 = vld [vmem:[%s2 + $0x18] sm:$0xff]
  %v53 = vld [vmem:[%s2 + $0x20] sm:$0xff]
  %v54 = vld [vmem:[%s2 + $0x28] sm:$0xff]
  %v55 = vld [vmem:[%s2 + $0x30] sm:$0xff]
  %v56 = vld [vmem:[%s2 + $0x38] sm:$0xff]
  %v57 = vld [vmem:[%s3] sm:$0x1]
  %v59 = vlaneseq
  %v60 = vshrl.u32 %v59, 7
  %v61 = vsub.s32 0, %v60
  %v62 = vrot.slane %v57, %v61
  %vm64 = vcmask 523264
  %v66 = vsel %vm64, %v47, 0
  %v69 = vsel %vm64, %v48, 0
  %71 = vmatprep.subr.mxu0 0.0
  %72 = vmatpush1.msra.mxu0 0.0
  %73 = vmatprep.subr.mxu0 0.0
  %74 = vmatpush1.msra.mxu0 0.0
  %75 = vmatprep.subr.mxu0 0.0
  %76 = vmatpush1.msra.mxu0 0.0
  %77 = vmatprep.subr.mxu0 0.0
  %78 = vmatpush1.msra.mxu0 0.0
  %79 = vmatprep.subr.mxu0 0.0
  %80 = vmatpush1.msra.mxu0 0.0
  %81 = vmatprep.subr.mxu0 0.0
  %82 = vmatpush1.msra.mxu0 0.0
  %83 = vmatprep.subr.mxu0 0.0
  %84 = vmatpush1.msra.mxu0 0.0
  %85 = vmatprep.subr.mxu0 0.0
  %86 = vmatpush1.msra.mxu0 0.0
  %87 = vmatprep.subr.mxu0 0.0
  %88 = vmatpush1.msra.mxu0 %v56
  %89 = vmatprep.subr.mxu0 0.0
  %90 = vmatpush1.msra.mxu0 %v55
  %91 = vmatprep.subr.mxu0 0.0
  %92 = vmatpush1.msra.mxu0 %v54
  %93 = vmatprep.subr.mxu0 0.0
  %94 = vmatpush1.msra.mxu0 %v53
  %95 = vmatprep.subr.mxu0 0.0
  %96 = vmatpush1.msra.mxu0 %v52
  %97 = vmatprep.subr.mxu0 0.0
  %98 = vmatpush1.msra.mxu0 %v51
  %99 = vmatprep.subr.mxu0 0.0
  %100 = vmatpush1.msra.mxu0 %v50
  %101 = vmatprep.subr.mxu0 0.0
  %102 = vmatpush1.msra.mxu0 %v49
  %103 = vmatprep.subr.mxu0 0.0
  %104 = vmatpush2.msra.mxu0 0.0
  %105 = vmatprep.subr.mxu0 0.0
  %106 = vmatpush2.msra.mxu0 0.0
  %107 = vmatprep.subr.mxu0 0.0
  %108 = vmatpush2.msra.mxu0 0.0
  %109 = vmatprep.subr.mxu0 0.0
  %110 = vmatpush2.msra.mxu0 0.0
  %111 = vmatprep.subr.mxu0 0.0
  %112 = vmatpush2.msra.mxu0 0.0
  %113 = vmatprep.subr.mxu0 0.0
  %114 = vmatpush2.msra.mxu0 0.0
  %115 = vmatprep.subr.mxu0 0.0
  %116 = vmatpush2.msra.mxu0 0.0
  %117 = vmatprep.subr.mxu0 0.0
  %118 = vmatpush2.msra.mxu0 0.0
  %119 = vmatprep.subr.mxu0 0.0
  %120 = vmatpush2.msra.mxu0 0.0
  %121 = vmatprep.subr.mxu0 0.0
  %122 = vmatpush2.msra.mxu0 0.0
  %123 = vmatprep.subr.mxu0 0.0
  %124 = vmatpush2.msra.mxu0 0.0
  %125 = vmatprep.subr.mxu0 0.0
  %126 = vmatpush2.msra.mxu0 0.0
  %127 = vmatprep.subr.mxu0 0.0
  %128 = vmatpush2.msra.mxu0 0.0
  %129 = vmatprep.subr.mxu0 0.0
  %130 = vmatpush2.msra.mxu0 0.0
  %131 = vmatprep.subr.mxu0 0.0
  %132 = vmatpush2.msra.mxu0 0.0
  %133 = vmatprep.subr.mxu0 0.0
  %134 = vmatpush2.msra.mxu0 0.0
  %135 = vmatprep.mubr.f32.mxu0 0.0
  %136 = vmatmul.mubr.f32.gmra.mxu0 %v66
  %v137 = vpop.f32.mrf.mxu0
  %v138 = vadd.f32 %v62, %v137
  %v139 = vpop.f32.mrf.mxu0
  %140 = vmatprep.mubr.f32.mxu0 0.0
  %141 = vmatmul.mubr.f32.gmra.mxu0 %v69
  %v142 = vpop.f32.mrf.mxu0
  %v143 = vadd.f32 %v62, %v142
  %v144 = vpop.f32.mrf.mxu0
  %145 = vdwg.mxu0
  %v146 = vld [vmem:[%s0] sm:$0xff]
  %v147 = vld [vmem:[%s0 + $0x8] sm:$0xff]
  %v148 = vadd.f32 %v146, %v138
  %v149 = vadd.f32 %v147, %v143
  %v150 = vld [vmem:[%s4] sm:$0x1]
  %v151 = vld [vmem:[%s5] sm:$0x1]
  %v152 = vsel %vm64, %v148, 0.0
  %153 = vadd.xlane.f32.xlu0 %v152
  %v154 = vpop.xlane.xlu0 %153
  %v155 = vsel %vm64, %v149, 0.0
  %156 = vadd.xlane.f32.xlu0 %v155
  %v157 = vpop.xlane.xlu0 %156
  %v158 = vrcp.pop 64.0
  %v159 = vmul.f32 %v154, %v158
  %v160 = vmul.f32 %v157, %v158
  %v161 = vsub.f32 %v148, %v159
  %v162 = vsub.f32 %v149, %v160
  %v163 = vmul.f32 %v161, %v161
  %v164 = vmul.f32 %v162, %v162
  %v165 = vsel %vm64, %v163, 0.0
  %166 = vadd.xlane.f32.xlu0 %v165
  %v167 = vpop.xlane.xlu0 %166
  %v168 = vsel %vm64, %v164, 0.0
  %169 = vadd.xlane.f32.xlu0 %v168
  %v170 = vpop.xlane.xlu0 %169
  %v171 = vmul.f32 %v167, %v158
  %v172 = vmul.f32 %v170, %v158
  %v173 = vadd.f32 %v171, 1e-05
  %v174 = vadd.f32 %v172, 1e-05
  %v175 = vrsqrt.pop %v173
  %v176 = vrsqrt.pop %v174
  %v177 = vmul.f32 %v161, %v175
  %v178 = vmul.f32 %v162, %v176
  %v180 = vlaneseq
  %v181 = vshrl.u32 %v180, 7
  %v182 = vsub.s32 0, %v181
  %v183 = vrot.slane %v150, %v182
  %v185 = vmul.f32 %v177, %v183
  %v186 = vmul.f32 %v178, %v183
  %v188 = vlaneseq
  %v189 = vshrl.u32 %v188, 7
  %v190 = vsub.s32 0, %v189
  %v191 = vrot.slane %v151, %v190
  %v193 = vadd.f32 %v185, %v191
  %v194 = vadd.f32 %v186, %v191
  %v195 = vld [vmem:[%s6] sm:$0xff]
  %v196 = vld [vmem:[%s6 + $0x8] sm:$0xff]
  %v197 = vld [vmem:[%s6 + $0x10] sm:$0xff]
  %v198 = vld [vmem:[%s6 + $0x18] sm:$0xff]
  %v199 = vld [vmem:[%s6 + $0x20] sm:$0xff]
  %v200 = vld [vmem:[%s6 + $0x28] sm:$0xff]
  %v201 = vld [vmem:[%s6 + $0x30] sm:$0xff]
  %v202 = vld [vmem:[%s6 + $0x38] sm:$0xff]
  %v203 = vld [vmem:[%s6 + $0x40] sm:$0xff]
  %v204 = vld [vmem:[%s6 + $0x48] sm:$0xff]
  %v205 = vld [vmem:[%s6 + $0x50] sm:$0xff]
  %v206 = vld [vmem:[%s6 + $0x58] sm:$0xff]
  %v207 = vld [vmem:[%s6 + $0x60] sm:$0xff]
  %v208 = vld [vmem:[%s6 + $0x68] sm:$0xff]
  %v209 = vld [vmem:[%s6 + $0x70] sm:$0xff]
  %v210 = vld [vmem:[%s6 + $0x78] sm:$0xff]
  %v211 = vld [vmem:[%s6 + $0x80] sm:$0xff]
  %v212 = vld [vmem:[%s6 + $0x88] sm:$0xff]
  %v213 = vld [vmem:[%s6 + $0x90] sm:$0xff]
  %v214 = vld [vmem:[%s6 + $0x98] sm:$0xff]
  %v215 = vld [vmem:[%s6 + $0xa0] sm:$0xff]
  %v216 = vld [vmem:[%s6 + $0xa8] sm:$0xff]
  %v217 = vld [vmem:[%s6 + $0xb0] sm:$0xff]
  %v218 = vld [vmem:[%s6 + $0xb8] sm:$0xff]
  %v219 = vld [vmem:[%s6 + $0xc0] sm:$0xff]
  %v220 = vld [vmem:[%s6 + $0xc8] sm:$0xff]
  %v221 = vld [vmem:[%s6 + $0xd0] sm:$0xff]
  %v222 = vld [vmem:[%s6 + $0xd8] sm:$0xff]
  %v223 = vld [vmem:[%s6 + $0xe0] sm:$0xff]
  %v224 = vld [vmem:[%s6 + $0xe8] sm:$0xff]
  %v225 = vld [vmem:[%s6 + $0xf0] sm:$0xff]
  %v226 = vld [vmem:[%s6 + $0xf8] sm:$0xff]
  %v227 = vld [vmem:[%s7] sm:$0xf]
  %v229 = vlaneseq
  %v230 = vshrl.u32 %v229, 7
  %v231 = vsub.s32 0, %v230
  %v232 = vrot.slane %v227, %v231
  %v233 = vlaneseq
  %v234 = vshrl.u32 %v233, 7
  %v235 = vsub.s32 1, %v234
  %v236 = vrot.slane %v227, %v235
  %v237 = vlaneseq
  %v238 = vshrl.u32 %v237, 7
  %v239 = vsub.s32 2, %v238
  %v240 = vrot.slane %v227, %v239
  %v241 = vlaneseq
  %v242 = vshrl.u32 %v241, 7
  %v243 = vsub.s32 3, %v242
  %v244 = vrot.slane %v227, %v243
  %v250 = vsel %vm64, %v193, 0
  %v253 = vsel %vm64, %v194, 0
  %255 = vmatprep.subr.mxu0 0.0
  %256 = vmatpush1.msra.mxu0 0.0
  %257 = vmatprep.subr.mxu0 0.0
  %258 = vmatpush1.msra.mxu0 0.0
  %259 = vmatprep.subr.mxu0 0.0
  %260 = vmatpush1.msra.mxu0 0.0
  %261 = vmatprep.subr.mxu0 0.0
  %262 = vmatpush1.msra.mxu0 0.0
  %263 = vmatprep.subr.mxu0 0.0
  %264 = vmatpush1.msra.mxu0 0.0
  %265 = vmatprep.subr.mxu0 0.0
  %266 = vmatpush1.msra.mxu0 0.0
  %267 = vmatprep.subr.mxu0 0.0
  %268 = vmatpush1.msra.mxu0 0.0
  %269 = vmatprep.subr.mxu0 0.0
  %270 = vmatpush1.msra.mxu0 0.0
  %271 = vmatprep.subr.mxu0 %v224
  %272 = vmatpush1.msra.mxu0 %v223
  %273 = vmatprep.subr.mxu0 %v220
  %274 = vmatpush1.msra.mxu0 %v219
  %275 = vmatprep.subr.mxu0 %v216
  %276 = vmatpush1.msra.mxu0 %v215
  %277 = vmatprep.subr.mxu0 %v212
  %278 = vmatpush1.msra.mxu0 %v211
  %279 = vmatprep.subr.mxu0 %v208
  %280 = vmatpush1.msra.mxu0 %v207
  %281 = vmatprep.subr.mxu0 %v204
  %282 = vmatpush1.msra.mxu0 %v203
  %283 = vmatprep.subr.mxu0 %v200
  %284 = vmatpush1.msra.mxu0 %v199
  %285 = vmatprep.subr.mxu0 %v196
  %286 = vmatpush1.msra.mxu0 %v195
  %287 = vmatprep.subr.mxu0 0.0
  %288 = vmatpush2.msra.mxu0 0.0
  %289 = vmatprep.subr.mxu0 0.0
  %290 = vmatpush2.msra.mxu0 0.0
  %291 = vmatprep.subr.mxu0 0.0
  %292 = vmatpush2.msra.mxu0 0.0
  %293 = vmatprep.subr.mxu0 0.0
  %294 = vmatpush2.msra.mxu0 0.0
  %295 = vmatprep.subr.mxu0 0.0
  %296 = vmatpush2.msra.mxu0 0.0
  %297 = vmatprep.subr.mxu0 0.0
  %298 = vmatpush2.msra.mxu0 0.0
  %299 = vmatprep.subr.mxu0 0.0
  %300 = vmatpush2.msra.mxu0 0.0
  %301 = vmatprep.subr.mxu0 0.0
  %302 = vmatpush2.msra.mxu0 0.0
  %303 = vmatprep.subr.mxu0 0.0
  %304 = vmatpush2.msra.mxu0 0.0
  %305 = vmatprep.subr.mxu0 0.0
  %306 = vmatpush2.msra.mxu0 0.0
  %307 = vmatprep.subr.mxu0 0.0
  %308 = vmatpush2.msra.mxu0 0.0
  %309 = vmatprep.subr.mxu0 0.0
  %310 = vmatpush2.msra.mxu0 0.0
  %311 = vmatprep.subr.mxu0 0.0
  %312 = vmatpush2.msra.mxu0 0.0
  %313 = vmatprep.subr.mxu0 0.0
  %314 = vmatpush2.msra.mxu0 0.0
  %315 = vmatprep.subr.mxu0 0.0
  %316 = vmatpush2.msra.mxu0 0.0
  %317 = vmatprep.subr.mxu0 0.0
  %318 = vmatpush2.msra.mxu0 0.0
  %319 = vmatprep.mubr.f32.mxu0 0.0
  %320 = vmatmul.mubr.f32.gmra.mxu0 %v250
  %v321 = vpop.f32.mrf.mxu0
  %v322 = vadd.f32 %v232, %v321
  %v323 = vpop.f32.mrf.mxu0
  %v324 = vadd.f32 %v236, %v323
  %325 = vmatprep.mubr.f32.mxu0 0.0
  %326 = vmatmul.mubr.f32.gmra.mxu0 %v253
  %v327 = vpop.f32.mrf.mxu0
  %v328 = vadd.f32 %v232, %v327
  %v329 = vpop.f32.mrf.mxu0
  %v330 = vadd.f32 %v236, %v329
  %331 = vdwg.mxu0
  %332 = vmatprep.subr.mxu0 0.0
  %333 = vmatpush1.msra.mxu0 0.0
  %334 = vmatprep.subr.mxu0 0.0
  %335 = vmatpush1.msra.mxu0 0.0
  %336 = vmatprep.subr.mxu0 0.0
  %337 = vmatpush1.msra.mxu0 0.0
  %338 = vmatprep.subr.mxu0 0.0
  %339 = vmatpush1.msra.mxu0 0.0
  %340 = vmatprep.subr.mxu0 0.0
  %341 = vmatpush1.msra.mxu0 0.0
  %342 = vmatprep.subr.mxu0 0.0
  %343 = vmatpush1.msra.mxu0 0.0
  %344 = vmatprep.subr.mxu0 0.0
  %345 = vmatpush1.msra.mxu0 0.0
  %346 = vmatprep.subr.mxu0 0.0
  %347 = vmatpush1.msra.mxu0 0.0
  %348 = vmatprep.subr.mxu0 %v226
  %349 = vmatpush1.msra.mxu0 %v225
  %350 = vmatprep.subr.mxu0 %v222
  %351 = vmatpush1.msra.mxu0 %v221
  %352 = vmatprep.subr.mxu0 %v218
  %353 = vmatpush1.msra.mxu0 %v217
  %354 = vmatprep.subr.mxu0 %v214
  %355 = vmatpush1.msra.mxu0 %v213
  %356 = vmatprep.subr.mxu0 %v210
  %357 = vmatpush1.msra.mxu0 %v209
  %358 = vmatprep.subr.mxu0 %v206
  %359 = vmatpush1.msra.mxu0 %v205
  %360 = vmatprep.subr.mxu0 %v202
  %361 = vmatpush1.msra.mxu0 %v201
  %362 = vmatprep.subr.mxu0 %v198
  %363 = vmatpush1.msra.mxu0 %v197
  %364 = vmatprep.subr.mxu0 0.0
  %365 = vmatpush2.msra.mxu0 0.0
  %366 = vmatprep.subr.mxu0 0.0
  %367 = vmatpush2.msra.mxu0 0.0
  %368 = vmatprep.subr.mxu0 0.0
  %369 = vmatpush2.msra.mxu0 0.0
  %370 = vmatprep.subr.mxu0 0.0
  %371 = vmatpush2.msra.mxu0 0.0
  %372 = vmatprep.subr.mxu0 0.0
  %373 = vmatpush2.msra.mxu0 0.0
  %374 = vmatprep.subr.mxu0 0.0
  %375 = vmatpush2.msra.mxu0 0.0
  %376 = vmatprep.subr.mxu0 0.0
  %377 = vmatpush2.msra.mxu0 0.0
  %378 = vmatprep.subr.mxu0 0.0
  %379 = vmatpush2.msra.mxu0 0.0
  %380 = vmatprep.subr.mxu0 0.0
  %381 = vmatpush2.msra.mxu0 0.0
  %382 = vmatprep.subr.mxu0 0.0
  %383 = vmatpush2.msra.mxu0 0.0
  %384 = vmatprep.subr.mxu0 0.0
  %385 = vmatpush2.msra.mxu0 0.0
  %386 = vmatprep.subr.mxu0 0.0
  %387 = vmatpush2.msra.mxu0 0.0
  %388 = vmatprep.subr.mxu0 0.0
  %389 = vmatpush2.msra.mxu0 0.0
  %390 = vmatprep.subr.mxu0 0.0
  %391 = vmatpush2.msra.mxu0 0.0
  %392 = vmatprep.subr.mxu0 0.0
  %393 = vmatpush2.msra.mxu0 0.0
  %394 = vmatprep.subr.mxu0 0.0
  %395 = vmatpush2.msra.mxu0 0.0
  %396 = vmatprep.mubr.f32.mxu0 0.0
  %397 = vmatmul.mubr.f32.gmra.mxu0 %v250
  %v398 = vpop.f32.mrf.mxu0
  %v399 = vadd.f32 %v240, %v398
  %v400 = vpop.f32.mrf.mxu0
  %v401 = vadd.f32 %v244, %v400
  %402 = vmatprep.mubr.f32.mxu0 0.0
  %403 = vmatmul.mubr.f32.gmra.mxu0 %v253
  %v404 = vpop.f32.mrf.mxu0
  %v405 = vadd.f32 %v240, %v404
  %v406 = vpop.f32.mrf.mxu0
  %v407 = vadd.f32 %v244, %v406
  %408 = vdwg.mxu0
  %v409 = vmax.f32 %v322, 0.0
  %v410 = vmax.f32 %v324, 0.0
  %v411 = vmax.f32 %v399, 0.0
  %v412 = vmax.f32 %v401, 0.0
  %v413 = vmax.f32 %v328, 0.0
  %v414 = vmax.f32 %v330, 0.0
  %v415 = vmax.f32 %v405, 0.0
  %v416 = vmax.f32 %v407, 0.0
  %v417 = vld [vmem:[%s8] sm:$0xff]
  %v418 = vld [vmem:[%s8 + $0x8] sm:$0xff]
  %v419 = vld [vmem:[%s8 + $0x10] sm:$0xff]
  %v420 = vld [vmem:[%s8 + $0x18] sm:$0xff]
  %v421 = vld [vmem:[%s8 + $0x20] sm:$0xff]
  %v422 = vld [vmem:[%s8 + $0x28] sm:$0xff]
  %v423 = vld [vmem:[%s8 + $0x30] sm:$0xff]
  %v424 = vld [vmem:[%s8 + $0x38] sm:$0xff]
  %v425 = vld [vmem:[%s8 + $0x40] sm:$0xff]
  %v426 = vld [vmem:[%s8 + $0x48] sm:$0xff]
  %v427 = vld [vmem:[%s8 + $0x50] sm:$0xff]
  %v428 = vld [vmem:[%s8 + $0x58] sm:$0xff]
  %v429 = vld [vmem:[%s8 + $0x60] sm:$0xff]
  %v430 = vld [vmem:[%s8 + $0x68] sm:$0xff]
  %v431 = vld [vmem:[%s8 + $0x70] sm:$0xff]
  %v432 = vld [vmem:[%s8 + $0x78] sm:$0xff]
  %v433 = vld [vmem:[%s8 + $0x80] sm:$0xff]
  %v434 = vld [vmem:[%s8 + $0x88] sm:$0xff]
  %v435 = vld [vmem:[%s8 + $0x90] sm:$0xff]
  %v436 = vld [vmem:[%s8 + $0x98] sm:$0xff]
  %v437 = vld [vmem:[%s8 + $0xa0] sm:$0xff]
  %v438 = vld [vmem:[%s8 + $0xa8] sm:$0xff]
  %v439 = vld [vmem:[%s8 + $0xb0] sm:$0xff]
  %v440 = vld [vmem:[%s8 + $0xb8] sm:$0xff]
  %v441 = vld [vmem:[%s8 + $0xc0] sm:$0xff]
  %v442 = vld [vmem:[%s8 + $0xc8] sm:$0xff]
  %v443 = vld [vmem:[%s8 + $0xd0] sm:$0xff]
  %v444 = vld [vmem:[%s8 + $0xd8] sm:$0xff]
  %v445 = vld [vmem:[%s8 + $0xe0] sm:$0xff]
  %v446 = vld [vmem:[%s8 + $0xe8] sm:$0xff]
  %v447 = vld [vmem:[%s8 + $0xf0] sm:$0xff]
  %v448 = vld [vmem:[%s8 + $0xf8] sm:$0xff]
  %v449 = vld [vmem:[%s8 + $0x100] sm:$0xff]
  %v450 = vld [vmem:[%s8 + $0x108] sm:$0xff]
  %v451 = vld [vmem:[%s8 + $0x110] sm:$0xff]
  %v452 = vld [vmem:[%s8 + $0x118] sm:$0xff]
  %v453 = vld [vmem:[%s8 + $0x120] sm:$0xff]
  %v454 = vld [vmem:[%s8 + $0x128] sm:$0xff]
  %v455 = vld [vmem:[%s8 + $0x130] sm:$0xff]
  %v456 = vld [vmem:[%s8 + $0x138] sm:$0xff]
  %v457 = vld [vmem:[%s8 + $0x140] sm:$0xff]
  %v458 = vld [vmem:[%s8 + $0x148] sm:$0xff]
  %v459 = vld [vmem:[%s8 + $0x150] sm:$0xff]
  %v460 = vld [vmem:[%s8 + $0x158] sm:$0xff]
  %v461 = vld [vmem:[%s8 + $0x160] sm:$0xff]
  %v462 = vld [vmem:[%s8 + $0x168] sm:$0xff]
  %v463 = vld [vmem:[%s8 + $0x170] sm:$0xff]
  %v464 = vld [vmem:[%s8 + $0x178] sm:$0xff]
  %v465 = vld [vmem:[%s8 + $0x180] sm:$0xff]
  %v466 = vld [vmem:[%s8 + $0x188] sm:$0xff]
  %v467 = vld [vmem:[%s8 + $0x190] sm:$0xff]
  %v468 = vld [vmem:[%s8 + $0x198] sm:$0xff]
  %v469 = vld [vmem:[%s8 + $0x1a0] sm:$0xff]
  %v470 = vld [vmem:[%s8 + $0x1a8] sm:$0xff]
  %v471 = vld [vmem:[%s8 + $0x1b0] sm:$0xff]
  %v472 = vld [vmem:[%s8 + $0x1b8] sm:$0xff]
  %v473 = vld [vmem:[%s8 + $0x1c0] sm:$0xff]
  %v474 = vld [vmem:[%s8 + $0x1c8] sm:$0xff]
  %v475 = vld [vmem:[%s8 + $0x1d0] sm:$0xff]
  %v476 = vld [vmem:[%s8 + $0x1d8] sm:$0xff]
  %v477 = vld [vmem:[%s8 + $0x1e0] sm:$0xff]
  %v478 = vld [vmem:[%s8 + $0x1e8] sm:$0xff]
  %v479 = vld [vmem:[%s8 + $0x1f0] sm:$0xff]
  %v480 = vld [vmem:[%s8 + $0x1f8] sm:$0xff]
  %v481 = vld [vmem:[%s9] sm:$0x1]
  %v483 = vlaneseq
  %v484 = vshrl.u32 %v483, 7
  %v485 = vsub.s32 0, %v484
  %v486 = vrot.slane %v481, %v485
  %488 = vmatprep.subr.mxu0 0.0
  %489 = vmatpush1.msra.mxu0 %v432
  %490 = vmatprep.subr.mxu0 0.0
  %491 = vmatpush1.msra.mxu0 %v431
  %492 = vmatprep.subr.mxu0 0.0
  %493 = vmatpush1.msra.mxu0 %v430
  %494 = vmatprep.subr.mxu0 0.0
  %495 = vmatpush1.msra.mxu0 %v429
  %496 = vmatprep.subr.mxu0 0.0
  %497 = vmatpush1.msra.mxu0 %v428
  %498 = vmatprep.subr.mxu0 0.0
  %499 = vmatpush1.msra.mxu0 %v427
  %500 = vmatprep.subr.mxu0 0.0
  %501 = vmatpush1.msra.mxu0 %v426
  %502 = vmatprep.subr.mxu0 0.0
  %503 = vmatpush1.msra.mxu0 %v425
  %504 = vmatprep.subr.mxu0 0.0
  %505 = vmatpush1.msra.mxu0 %v424
  %506 = vmatprep.subr.mxu0 0.0
  %507 = vmatpush1.msra.mxu0 %v423
  %508 = vmatprep.subr.mxu0 0.0
  %509 = vmatpush1.msra.mxu0 %v422
  %510 = vmatprep.subr.mxu0 0.0
  %511 = vmatpush1.msra.mxu0 %v421
  %512 = vmatprep.subr.mxu0 0.0
  %513 = vmatpush1.msra.mxu0 %v420
  %514 = vmatprep.subr.mxu0 0.0
  %515 = vmatpush1.msra.mxu0 %v419
  %516 = vmatprep.subr.mxu0 0.0
  %517 = vmatpush1.msra.mxu0 %v418
  %518 = vmatprep.subr.mxu0 0.0
  %519 = vmatpush1.msra.mxu0 %v417
  %520 = vmatprep.subr.mxu0 0.0
  %521 = vmatpush2.msra.mxu0 %v448
  %522 = vmatprep.subr.mxu0 0.0
  %523 = vmatpush2.msra.mxu0 %v447
  %524 = vmatprep.subr.mxu0 0.0
  %525 = vmatpush2.msra.mxu0 %v446
  %526 = vmatprep.subr.mxu0 0.0
  %527 = vmatpush2.msra.mxu0 %v445
  %528 = vmatprep.subr.mxu0 0.0
  %529 = vmatpush2.msra.mxu0 %v444
  %530 = vmatprep.subr.mxu0 0.0
  %531 = vmatpush2.msra.mxu0 %v443
  %532 = vmatprep.subr.mxu0 0.0
  %533 = vmatpush2.msra.mxu0 %v442
  %534 = vmatprep.subr.mxu0 0.0
  %535 = vmatpush2.msra.mxu0 %v441
  %536 = vmatprep.subr.mxu0 0.0
  %537 = vmatpush2.msra.mxu0 %v440
  %538 = vmatprep.subr.mxu0 0.0
  %539 = vmatpush2.msra.mxu0 %v439
  %540 = vmatprep.subr.mxu0 0.0
  %541 = vmatpush2.msra.mxu0 %v438
  %542 = vmatprep.subr.mxu0 0.0
  %543 = vmatpush2.msra.mxu0 %v437
  %544 = vmatprep.subr.mxu0 0.0
  %545 = vmatpush2.msra.mxu0 %v436
  %546 = vmatprep.subr.mxu0 0.0
  %547 = vmatpush2.msra.mxu0 %v435
  %548 = vmatprep.subr.mxu0 0.0
  %549 = vmatpush2.msra.mxu0 %v434
  %550 = vmatprep.subr.mxu0 0.0
  %551 = vmatpush2.msra.mxu0 %v433
  %552 = vmatprep.mubr.f32.mxu0 %v410
  %553 = vmatmul.mubr.f32.gmra.mxu0 %v409
  %v554 = vpop.f32.mrf.mxu0
  %v555 = vadd.f32 %v486, %v554
  %v556 = vpop.f32.mrf.mxu0
  %557 = vmatprep.mubr.f32.mxu0 %v414
  %558 = vmatmul.mubr.f32.gmra.mxu0 %v413
  %v559 = vpop.f32.mrf.mxu0
  %v560 = vadd.f32 %v486, %v559
  %v561 = vpop.f32.mrf.mxu0
  %562 = vdwg.mxu0
  %563 = vmatprep.subr.mxu0 0.0
  %564 = vmatpush1.msra.mxu0 %v464
  %565 = vmatprep.subr.mxu0 0.0
  %566 = vmatpush1.msra.mxu0 %v463
  %567 = vmatprep.subr.mxu0 0.0
  %568 = vmatpush1.msra.mxu0 %v462
  %569 = vmatprep.subr.mxu0 0.0
  %570 = vmatpush1.msra.mxu0 %v461
  %571 = vmatprep.subr.mxu0 0.0
  %572 = vmatpush1.msra.mxu0 %v460
  %573 = vmatprep.subr.mxu0 0.0
  %574 = vmatpush1.msra.mxu0 %v459
  %575 = vmatprep.subr.mxu0 0.0
  %576 = vmatpush1.msra.mxu0 %v458
  %577 = vmatprep.subr.mxu0 0.0
  %578 = vmatpush1.msra.mxu0 %v457
  %579 = vmatprep.subr.mxu0 0.0
  %580 = vmatpush1.msra.mxu0 %v456
  %581 = vmatprep.subr.mxu0 0.0
  %582 = vmatpush1.msra.mxu0 %v455
  %583 = vmatprep.subr.mxu0 0.0
  %584 = vmatpush1.msra.mxu0 %v454
  %585 = vmatprep.subr.mxu0 0.0
  %586 = vmatpush1.msra.mxu0 %v453
  %587 = vmatprep.subr.mxu0 0.0
  %588 = vmatpush1.msra.mxu0 %v452
  %589 = vmatprep.subr.mxu0 0.0
  %590 = vmatpush1.msra.mxu0 %v451
  %591 = vmatprep.subr.mxu0 0.0
  %592 = vmatpush1.msra.mxu0 %v450
  %593 = vmatprep.subr.mxu0 0.0
  %594 = vmatpush1.msra.mxu0 %v449
  %595 = vmatprep.subr.mxu0 0.0
  %596 = vmatpush2.msra.mxu0 %v480
  %597 = vmatprep.subr.mxu0 0.0
  %598 = vmatpush2.msra.mxu0 %v479
  %599 = vmatprep.subr.mxu0 0.0
  %600 = vmatpush2.msra.mxu0 %v478
  %601 = vmatprep.subr.mxu0 0.0
  %602 = vmatpush2.msra.mxu0 %v477
  %603 = vmatprep.subr.mxu0 0.0
  %604 = vmatpush2.msra.mxu0 %v476
  %605 = vmatprep.subr.mxu0 0.0
  %606 = vmatpush2.msra.mxu0 %v475
  %607 = vmatprep.subr.mxu0 0.0
  %608 = vmatpush2.msra.mxu0 %v474
  %609 = vmatprep.subr.mxu0 0.0
  %610 = vmatpush2.msra.mxu0 %v473
  %611 = vmatprep.subr.mxu0 0.0
  %612 = vmatpush2.msra.mxu0 %v472
  %613 = vmatprep.subr.mxu0 0.0
  %614 = vmatpush2.msra.mxu0 %v471
  %615 = vmatprep.subr.mxu0 0.0
  %616 = vmatpush2.msra.mxu0 %v470
  %617 = vmatprep.subr.mxu0 0.0
  %618 = vmatpush2.msra.mxu0 %v469
  %619 = vmatprep.subr.mxu0 0.0
  %620 = vmatpush2.msra.mxu0 %v468
  %621 = vmatprep.subr.mxu0 0.0
  %622 = vmatpush2.msra.mxu0 %v467
  %623 = vmatprep.subr.mxu0 0.0
  %624 = vmatpush2.msra.mxu0 %v466
  %625 = vmatprep.subr.mxu0 0.0
  %626 = vmatpush2.msra.mxu0 %v465
  %627 = vmatprep.mubr.f32.mxu0 %v412
  %628 = vmatmul.mubr.f32.gmra.mxu0 %v411
  %v629 = vpop.f32.mrf.mxu0
  %v630 = vadd.f32 %v555, %v629
  %v631 = vpop.f32.mrf.mxu0
  %632 = vmatprep.mubr.f32.mxu0 %v416
  %633 = vmatmul.mubr.f32.gmra.mxu0 %v415
  %v634 = vpop.f32.mrf.mxu0
  %v635 = vadd.f32 %v560, %v634
  %v636 = vpop.f32.mrf.mxu0
  %637 = vdwg.mxu0
  %v638 = vadd.f32 %v193, %v630
  %v639 = vadd.f32 %v194, %v635
  %v640 = vld [vmem:[%s10] sm:$0x1]
  %v641 = vld [vmem:[%s11] sm:$0x1]
  %v642 = vsel %vm64, %v638, 0.0
  %643 = vadd.xlane.f32.xlu0 %v642
  %v644 = vpop.xlane.xlu0 %643
  %v645 = vsel %vm64, %v639, 0.0
  %646 = vadd.xlane.f32.xlu0 %v645
  %v647 = vpop.xlane.xlu0 %646
  %v648 = vmul.f32 %v644, %v158
  %v649 = vmul.f32 %v647, %v158
  %v650 = vsub.f32 %v638, %v648
  %v651 = vsub.f32 %v639, %v649
  %v652 = vmul.f32 %v650, %v650
  %v653 = vmul.f32 %v651, %v651
  %v654 = vsel %vm64, %v652, 0.0
  %655 = vadd.xlane.f32.xlu0 %v654
  %v656 = vpop.xlane.xlu0 %655
  %v657 = vsel %vm64, %v653, 0.0
  %658 = vadd.xlane.f32.xlu0 %v657
  %v659 = vpop.xlane.xlu0 %658
  %v660 = vmul.f32 %v656, %v158
  %v661 = vmul.f32 %v659, %v158
  %v662 = vadd.f32 %v660, 1e-05
  %v663 = vadd.f32 %v661, 1e-05
  %v664 = vrsqrt.pop %v662
  %v665 = vrsqrt.pop %v663
  %v666 = vmul.f32 %v650, %v664
  %v667 = vmul.f32 %v651, %v665
  %v669 = vlaneseq
  %v670 = vshrl.u32 %v669, 7
  %v671 = vsub.s32 0, %v670
  %v672 = vrot.slane %v640, %v671
  %v674 = vmul.f32 %v666, %v672
  %v675 = vmul.f32 %v667, %v672
  %v677 = vlaneseq
  %v678 = vshrl.u32 %v677, 7
  %v679 = vsub.s32 0, %v678
  %v680 = vrot.slane %v641, %v679
  %v682 = vadd.f32 %v674, %v680
  %v683 = vadd.f32 %v675, %v680
  %v684 = vld [vmem:[%s12] sm:$0xff]
  %v685 = vld [vmem:[%s12 + $0x8] sm:$0xff]
  %v686 = vld [vmem:[%s12 + $0x10] sm:$0xff]
  %v687 = vld [vmem:[%s12 + $0x18] sm:$0xff]
  %v688 = vld [vmem:[%s12 + $0x20] sm:$0xff]
  %v689 = vld [vmem:[%s12 + $0x28] sm:$0xff]
  %v690 = vld [vmem:[%s12 + $0x30] sm:$0xff]
  %v691 = vld [vmem:[%s12 + $0x38] sm:$0xff]
  %v692 = vld [vmem:[%s13] sm:$0x1]
  %v694 = vlaneseq
  %v695 = vshrl.u32 %v694, 7
  %v696 = vsub.s32 0, %v695
  %v697 = vrot.slane %v692, %v696
  %v700 = vsel %vm64, %v682, 0
  %v703 = vsel %vm64, %v683, 0
  %705 = vmatprep.subr.mxu0 0.0
  %706 = vmatpush1.msra.mxu0 0.0
  %707 = vmatprep.subr.mxu0 0.0
  %708 = vmatpush1.msra.mxu0 0.0
  %709 = vmatprep.subr.mxu0 0.0
  %710 = vmatpush1.msra.mxu0 0.0
  %711 = vmatprep.subr.mxu0 0.0
  %712 = vmatpush1.msra.mxu0 0.0
  %713 = vmatprep.subr.mxu0 0.0
  %714 = vmatpush1.msra.mxu0 0.0
  %715 = vmatprep.subr.mxu0 0.0
  %716 = vmatpush1.msra.mxu0 0.0
  %717 = vmatprep.subr.mxu0 0.0
  %718 = vmatpush1.msra.mxu0 0.0
  %719 = vmatprep.subr.mxu0 0.0
  %720 = vmatpush1.msra.mxu0 0.0
  %721 = vmatprep.subr.mxu0 0.0
  %722 = vmatpush1.msra.mxu0 %v691
  %723 = vmatprep.subr.mxu0 0.0
  %724 = vmatpush1.msra.mxu0 %v690
  %725 = vmatprep.subr.mxu0 0.0
  %726 = vmatpush1.msra.mxu0 %v689
  %727 = vmatprep.subr.mxu0 0.0
  %728 = vmatpush1.msra.mxu0 %v688
  %729 = vmatprep.subr.mxu0 0.0
  %730 = vmatpush1.msra.mxu0 %v687
  %731 = vmatprep.subr.mxu0 0.0
  %732 = vmatpush1.msra.mxu0 %v686
  %733 = vmatprep.subr.mxu0 0.0
  %734 = vmatpush1.msra.mxu0 %v685
  %735 = vmatprep.subr.mxu0 0.0
  %736 = vmatpush1.msra.mxu0 %v684
  %737 = vmatprep.subr.mxu0 0.0
  %738 = vmatpush2.msra.mxu0 0.0
  %739 = vmatprep.subr.mxu0 0.0
  %740 = vmatpush2.msra.mxu0 0.0
  %741 = vmatprep.subr.mxu0 0.0
  %742 = vmatpush2.msra.mxu0 0.0
  %743 = vmatprep.subr.mxu0 0.0
  %744 = vmatpush2.msra.mxu0 0.0
  %745 = vmatprep.subr.mxu0 0.0
  %746 = vmatpush2.msra.mxu0 0.0
  %747 = vmatprep.subr.mxu0 0.0
  %748 = vmatpush2.msra.mxu0 0.0
  %749 = vmatprep.subr.mxu0 0.0
  %750 = vmatpush2.msra.mxu0 0.0
  %751 = vmatprep.subr.mxu0 0.0
  %752 = vmatpush2.msra.mxu0 0.0
  %753 = vmatprep.subr.mxu0 0.0
  %754 = vmatpush2.msra.mxu0 0.0
  %755 = vmatprep.subr.mxu0 0.0
  %756 = vmatpush2.msra.mxu0 0.0
  %757 = vmatprep.subr.mxu0 0.0
  %758 = vmatpush2.msra.mxu0 0.0
  %759 = vmatprep.subr.mxu0 0.0
  %760 = vmatpush2.msra.mxu0 0.0
  %761 = vmatprep.subr.mxu0 0.0
  %762 = vmatpush2.msra.mxu0 0.0
  %763 = vmatprep.subr.mxu0 0.0
  %764 = vmatpush2.msra.mxu0 0.0
  %765 = vmatprep.subr.mxu0 0.0
  %766 = vmatpush2.msra.mxu0 0.0
  %767 = vmatprep.subr.mxu0 0.0
  %768 = vmatpush2.msra.mxu0 0.0
  %769 = vmatprep.mubr.f32.mxu0 0.0
  %770 = vmatmul.mubr.f32.gmra.mxu0 %v700
  %v771 = vpop.f32.mrf.mxu0
  %v772 = vadd.f32 %v697, %v771
  %v773 = vpop.f32.mrf.mxu0
  %774 = vmatprep.mubr.f32.mxu0 0.0
  %775 = vmatmul.mubr.f32.gmra.mxu0 %v703
  %v776 = vpop.f32.mrf.mxu0
  %v777 = vadd.f32 %v697, %v776
  %v778 = vpop.f32.mrf.mxu0
  %779 = vdwg.mxu0
  %vm780 = vcmask 31744
  %v781 = vsel %vm780, %v772, -inf
  %782 = vmax.xlane.f32.xlu0 %v781
  %v783 = vpop.xlane.xlu0 %782
  %v784 = vsel %vm780, %v777, -inf
  %785 = vmax.xlane.f32.xlu0 %v784
  %v786 = vpop.xlane.xlu0 %785
  %v787 = vsub.f32 %v772, %v783
  %v788 = vsub.f32 %v777, %v786
  %v789 = vmul.f32 %v787, 1.442695
  %v790 = vpow.pop %v789
  %v791 = vmul.f32 %v788, 1.442695
  %v792 = vpow.pop %v791
  %v793 = vsel %vm780, %v790, 0.0
  %794 = vadd.xlane.f32.xlu0 %v793
  %v795 = vpop.xlane.xlu0 %794
  %v796 = vsel %vm780, %v792, 0.0
  %797 = vadd.xlane.f32.xlu0 %v796
  %v798 = vpop.xlane.xlu0 %797
  %v799 = vrcp.pop %v795
  %v800 = vmul.f32 %v790, %v799
  %v801 = vrcp.pop %v798
  %v802 = vmul.f32 %v792, %v801
  %803 = vst.msk [vmem:[%s14] sm:$0xff] %vm780, %v800
  %804 = vst.msk [vmem:[%s14 + $0x8] sm:$0xff] %vm780, %v802
  // Predicated region
  $region58: #{grtrans_forward.5} parent=0 // pred_check
    _
  $region59: #{grtrans_forward.5} parent=0 // pred_check_branch
    %806 = sbr.rel (0) target = $region61
  $region60: #{grtrans_forward.5} parent=0 // pred_region
    _
  $region61: #{grtrans_forward.5} parent=0 // pred_fallthru
    _
  // Predicated region
  $region62: #{grtrans_forward.5} parent=0 // pred_check
    _
  $region63: #{grtrans_forward.5} parent=0 // pred_check_branch
    %808 = sbr.rel (0) target = $region65
  $region64: #{grtrans_forward.5} parent=0 // pred_region
    _
  $region65: #{grtrans_forward.5} parent=0 // pred_fallthru
    _

// kernel: grtrans_forward.3
$region0: #{grtrans_forward.3}
  #allocation0 [shape = 'u32[]', space=smem, size = 0x4, offset = 0x4, fixed_abs, tag = 'smem constant byte address 0x4 - core index']
  #allocation1 [shape = 'u32[144,128]{1,0:T(1,128)}', space=vmem, size = 0x12000, scoped, tag = 'internal scratch']
  %s0 = inlined_call_operand.vmem [shape: f32[3], index: 0, kind: input, shape index: {}]
  %s1 = inlined_call_operand.vmem [shape: f32[3,16,16], index: 1, kind: input, shape index: {}]
  %s2 = inlined_call_operand.vmem [shape: f32[3,16,8], index: 2, kind: input, shape index: {}]
  %s3 = inlined_call_operand.vmem [shape: f32[16,64], index: 3, kind: input, shape index: {}]
  %s4 = inlined_call_operand.vmem [shape: f32[1,64], index: 4, kind: input, shape index: {}]
  %s5 = inlined_call_operand.vmem [shape: f32[64,192], index: 5, kind: input, shape index: {}]
  %s6 = inlined_call_operand.vmem [shape: f32[1,192], index: 6, kind: input, shape index: {}]
  %s7 = inlined_call_operand.hbm [shape: f32[16,16], index: 7, kind: output, shape index: {0}]
  %s8 = inlined_call_operand.hbm [shape: f32[16,16], index: 8, kind: output, shape index: {1}]
  %s9 = inlined_call_operand.vmem [shape: f32[16,64], index: 9, kind: output, shape index: {2}]
  %s10 = inlined_call_operand.vmem [shape: f32[16,192], index: 10, kind: output, shape index: {3}]
  %11 = xla_tuple %s7, %s8, %s9, %s10
  %s12 = sld [smem:[#allocation0]]
  $region66: #{grtrans_forward.3} parent=0
    _
  %s14 = ssub.s32 1, %s12
  %s15 = scalar_select 0, %s14, %s12
  $region1: #{grtrans_forward.3} parent=0
    #allocation2 [shape = 'u8[512]{0}', space=smem, size = 0x200, scoped, tag = 'input window, operand 0, single buffered']
    #allocation3 [shape = 's32[1]{0}', space=sflag, size = 0x4, scoped, tag = 'scoped memory for grtrans_forward.3']
    #allocation4 [shape = 's32[1]{0}', space=sflag, size = 0x4, scoped, tag = 'scoped memory for grtrans_forward.3']
    #allocation5 [shape = 'u8[8192]{0}', space=vmem, size = 0x2000, scoped, tag = 'output window, operand 0, single buffered']
    #allocation6 [shape = 'u8[8192]{0}', space=vmem, size = 0x2000, scoped, tag = 'output window, operand 1, single buffered']
    #allocation7 [shape = 's32[1]{0}', space=sflag, size = 0x4, scoped, tag = 'scoped memory for grtrans_forward.3']
    %16 = vsyncpa [#allocation4], 0
    %17 = vsyncpa [#allocation3], 0
    %18 = vsyncpa [#allocation7], 0
    // Predicated region
    $region2: #{grtrans_forward.3} parent=1 // pred_check
      _
    $region3: #{grtrans_forward.3} parent=1 // pred_check_branch
      %20 = sbr.rel (0) target = $region5
    $region4: #{grtrans_forward.3} parent=1 // pred_region
      %s22 = ssub.s32 16, 16
      %23 = vsyncadd [#allocation4], %s22
      %s25 = sshll.u32 %s0, 4
      %s26 = int_to_ptr.vmem [resolvable:$true] %s25
      %28 = dma.vmem_to_smem %s26, 16, [#allocation2], [#allocation4]
    $region5: #{grtrans_forward.3} parent=1 // pred_fallthru
      _
    // Predicated region
    $region6: #{grtrans_forward.3} parent=1 // pred_check
      _
    $region7: #{grtrans_forward.3} parent=1 // pred_check_branch
      %30 = sbr.rel (0) target = $region9
    $region8: #{grtrans_forward.3} parent=1 // pred_region
      _
    $region9: #{grtrans_forward.3} parent=1 // pred_fallthru
      _
    // Predicated region
    $region10: #{grtrans_forward.3} parent=1 // pred_check
      _
    $region11: #{grtrans_forward.3} parent=1 // pred_check_branch
      %32 = sbr.rel (0) target = $region13
    $region12: #{grtrans_forward.3} parent=1 // pred_region
      _
    $region13: #{grtrans_forward.3} parent=1 // pred_fallthru
      _
    // Predicated region
    $region14: #{grtrans_forward.3} parent=1 // pred_check
      _
    $region15: #{grtrans_forward.3} parent=1 // pred_check_branch
      %34 = sbr.rel (0) target = $region17
    $region16: #{grtrans_forward.3} parent=1 // pred_region
      _
    $region17: #{grtrans_forward.3} parent=1 // pred_fallthru
      _
    // Predicated region
    $region18: #{grtrans_forward.3} parent=1 // pred_check
      _
    $region19: #{grtrans_forward.3} parent=1 // pred_check_branch
      %36 = sbr.rel (0) target = $region21
    $region20: #{grtrans_forward.3} parent=1 // pred_region
      _
    $region21: #{grtrans_forward.3} parent=1 // pred_fallthru
      _
    // Predicated region
    $region22: #{grtrans_forward.3} parent=1 // pred_check
      _
    $region23: #{grtrans_forward.3} parent=1 // pred_check_branch
      %38 = sbr.rel (0) target = $region25
    $region24: #{grtrans_forward.3} parent=1 // pred_region
      _
    $region25: #{grtrans_forward.3} parent=1 // pred_fallthru
      _
    // Predicated region
    $region26: #{grtrans_forward.3} parent=1 // pred_check
      _
    $region27: #{grtrans_forward.3} parent=1 // pred_check_branch
      %40 = sbr.rel (0) target = $region29
    $region28: #{grtrans_forward.3} parent=1 // pred_region
      _
    $region29: #{grtrans_forward.3} parent=1 // pred_fallthru
      _
    // Predicated region
    $region30: #{grtrans_forward.3} parent=1 // pred_check
      _
    $region31: #{grtrans_forward.3} parent=1 // pred_check_branch
      %42 = sbr.rel (0) target = $region33
    $region32: #{grtrans_forward.3} parent=1 // pred_region
      %43 = dma.done [#allocation4], 16
    $region33: #{grtrans_forward.3} parent=1 // pred_fallthru
      _
    %44 = sfence
    %v45 = vld [vmem:[%s2] sm:$0xff]
    %v46 = vld [vmem:[%s2 + $0x8] sm:$0xff]
    %s47 = sld [smem:[#allocation2]]
    %v48 = vld [vmem:[%s1] sm:$0xff]
    %v49 = vld [vmem:[%s1 + $0x8] sm:$0xff]
    %v50 = vstv %s47
    %v51 = vmul.f32 %v50, %v48
    %v52 = vmul.f32 %v50, %v49
    %s53 = scalar_lea.vmem %s2, 16
    %v54 = vld [vmem:[%s53] sm:$0xff]
    %v55 = vld [vmem:[%s53 + $0x8] sm:$0xff]
    %vm56 = vcmask 64512
    %v58 = vsel %vm56, %v54, 0
    %v61 = vsel %vm56, %v55, 0
    %63 = vmatprep.subr.mxu0 0.0
    %64 = vmatpush1.xpose.msra.mxu0 0.0
    %65 = vmatprep.subr.mxu0 0.0
    %66 = vmatpush1.xpose.msra.mxu0 0.0
    %67 = vmatprep.subr.mxu0 0.0
    %68 = vmatpush1.xpose.msra.mxu0 0.0
    %69 = vmatprep.subr.mxu0 0.0
    %70 = vmatpush1.xpose.msra.mxu0 0.0
    %71 = vmatprep.subr.mxu0 0.0
    %72 = vmatpush1.xpose.msra.mxu0 0.0
    %73 = vmatprep.subr.mxu0 0.0
    %74 = vmatpush1.xpose.msra.mxu0 0.0
    %75 = vmatprep.subr.mxu0 0.0
    %76 = vmatpush1.xpose.msra.mxu0 0.0
    %77 = vmatprep.subr.mxu0 0.0
    %78 = vmatpush1.xpose.msra.mxu0 0.0
    %79 = vmatprep.subr.mxu0 0.0
    %80 = vmatpush1.xpose.msra.mxu0 0.0
    %81 = vmatprep.subr.mxu0 0.0
    %82 = vmatpush1.xpose.msra.mxu0 0.0
    %83 = vmatprep.subr.mxu0 0.0
    %84 = vmatpush1.xpose.msra.mxu0 0.0
    %85 = vmatprep.subr.mxu0 0.0
    %86 = vmatpush1.xpose.msra.mxu0 0.0
    %87 = vmatprep.subr.mxu0 0.0
    %88 = vmatpush1.xpose.msra.mxu0 0.0
    %89 = vmatprep.subr.mxu0 0.0
    %90 = vmatpush1.xpose.msra.mxu0 0.0
    %91 = vmatprep.subr.mxu0 0.0
    %92 = vmatpush1.xpose.msra.mxu0 %v61
    %93 = vmatprep.subr.mxu0 0.0
    %94 = vmatpush1.xpose.msra.mxu0 %v58
    %95 = vmatprep.subr.mxu0 0.0
    %96 = vmatpush2.xpose.msra.mxu0 0.0
    %97 = vmatprep.subr.mxu0 0.0
    %98 = vmatpush2.xpose.msra.mxu0 0.0
    %99 = vmatprep.subr.mxu0 0.0
    %100 = vmatpush2.xpose.msra.mxu0 0.0
    %101 = vmatprep.subr.mxu0 0.0
    %102 = vmatpush2.xpose.msra.mxu0 0.0
    %103 = vmatprep.subr.mxu0 0.0
    %104 = vmatpush2.xpose.msra.mxu0 0.0
    %105 = vmatprep.subr.mxu0 0.0
    %106 = vmatpush2.xpose.msra.mxu0 0.0
    %107 = vmatprep.subr.mxu0 0.0
    %108 = vmatpush2.xpose.msra.mxu0 0.0
    %109 = vmatprep.subr.mxu0 0.0
    %110 = vmatpush2.xpose.msra.mxu0 0.0
    %111 = vmatprep.subr.mxu0 0.0
    %112 = vmatpush2.xpose.msra.mxu0 0.0
    %113 = vmatprep.subr.mxu0 0.0
    %114 = vmatpush2.xpose.msra.mxu0 0.0
    %115 = vmatprep.subr.mxu0 0.0
    %116 = vmatpush2.xpose.msra.mxu0 0.0
    %117 = vmatprep.subr.mxu0 0.0
    %118 = vmatpush2.xpose.msra.mxu0 0.0
    %119 = vmatprep.subr.mxu0 0.0
    %120 = vmatpush2.xpose.msra.mxu0 0.0
    %121 = vmatprep.subr.mxu0 0.0
    %122 = vmatpush2.xpose.msra.mxu0 0.0
    %123 = vmatprep.subr.mxu0 0.0
    %124 = vmatpush2.xpose.msra.mxu0 0.0
    %125 = vmatprep.subr.mxu0 0.0
    %126 = vmatpush2.xpose.msra.mxu0 0.0
    %127 = vmatprep.mubr.f32.mxu0 0.0
    %128 = vmatmul.mubr.f32.gmra.mxu0 %v58
    %v129 = vpop.f32.mrf.mxu0
    %v130 = vadd.f32 0.0, %v129
    %v131 = vpop.f32.mrf.mxu0
    %132 = vmatprep.mubr.f32.mxu0 0.0
    %133 = vmatmul.mubr.f32.gmra.mxu0 %v61
    %v134 = vpop.f32.mrf.mxu0
    %v135 = vadd.f32 0.0, %v134
    %v136 = vpop.f32.mrf.mxu0
    %137 = vdwg.mxu0
    %s138 = sld [smem:[#allocation2 + $0x1]]
    %s139 = scalar_lea.vmem %s1, 16
    %v140 = vld [vmem:[%s139] sm:$0xff]
    %v141 = vld [vmem:[%s139 + $0x8] sm:$0xff]
    %v142 = vstv %s138
    %v143 = vmul.f32 %v142, %v140
    %v144 = vmul.f32 %v142, %v141
    %v146 = vsel %vm56, %v45, 0
    %v149 = vsel %vm56, %v46, 0
    %151 = vmatprep.subr.mxu0 0.0
    %152 = vmatpush1.xpose.msra.mxu0 0.0
    %153 = vmatprep.subr.mxu0 0.0
    %154 = vmatpush1.xpose.msra.mxu0 0.0
    %155 = vmatprep.subr.mxu0 0.0
    %156 = vmatpush1.xpose.msra.mxu0 0.0
    %157 = vmatprep.subr.mxu0 0.0
    %158 = vmatpush1.xpose.msra.mxu0 0.0
    %159 = vmatprep.subr.mxu0 0.0
    %160 = vmatpush1.xpose.msra.mxu0 0.0
    %161 = vmatprep.subr.mxu0 0.0
    %162 = vmatpush1.xpose.msra.mxu0 0.0
    %163 = vmatprep.subr.mxu0 0.0
    %164 = vmatpush1.xpose.msra.mxu0 0.0
    %165 = vmatprep.subr.mxu0 0.0
    %166 = vmatpush1.xpose.msra.mxu0 0.0
    %167 = vmatprep.subr.mxu0 0.0
    %168 = vmatpush1.xpose.msra.mxu0 0.0
    %169 = vmatprep.subr.mxu0 0.0
    %170 = vmatpush1.xpose.msra.mxu0 0.0
    %171 = vmatprep.subr.mxu0 0.0
    %172 = vmatpush1.xpose.msra.mxu0 0.0
    %173 = vmatprep.subr.mxu0 0.0
    %174 = vmatpush1.xpose.msra.mxu0 0.0
    %175 = vmatprep.subr.mxu0 0.0
    %176 = vmatpush1.xpose.msra.mxu0 0.0
    %177 = vmatprep.subr.mxu0 0.0
    %178 = vmatpush1.xpose.msra.mxu0 0.0
    %179 = vmatprep.subr.mxu0 0.0
    %180 = vmatpush1.xpose.msra.mxu0 %v149
    %181 = vmatprep.subr.mxu0 0.0
    %182 = vmatpush1.xpose.msra.mxu0 %v146
    %183 = vmatprep.subr.mxu0 0.0
    %184 = vmatpush2.xpose.msra.mxu0 0.0
    %185 = vmatprep.subr.mxu0 0.0
    %186 = vmatpush2.xpose.msra.mxu0 0.0
    %187 = vmatprep.subr.mxu0 0.0
    %188 = vmatpush2.xpose.msra.mxu0 0.0
    %189 = vmatprep.subr.mxu0 0.0
    %190 = vmatpush2.xpose.msra.mxu0 0.0
    %191 = vmatprep.subr.mxu0 0.0
    %192 = vmatpush2.xpose.msra.mxu0 0.0
    %193 = vmatprep.subr.mxu0 0.0
    %194 = vmatpush2.xpose.msra.mxu0 0.0
    %195 = vmatprep.subr.mxu0 0.0
    %196 = vmatpush2.xpose.msra.mxu0 0.0
    %197 = vmatprep.subr.mxu0 0.0
    %198 = vmatpush2.xpose.msra.mxu0 0.0
    %199 = vmatprep.subr.mxu0 0.0
    %200 = vmatpush2.xpose.msra.mxu0 0.0
    %201 = vmatprep.subr.mxu0 0.0
    %202 = vmatpush2.xpose.msra.mxu0 0.0
    %203 = vmatprep.subr.mxu0 0.0
    %204 = vmatpush2.xpose.msra.mxu0 0.0
    %205 = vmatprep.subr.mxu0 0.0
    %206 = vmatpush2.xpose.msra.mxu0 0.0
    %207 = vmatprep.subr.mxu0 0.0
    %208 = vmatpush2.xpose.msra.mxu0 0.0
    %209 = vmatprep.subr.mxu0 0.0
    %210 = vmatpush2.xpose.msra.mxu0 0.0
    %211 = vmatprep.subr.mxu0 0.0
    %212 = vmatpush2.xpose.msra.mxu0 0.0
    %213 = vmatprep.subr.mxu0 0.0
    %214 = vmatpush2.xpose.msra.mxu0 0.0
    %215 = vmatprep.mubr.f32.mxu0 0.0
    %216 = vmatmul.mubr.f32.gmra.mxu0 %v146
    %v217 = vpop.f32.mrf.mxu0
    %v218 = vadd.f32 %v130, %v217
    %v219 = vpop.f32.mrf.mxu0
    %220 = vmatprep.mubr.f32.mxu0 0.0
    %221 = vmatmul.mubr.f32.gmra.mxu0 %v149
    %v222 = vpop.f32.mrf.mxu0
    %v223 = vadd.f32 %v135, %v222
    %v224 = vpop.f32.mrf.mxu0
    %225 = vdwg.mxu0
    %v226 = vadd.f32 %v51, %v143
    %v227 = vadd.f32 %v52, %v144
    %s228 = scalar_lea.vmem %s2, 32
    %v229 = vld [vmem:[%s228] sm:$0xff]
    %v230 = vld [vmem:[%s228 + $0x8] sm:$0xff]
    %v232 = vsel %vm56, %v229, 0
    %v235 = vsel %vm56, %v230, 0
    %237 = vmatprep.subr.mxu0 0.0
    %238 = vmatpush1.xpose.msra.mxu0 0.0
    %239 = vmatprep.subr.mxu0 0.0
    %240 = vmatpush1.xpose.msra.mxu0 0.0
    %241 = vmatprep.subr.mxu0 0.0
    %242 = vmatpush1.xpose.msra.mxu0 0.0
    %243 = vmatprep.subr.mxu0 0.0
    %244 = vmatpush1.xpose.msra.mxu0 0.0
    %245 = vmatprep.subr.mxu0 0.0
    %246 = vmatpush1.xpose.msra.mxu0 0.0
    %247 = vmatprep.subr.mxu0 0.0
    %248 = vmatpush1.xpose.msra.mxu0 0.0
    %249 = vmatprep.subr.mxu0 0.0
    %250 = vmatpush1.xpose.msra.mxu0 0.0
    %251 = vmatprep.subr.mxu0 0.0
    %252 = vmatpush1.xpose.msra.mxu0 0.0
    %253 = vmatprep.subr.mxu0 0.0
    %254 = vmatpush1.xpose.msra.mxu0 0.0
    %255 = vmatprep.subr.mxu0 0.0
    %256 = vmatpush1.xpose.msra.mxu0 0.0
    %257 = vmatprep.subr.mxu0 0.0
    %258 = vmatpush1.xpose.msra.mxu0 0.0
    %259 = vmatprep.subr.mxu0 0.0
    %260 = vmatpush1.xpose.msra.mxu0 0.0
    %261 = vmatprep.subr.mxu0 0.0
    %262 = vmatpush1.xpose.msra.mxu0 0.0
    %263 = vmatprep.subr.mxu0 0.0
    %264 = vmatpush1.xpose.msra.mxu0 0.0
    %265 = vmatprep.subr.mxu0 0.0
    %266 = vmatpush1.xpose.msra.mxu0 %v235
    %267 = vmatprep.subr.mxu0 0.0
    %268 = vmatpush1.xpose.msra.mxu0 %v232
    %269 = vmatprep.subr.mxu0 0.0
    %270 = vmatpush2.xpose.msra.mxu0 0.0
    %271 = vmatprep.subr.mxu0 0.0
    %272 = vmatpush2.xpose.msra.mxu0 0.0
    %273 = vmatprep.subr.mxu0 0.0
    %274 = vmatpush2.xpose.msra.mxu0 0.0
    %275 = vmatprep.subr.mxu0 0.0
    %276 = vmatpush2.xpose.msra.mxu0 0.0
    %277 = vmatprep.subr.mxu0 0.0
    %278 = vmatpush2.xpose.msra.mxu0 0.0
    %279 = vmatprep.subr.mxu0 0.0
    %280 = vmatpush2.xpose.msra.mxu0 0.0
    %281 = vmatprep.subr.mxu0 0.0
    %282 = vmatpush2.xpose.msra.mxu0 0.0
    %283 = vmatprep.subr.mxu0 0.0
    %284 = vmatpush2.xpose.msra.mxu0 0.0
    %285 = vmatprep.subr.mxu0 0.0
    %286 = vmatpush2.xpose.msra.mxu0 0.0
    %287 = vmatprep.subr.mxu0 0.0
    %288 = vmatpush2.xpose.msra.mxu0 0.0
    %289 = vmatprep.subr.mxu0 0.0
    %290 = vmatpush2.xpose.msra.mxu0 0.0
    %291 = vmatprep.subr.mxu0 0.0
    %292 = vmatpush2.xpose.msra.mxu0 0.0
    %293 = vmatprep.subr.mxu0 0.0
    %294 = vmatpush2.xpose.msra.mxu0 0.0
    %295 = vmatprep.subr.mxu0 0.0
    %296 = vmatpush2.xpose.msra.mxu0 0.0
    %297 = vmatprep.subr.mxu0 0.0
    %298 = vmatpush2.xpose.msra.mxu0 0.0
    %299 = vmatprep.subr.mxu0 0.0
    %300 = vmatpush2.xpose.msra.mxu0 0.0
    %301 = vmatprep.mubr.f32.mxu0 0.0
    %302 = vmatmul.mubr.f32.gmra.mxu0 %v232
    %v303 = vpop.f32.mrf.mxu0
    %v304 = vadd.f32 0.0, %v303
    %v305 = vpop.f32.mrf.mxu0
    %306 = vmatprep.mubr.f32.mxu0 0.0
    %307 = vmatmul.mubr.f32.gmra.mxu0 %v235
    %v308 = vpop.f32.mrf.mxu0
    %v309 = vadd.f32 0.0, %v308
    %v310 = vpop.f32.mrf.mxu0
    %311 = vdwg.mxu0
    %s312 = sld [smem:[#allocation2 + $0x2]]
    %s313 = scalar_lea.vmem %s1, 32
    %v314 = vld [vmem:[%s313] sm:$0xff]
    %v315 = vld [vmem:[%s313 + $0x8] sm:$0xff]
    %v316 = vstv %s312
    %v317 = vmul.f32 %v316, %v314
    %v318 = vmul.f32 %v316, %v315
    %v319 = vadd.f32 %v218, %v304
    %v320 = vadd.f32 %v223, %v309
    %v321 = vadd.f32 %v226, %v317
    %v322 = vadd.f32 %v227, %v318
    %v323 = vmul.f32 %v319, 0.33333334
    %v324 = vmul.f32 %v320, 0.33333334
    %vm325 = vcmask 130048
    %326 = vst.msk [vmem:[#allocation5] sm:$0xff] %vm325, %v323
    %327 = vst.msk [vmem:[#allocation5 + $0x8] sm:$0xff] %vm325, %v324
    %328 = vst.msk [vmem:[#allocation6] sm:$0xff] %vm325, %v321
    %329 = vst.msk [vmem:[#allocation6 + $0x8] sm:$0xff] %vm325, %v322
    %v330 = vld [vmem:[%s3] sm:$0xff]
    %v331 = vld [vmem:[%s3 + $0x8] sm:$0xff]
    %v332 = vld [vmem:[%s4] sm:$0x1]
    %v334 = vlaneseq
    %v335 = vshrl.u32 %v334, 7
    %v336 = vsub.s32 0, %v335
    %v337 = vrot.slane %v332, %v336
    %v340 = vsel %vm325, %v321, 0
    %v343 = vsel %vm325, %v322, 0
    %345 = vmatprep.subr.mxu0 0.0
    %346 = vmatpush1.msra.mxu0 0.0
    %347 = vmatprep.subr.mxu0 0.0
    %348 = vmatpush1.msra.mxu0 0.0
    %349 = vmatprep.subr.mxu0 0.0
    %350 = vmatpush1.msra.mxu0 0.0
    %351 = vmatprep.subr.mxu0 0.0
    %352 = vmatpush1.msra.mxu0 0.0
    %353 = vmatprep.subr.mxu0 0.0
    %354 = vmatpush1.msra.mxu0 0.0
    %355 = vmatprep.subr.mxu0 0.0
    %356 = vmatpush1.msra.mxu0 0.0
    %357 = vmatprep.subr.mxu0 0.0
    %358 = vmatpush1.msra.mxu0 0.0
    %359 = vmatprep.subr.mxu0 0.0
    %360 = vmatpush1.msra.mxu0 0.0
    %361 = vmatprep.subr.mxu0 0.0
    %362 = vmatpush1.msra.mxu0 0.0
    %363 = vmatprep.subr.mxu0 0.0
    %364 = vmatpush1.msra.mxu0 0.0
    %365 = vmatprep.subr.mxu0 0.0
    %366 = vmatpush1.msra.mxu0 0.0
    %367 = vmatprep.subr.mxu0 0.0
    %368 = vmatpush1.msra.mxu0 0.0
    %369 = vmatprep.subr.mxu0 0.0
    %370 = vmatpush1.msra.mxu0 0.0
    %371 = vmatprep.subr.mxu0 0.0
    %372 = vmatpush1.msra.mxu0 0.0
    %373 = vmatprep.subr.mxu0 0.0
    %374 = vmatpush1.msra.mxu0 %v331
    %375 = vmatprep.subr.mxu0 0.0
    %376 = vmatpush1.msra.mxu0 %v330
    %377 = vmatprep.subr.mxu0 0.0
    %378 = vmatpush2.msra.mxu0 0.0
    %379 = vmatprep.subr.mxu0 0.0
    %380 = vmatpush2.msra.mxu0 0.0
    %381 = vmatprep.subr.mxu0 0.0
    %382 = vmatpush2.msra.mxu0 0.0
    %383 = vmatprep.subr.mxu0 0.0
    %384 = vmatpush2.msra.mxu0 0.0
    %385 = vmatprep.subr.mxu0 0.0
    %386 = vmatpush2.msra.mxu0 0.0
    %387 = vmatprep.subr.mxu0 0.0
    %388 = vmatpush2.msra.mxu0 0.0
    %389 = vmatprep.subr.mxu0 0.0
    %390 = vmatpush2.msra.mxu0 0.0
    %391 = vmatprep.subr.mxu0 0.0
    %392 = vmatpush2.msra.mxu0 0.0
    %393 = vmatprep.subr.mxu0 0.0
    %394 = vmatpush2.msra.mxu0 0.0
    %395 = vmatprep.subr.mxu0 0.0
    %396 = vmatpush2.msra.mxu0 0.0
    %397 = vmatprep.subr.mxu0 0.0
    %398 = vmatpush2.msra.mxu0 0.0
    %399 = vmatprep.subr.mxu0 0.0
    %400 = vmatpush2.msra.mxu0 0.0
    %401 = vmatprep.subr.mxu0 0.0
    %402 = vmatpush2.msra.mxu0 0.0
    %403 = vmatprep.subr.mxu0 0.0
    %404 = vmatpush2.msra.mxu0 0.0
    %405 = vmatprep.subr.mxu0 0.0
    %406 = vmatpush2.msra.mxu0 0.0
    %407 = vmatprep.subr.mxu0 0.0
    %408 = vmatpush2.msra.mxu0 0.0
    %409 = vmatprep.mubr.f32.mxu0 0.0
    %410 = vmatmul.mubr.f32.gmra.mxu0 %v340
    %v411 = vpop.f32.mrf.mxu0
    %v412 = vadd.f32 %v337, %v411
    %v413 = vpop.f32.mrf.mxu0
    %414 = vmatprep.mubr.f32.mxu0 0.0
    %415 = vmatmul.mubr.f32.gmra.mxu0 %v343
    %v416 = vpop.f32.mrf.mxu0
    %v417 = vadd.f32 %v337, %v416
    %v418 = vpop.f32.mrf.mxu0
    %419 = vdwg.mxu0
    %vm420 = vcmask 523264
    %421 = vst.msk [vmem:[%s9] sm:$0xff] %vm420, %v412
    %422 = vst.msk [vmem:[%s9 + $0x8] sm:$0xff] %vm420, %v417
    %v423 = vld [vmem:[%s5] sm:$0xff]
    %v424 = vld [vmem:[%s5 + $0x8] sm:$0xff]
    %v425 = vld [vmem:[%s5 + $0x10] sm:$0xff]
    %v426 = vld [vmem:[%s5 + $0x18] sm:$0xff]
    %v427 = vld [vmem:[%s5 + $0x20] sm:$0xff]
    %v428 = vld [vmem:[%s5 + $0x28] sm:$0xff]
    %v429 = vld [vmem:[%s5 + $0x30] sm:$0xff]
    %v430 = vld [vmem:[%s5 + $0x38] sm:$0xff]
    %v431 = vld [vmem:[%s5 + $0x40] sm:$0xff]
    %v432 = vld [vmem:[%s5 + $0x48] sm:$0xff]
    %v433 = vld [vmem:[%s5 + $0x50] sm:$0xff]
    %v434 = vld [vmem:[%s5 + $0x58] sm:$0xff]
    %v435 = vld [vmem:[%s5 + $0x60] sm:$0xff]
    %v436 = vld [vmem:[%s5 + $0x68] sm:$0xff]
    %v437 = vld [vmem:[%s5 + $0x70] sm:$0xff]
    %v438 = vld [vmem:[%s5 + $0x78] sm:$0xff]
    %v439 = vld [vmem:[%s6] sm:$0x3]
    %v441 = vlaneseq
    %v442 = vshrl.u32 %v441, 7
    %v443 = vsub.s32 0, %v442
    %v444 = vrot.slane %v439, %v443
    %v445 = vlaneseq
    %v446 = vshrl.u32 %v445, 7
    %v447 = vsub.s32 1, %v446
    %v448 = vrot.slane %v439, %v447
    %v452 = vsel %vm420, %v412, 0
    %v455 = vsel %vm420, %v417, 0
    %457 = vmatprep.subr.mxu0 0.0
    %458 = vmatpush1.msra.mxu0 0.0
    %459 = vmatprep.subr.mxu0 0.0
    %460 = vmatpush1.msra.mxu0 0.0
    %461 = vmatprep.subr.mxu0 0.0
    %462 = vmatpush1.msra.mxu0 0.0
    %463 = vmatprep.subr.mxu0 0.0
    %464 = vmatpush1.msra.mxu0 0.0
    %465 = vmatprep.subr.mxu0 0.0
    %466 = vmatpush1.msra.mxu0 0.0
    %467 = vmatprep.subr.mxu0 0.0
    %468 = vmatpush1.msra.mxu0 0.0
    %469 = vmatprep.subr.mxu0 0.0
    %470 = vmatpush1.msra.mxu0 0.0
    %471 = vmatprep.subr.mxu0 0.0
    %472 = vmatpush1.msra.mxu0 0.0
    %473 = vmatprep.subr.mxu0 %v438
    %474 = vmatpush1.msra.mxu0 %v437
    %475 = vmatprep.subr.mxu0 %v436
    %476 = vmatpush1.msra.mxu0 %v435
    %477 = vmatprep.subr.mxu0 %v434
    %478 = vmatpush1.msra.mxu0 %v433
    %479 = vmatprep.subr.mxu0 %v432
    %480 = vmatpush1.msra.mxu0 %v431
    %481 = vmatprep.subr.mxu0 %v430
    %482 = vmatpush1.msra.mxu0 %v429
    %483 = vmatprep.subr.mxu0 %v428
    %484 = vmatpush1.msra.mxu0 %v427
    %485 = vmatprep.subr.mxu0 %v426
    %486 = vmatpush1.msra.mxu0 %v425
    %487 = vmatprep.subr.mxu0 %v424
    %488 = vmatpush1.msra.mxu0 %v423
    %489 = vmatprep.subr.mxu0 0.0
    %490 = vmatpush2.msra.mxu0 0.0
    %491 = vmatprep.subr.mxu0 0.0
    %492 = vmatpush2.msra.mxu0 0.0
    %493 = vmatprep.subr.mxu0 0.0
    %494 = vmatpush2.msra.mxu0 0.0
    %495 = vmatprep.subr.mxu0 0.0
    %496 = vmatpush2.msra.mxu0 0.0
    %497 = vmatprep.subr.mxu0 0.0
    %498 = vmatpush2.msra.mxu0 0.0
    %499 = vmatprep.subr.mxu0 0.0
    %500 = vmatpush2.msra.mxu0 0.0
    %501 = vmatprep.subr.mxu0 0.0
    %502 = vmatpush2.msra.mxu0 0.0
    %503 = vmatprep.subr.mxu0 0.0
    %504 = vmatpush2.msra.mxu0 0.0
    %505 = vmatprep.subr.mxu0 0.0
    %506 = vmatpush2.msra.mxu0 0.0
    %507 = vmatprep.subr.mxu0 0.0
    %508 = vmatpush2.msra.mxu0 0.0
    %509 = vmatprep.subr.mxu0 0.0
    %510 = vmatpush2.msra.mxu0 0.0
    %511 = vmatprep.subr.mxu0 0.0
    %512 = vmatpush2.msra.mxu0 0.0
    %513 = vmatprep.subr.mxu0 0.0
    %514 = vmatpush2.msra.mxu0 0.0
    %515 = vmatprep.subr.mxu0 0.0
    %516 = vmatpush2.msra.mxu0 0.0
    %517 = vmatprep.subr.mxu0 0.0
    %518 = vmatpush2.msra.mxu0 0.0
    %519 = vmatprep.subr.mxu0 0.0
    %520 = vmatpush2.msra.mxu0 0.0
    %521 = vmatprep.mubr.f32.mxu0 0.0
    %522 = vmatmul.mubr.f32.gmra.mxu0 %v452
    %v523 = vpop.f32.mrf.mxu0
    %v524 = vadd.f32 %v444, %v523
    %v525 = vpop.f32.mrf.mxu0
    %v526 = vadd.f32 %v448, %v525
    %527 = vmatprep.mubr.f32.mxu0 0.0
    %528 = vmatmul.mubr.f32.gmra.mxu0 %v455
    %v529 = vpop.f32.mrf.mxu0
    %v530 = vadd.f32 %v444, %v529
    %v531 = vpop.f32.mrf.mxu0
    %v532 = vadd.f32 %v448, %v531
    %533 = vdwg.mxu0
    %534 = vst [vmem:[%s10] sm:$0xff] %v524
    %535 = vst.msk [vmem:[%s10 + $0x8] sm:$0xff] %vm420, %v526
    %536 = vst [vmem:[%s10 + $0x10] sm:$0xff] %v530
    %537 = vst.msk [vmem:[%s10 + $0x18] sm:$0xff] %vm420, %v532
    // Predicated region
    $region34: #{grtrans_forward.3} parent=1 // pred_check
      _
    $region35: #{grtrans_forward.3} parent=1 // pred_check_branch
      %539 = sbr.rel (0) target = $region37
    $region36: #{grtrans_forward.3} parent=1 // pred_region
      %s541 = ssub.s32 256, 256
      %542 = vsyncadd [#allocation3], %s541
      %s543 = sshll.u32 [#allocation5], 4
      %s544 = int_to_ptr.vmem [resolvable:$true] %s543
      %549 = dma.vmem_to_hbm [thread:$0]  %s544, 256, %s7, [#allocation3], 128, 128, 8
    $region37: #{grtrans_forward.3} parent=1 // pred_fallthru
      _
    // Predicated region
    $region38: #{grtrans_forward.3} parent=1 // pred_check
      _
    $region39: #{grtrans_forward.3} parent=1 // pred_check_branch
      %551 = sbr.rel (0) target = $region41
    $region40: #{grtrans_forward.3} parent=1 // pred_region
      %s553 = ssub.s32 256, 256
      %554 = vsyncadd [#allocation7], %s553
      %s555 = sshll.u32 [#allocation6], 4
      %s556 = int_to_ptr.vmem [resolvable:$true] %s555
      %561 = dma.vmem_to_hbm [thread:$0]  %s556, 256, %s8, [#allocation7], 128, 128, 8
    $region41: #{grtrans_forward.3} parent=1 // pred_fallthru
      _
    // Predicated region
    $region42: #{grtrans_forward.3} parent=1 // pred_check
      _
    $region43: #{grtrans_forward.3} parent=1 // pred_check_branch
      %563 = sbr.rel (0) target = $region45
    $region44: #{grtrans_forward.3} parent=1 // pred_region
      _
    $region45: #{grtrans_forward.3} parent=1 // pred_fallthru
      _
    // Predicated region
    $region46: #{grtrans_forward.3} parent=1 // pred_check
      _
    $region47: #{grtrans_forward.3} parent=1 // pred_check_branch
      %565 = sbr.rel (0) target = $region49
    $region48: #{grtrans_forward.3} parent=1 // pred_region
      _
    $region49: #{grtrans_forward.3} parent=1 // pred_fallthru
      _
    // Predicated region
    $region50: #{grtrans_forward.3} parent=1 // pred_check
      _
    $region51: #{grtrans_forward.3} parent=1 // pred_check_branch
      %567 = sbr.rel (0) target = $region53
    $region52: #{grtrans_forward.3} parent=1 // pred_region
      %568 = dma.done [#allocation3], 256
    $region53: #{grtrans_forward.3} parent=1 // pred_fallthru
      _
    // Predicated region
    $region54: #{grtrans_forward.3} parent=1 // pred_check
      _
    $region55: #{grtrans_forward.3} parent=1 // pred_check_branch
      %570 = sbr.rel (0) target = $region57
    $region56: #{grtrans_forward.3} parent=1 // pred_region
      %571 = dma.done [#allocation7], 256
    $region57: #{grtrans_forward.3} parent=1 // pred_fallthru
      _
    // Predicated region
    $region58: #{grtrans_forward.3} parent=1 // pred_check
      _
    $region59: #{grtrans_forward.3} parent=1 // pred_check_branch
      %573 = sbr.rel (0) target = $region61
    $region60: #{grtrans_forward.3} parent=1 // pred_region
      _
    $region61: #{grtrans_forward.3} parent=1 // pred_fallthru
      _
    // Predicated region
    $region62: #{grtrans_forward.3} parent=1 // pred_check
      _
    $region63: #{grtrans_forward.3} parent=1 // pred_check_branch
      %575 = sbr.rel (0) target = $region65
    $region64: #{grtrans_forward.3} parent=1 // pred_region
      _
    $region65: #{grtrans_forward.3} parent=1 // pred_fallthru
      _
    %576 = vsyncpa [#allocation3], 1
    %577 = vsyncpa [#allocation7], 1
    %578 = vsyncpa [#allocation4], 1

// kernel: grtrans_forward.4
$region0: #{grtrans_forward.4}
  #allocation0 [shape = 'u32[]', space=smem, size = 0x4, offset = 0x4, fixed_abs, tag = 'smem constant byte address 0x4 - core index']
  #allocation1 [shape = 'u32[144,128]{1,0:T(1,128)}', space=vmem, size = 0x12000, scoped, tag = 'internal scratch']
  %s0 = inlined_call_operand.vmem [shape: f32[8,16,8], index: 0, kind: input, shape index: {}]
  %s1 = inlined_call_operand.vmem [shape: f32[8,16,8], index: 1, kind: input, shape index: {}]
  %s2 = inlined_call_operand.vmem [shape: f32[8,16,8], index: 2, kind: input, shape index: {}]
  %s3 = inlined_call_operand.vmem [shape: f32[8,16,8], index: 3, kind: output, shape index: {}]
  %s4 = sld [smem:[#allocation0]]
  $region22: #{grtrans_forward.4} parent=0
    _
  %s6 = ssub.s32 1, %s4
  %s7 = scalar_select 0, %s6, %s4
  // Predicated region
  $region2: #{grtrans_forward.4} parent=0 // pred_check
    _
  $region3: #{grtrans_forward.4} parent=0 // pred_check_branch
    %9 = sbr.rel (0) target = $region5
  $region4: #{grtrans_forward.4} parent=0 // pred_region
    _
  $region5: #{grtrans_forward.4} parent=0 // pred_fallthru
    _
  // Predicated region
  $region6: #{grtrans_forward.4} parent=0 // pred_check
    _
  $region7: #{grtrans_forward.4} parent=0 // pred_check_branch
    %11 = sbr.rel (0) target = $region9
  $region8: #{grtrans_forward.4} parent=0 // pred_region
    _
  $region9: #{grtrans_forward.4} parent=0 // pred_fallthru
    _
  // Predicated region
  $region10: #{grtrans_forward.4} parent=0 // pred_check
    _
  $region11: #{grtrans_forward.4} parent=0 // pred_check_branch
    %13 = sbr.rel (0) target = $region13
  $region12: #{grtrans_forward.4} parent=0 // pred_region
    _
  $region13: #{grtrans_forward.4} parent=0 // pred_fallthru
    _
  %v14 = vld [vmem:[%s0] sm:$0xff]
  %v15 = vld [vmem:[%s0 + $0x8] sm:$0xff]
  %v16 = vld [vmem:[%s0 + $0x10] sm:$0xff]
  %v17 = vld [vmem:[%s0 + $0x18] sm:$0xff]
  %v18 = vld [vmem:[%s0 + $0x20] sm:$0xff]
  %v19 = vld [vmem:[%s0 + $0x28] sm:$0xff]
  %v20 = vld [vmem:[%s0 + $0x30] sm:$0xff]
  %v21 = vld [vmem:[%s0 + $0x38] sm:$0xff]
  %v22 = vld [vmem:[%s0 + $0x40] sm:$0xff]
  %v23 = vld [vmem:[%s0 + $0x48] sm:$0xff]
  %v24 = vld [vmem:[%s0 + $0x50] sm:$0xff]
  %v25 = vld [vmem:[%s0 + $0x58] sm:$0xff]
  %v26 = vld [vmem:[%s0 + $0x60] sm:$0xff]
  %v27 = vld [vmem:[%s0 + $0x68] sm:$0xff]
  %v28 = vld [vmem:[%s0 + $0x70] sm:$0xff]
  %v29 = vld [vmem:[%s0 + $0x78] sm:$0xff]
  %v30 = vld [vmem:[%s1] sm:$0xff]
  %v31 = vld [vmem:[%s1 + $0x8] sm:$0xff]
  %v32 = vld [vmem:[%s1 + $0x10] sm:$0xff]
  %v33 = vld [vmem:[%s1 + $0x18] sm:$0xff]
  %v34 = vld [vmem:[%s1 + $0x20] sm:$0xff]
  %v35 = vld [vmem:[%s1 + $0x28] sm:$0xff]
  %v36 = vld [vmem:[%s1 + $0x30] sm:$0xff]
  %v37 = vld [vmem:[%s1 + $0x38] sm:$0xff]
  %v38 = vld [vmem:[%s1 + $0x40] sm:$0xff]
  %v39 = vld [vmem:[%s1 + $0x48] sm:$0xff]
  %v40 = vld [vmem:[%s1 + $0x50] sm:$0xff]
  %v41 = vld [vmem:[%s1 + $0x58] sm:$0xff]
  %v42 = vld [vmem:[%s1 + $0x60] sm:$0xff]
  %v43 = vld [vmem:[%s1 + $0x68] sm:$0xff]
  %v44 = vld [vmem:[%s1 + $0x70] sm:$0xff]
  %v45 = vld [vmem:[%s1 + $0x78] sm:$0xff]
  %v46 = vld [vmem:[%s2] sm:$0xff]
  %v47 = vld [vmem:[%s2 + $0x8] sm:$0xff]
  %v48 = vld [vmem:[%s2 + $0x10] sm:$0xff]
  %v49 = vld [vmem:[%s2 + $0x18] sm:$0xff]
  %v50 = vld [vmem:[%s2 + $0x20] sm:$0xff]
  %v51 = vld [vmem:[%s2 + $0x28] sm:$0xff]
  %v52 = vld [vmem:[%s2 + $0x30] sm:$0xff]
  %v53 = vld [vmem:[%s2 + $0x38] sm:$0xff]
  %v54 = vld [vmem:[%s2 + $0x40] sm:$0xff]
  %v55 = vld [vmem:[%s2 + $0x48] sm:$0xff]
  %v56 = vld [vmem:[%s2 + $0x50] sm:$0xff]
  %v57 = vld [vmem:[%s2 + $0x58] sm:$0xff]
  %v58 = vld [vmem:[%s2 + $0x60] sm:$0xff]
  %v59 = vld [vmem:[%s2 + $0x68] sm:$0xff]
  %v60 = vld [vmem:[%s2 + $0x70] sm:$0xff]
  %v61 = vld [vmem:[%s2 + $0x78] sm:$0xff]
  %vm62 = vcmask 64512
  %v64 = vsel %vm62, %v14, 0
  %v67 = vsel %vm62, %v15, 0
  %v70 = vsel %vm62, %v30, 0
  %v73 = vsel %vm62, %v31, 0
  %75 = vmatprep.subr.mxu0 0.0
  %76 = vmatpush1.xpose.msra.mxu0 0.0
  %77 = vmatprep.subr.mxu0 0.0
  %78 = vmatpush1.xpose.msra.mxu0 0.0
  %79 = vmatprep.subr.mxu0 0.0
  %80 = vmatpush1.xpose.msra.mxu0 0.0
  %81 = vmatprep.subr.mxu0 0.0
  %82 = vmatpush1.xpose.msra.mxu0 0.0
  %83 = vmatprep.subr.mxu0 0.0
  %84 = vmatpush1.xpose.msra.mxu0 0.0
  %85 = vmatprep.subr.mxu0 0.0
  %86 = vmatpush1.xpose.msra.mxu0 0.0
  %87 = vmatprep.subr.mxu0 0.0
  %88 = vmatpush1.xpose.msra.mxu0 0.0
  %89 = vmatprep.subr.mxu0 0.0
  %90 = vmatpush1.xpose.msra.mxu0 0.0
  %91 = vmatprep.subr.mxu0 0.0
  %92 = vmatpush1.xpose.msra.mxu0 0.0
  %93 = vmatprep.subr.mxu0 0.0
  %94 = vmatpush1.xpose.msra.mxu0 0.0
  %95 = vmatprep.subr.mxu0 0.0
  %96 = vmatpush1.xpose.msra.mxu0 0.0
  %97 = vmatprep.subr.mxu0 0.0
  %98 = vmatpush1.xpose.msra.mxu0 0.0
  %99 = vmatprep.subr.mxu0 0.0
  %100 = vmatpush1.xpose.msra.mxu0 0.0
  %101 = vmatprep.subr.mxu0 0.0
  %102 = vmatpush1.xpose.msra.mxu0 0.0
  %103 = vmatprep.subr.mxu0 0.0
  %104 = vmatpush1.xpose.msra.mxu0 %v73
  %105 = vmatprep.subr.mxu0 0.0
  %106 = vmatpush1.xpose.msra.mxu0 %v70
  %107 = vmatprep.subr.mxu0 0.0
  %108 = vmatpush2.xpose.msra.mxu0 0.0
  %109 = vmatprep.subr.mxu0 0.0
  %110 = vmatpush2.xpose.msra.mxu0 0.0
  %111 = vmatprep.subr.mxu0 0.0
  %112 = vmatpush2.xpose.msra.mxu0 0.0
  %113 = vmatprep.subr.mxu0 0.0
  %114 = vmatpush2.xpose.msra.mxu0 0.0
  %115 = vmatprep.subr.mxu0 0.0
  %116 = vmatpush2.xpose.msra.mxu0 0.0
  %117 = vmatprep.subr.mxu0 0.0
  %118 = vmatpush2.xpose.msra.mxu0 0.0
  %119 = vmatprep.subr.mxu0 0.0
  %120 = vmatpush2.xpose.msra.mxu0 0.0
  %121 = vmatprep.subr.mxu0 0.0
  %122 = vmatpush2.xpose.msra.mxu0 0.0
  %123 = vmatprep.subr.mxu0 0.0
  %124 = vmatpush2.xpose.msra.mxu0 0.0
  %125 = vmatprep.subr.mxu0 0.0
  %126 = vmatpush2.xpose.msra.mxu0 0.0
  %127 = vmatprep.subr.mxu0 0.0
  %128 = vmatpush2.xpose.msra.mxu0 0.0
  %129 = vmatprep.subr.mxu0 0.0
  %130 = vmatpush2.xpose.msra.mxu0 0.0
  %131 = vmatprep.subr.mxu0 0.0
  %132 = vmatpush2.xpose.msra.mxu0 0.0
  %133 = vmatprep.subr.mxu0 0.0
  %134 = vmatpush2.xpose.msra.mxu0 0.0
  %135 = vmatprep.subr.mxu0 0.0
  %136 = vmatpush2.xpose.msra.mxu0 0.0
  %137 = vmatprep.subr.mxu0 0.0
  %138 = vmatpush2.xpose.msra.mxu0 0.0
  %139 = vmatprep.mubr.f32.mxu0 0.0
  %140 = vmatmul.mubr.f32.gmra.mxu0 %v64
  %v141 = vpop.f32.mrf.mxu0
  %v142 = vadd.f32 0.0, %v141
  %v143 = vpop.f32.mrf.mxu0
  %144 = vmatprep.mubr.f32.mxu0 0.0
  %145 = vmatmul.mubr.f32.gmra.mxu0 %v67
  %v146 = vpop.f32.mrf.mxu0
  %v147 = vadd.f32 0.0, %v146
  %v148 = vpop.f32.mrf.mxu0
  %149 = vdwg.mxu0
  %v151 = vsel %vm62, %v16, 0
  %v154 = vsel %vm62, %v17, 0
  %v157 = vsel %vm62, %v32, 0
  %v160 = vsel %vm62, %v33, 0
  %162 = vmatprep.subr.mxu0 0.0
  %163 = vmatpush1.xpose.msra.mxu0 0.0
  %164 = vmatprep.subr.mxu0 0.0
  %165 = vmatpush1.xpose.msra.mxu0 0.0
  %166 = vmatprep.subr.mxu0 0.0
  %167 = vmatpush1.xpose.msra.mxu0 0.0
  %168 = vmatprep.subr.mxu0 0.0
  %169 = vmatpush1.xpose.msra.mxu0 0.0
  %170 = vmatprep.subr.mxu0 0.0
  %171 = vmatpush1.xpose.msra.mxu0 0.0
  %172 = vmatprep.subr.mxu0 0.0
  %173 = vmatpush1.xpose.msra.mxu0 0.0
  %174 = vmatprep.subr.mxu0 0.0
  %175 = vmatpush1.xpose.msra.mxu0 0.0
  %176 = vmatprep.subr.mxu0 0.0
  %177 = vmatpush1.xpose.msra.mxu0 0.0
  %178 = vmatprep.subr.mxu0 0.0
  %179 = vmatpush1.xpose.msra.mxu0 0.0
  %180 = vmatprep.subr.mxu0 0.0
  %181 = vmatpush1.xpose.msra.mxu0 0.0
  %182 = vmatprep.subr.mxu0 0.0
  %183 = vmatpush1.xpose.msra.mxu0 0.0
  %184 = vmatprep.subr.mxu0 0.0
  %185 = vmatpush1.xpose.msra.mxu0 0.0
  %186 = vmatprep.subr.mxu0 0.0
  %187 = vmatpush1.xpose.msra.mxu0 0.0
  %188 = vmatprep.subr.mxu0 0.0
  %189 = vmatpush1.xpose.msra.mxu0 0.0
  %190 = vmatprep.subr.mxu0 0.0
  %191 = vmatpush1.xpose.msra.mxu0 %v160
  %192 = vmatprep.subr.mxu0 0.0
  %193 = vmatpush1.xpose.msra.mxu0 %v157
  %194 = vmatprep.subr.mxu0 0.0
  %195 = vmatpush2.xpose.msra.mxu0 0.0
  %196 = vmatprep.subr.mxu0 0.0
  %197 = vmatpush2.xpose.msra.mxu0 0.0
  %198 = vmatprep.subr.mxu0 0.0
  %199 = vmatpush2.xpose.msra.mxu0 0.0
  %200 = vmatprep.subr.mxu0 0.0
  %201 = vmatpush2.xpose.msra.mxu0 0.0
  %202 = vmatprep.subr.mxu0 0.0
  %203 = vmatpush2.xpose.msra.mxu0 0.0
  %204 = vmatprep.subr.mxu0 0.0
  %205 = vmatpush2.xpose.msra.mxu0 0.0
  %206 = vmatprep.subr.mxu0 0.0
  %207 = vmatpush2.xpose.msra.mxu0 0.0
  %208 = vmatprep.subr.mxu0 0.0
  %209 = vmatpush2.xpose.msra.mxu0 0.0
  %210 = vmatprep.subr.mxu0 0.0
  %211 = vmatpush2.xpose.msra.mxu0 0.0
  %212 = vmatprep.subr.mxu0 0.0
  %213 = vmatpush2.xpose.msra.mxu0 0.0
  %214 = vmatprep.subr.mxu0 0.0
  %215 = vmatpush2.xpose.msra.mxu0 0.0
  %216 = vmatprep.subr.mxu0 0.0
  %217 = vmatpush2.xpose.msra.mxu0 0.0
  %218 = vmatprep.subr.mxu0 0.0
  %219 = vmatpush2.xpose.msra.mxu0 0.0
  %220 = vmatprep.subr.mxu0 0.0
  %221 = vmatpush2.xpose.msra.mxu0 0.0
  %222 = vmatprep.subr.mxu0 0.0
  %223 = vmatpush2.xpose.msra.mxu0 0.0
  %224 = vmatprep.subr.mxu0 0.0
  %225 = vmatpush2.xpose.msra.mxu0 0.0
  %226 = vmatprep.mubr.f32.mxu0 0.0
  %227 = vmatmul.mubr.f32.gmra.mxu0 %v151
  %v228 = vpop.f32.mrf.mxu0
  %v229 = vadd.f32 0.0, %v228
  %v230 = vpop.f32.mrf.mxu0
  %231 = vmatprep.mubr.f32.mxu0 0.0
  %232 = vmatmul.mubr.f32.gmra.mxu0 %v154
  %v233 = vpop.f32.mrf.mxu0
  %v234 = vadd.f32 0.0, %v233
  %v235 = vpop.f32.mrf.mxu0
  %236 = vdwg.mxu0
  %v238 = vsel %vm62, %v18, 0
  %v241 = vsel %vm62, %v19, 0
  %v244 = vsel %vm62, %v34, 0
  %v247 = vsel %vm62, %v35, 0
  %249 = vmatprep.subr.mxu0 0.0
  %250 = vmatpush1.xpose.msra.mxu0 0.0
  %251 = vmatprep.subr.mxu0 0.0
  %252 = vmatpush1.xpose.msra.mxu0 0.0
  %253 = vmatprep.subr.mxu0 0.0
  %254 = vmatpush1.xpose.msra.mxu0 0.0
  %255 = vmatprep.subr.mxu0 0.0
  %256 = vmatpush1.xpose.msra.mxu0 0.0
  %257 = vmatprep.subr.mxu0 0.0
  %258 = vmatpush1.xpose.msra.mxu0 0.0
  %259 = vmatprep.subr.mxu0 0.0
  %260 = vmatpush1.xpose.msra.mxu0 0.0
  %261 = vmatprep.subr.mxu0 0.0
  %262 = vmatpush1.xpose.msra.mxu0 0.0
  %263 = vmatprep.subr.mxu0 0.0
  %264 = vmatpush1.xpose.msra.mxu0 0.0
  %265 = vmatprep.subr.mxu0 0.0
  %266 = vmatpush1.xpose.msra.mxu0 0.0
  %267 = vmatprep.subr.mxu0 0.0
  %268 = vmatpush1.xpose.msra.mxu0 0.0
  %269 = vmatprep.subr.mxu0 0.0
  %270 = vmatpush1.xpose.msra.mxu0 0.0
  %271 = vmatprep.subr.mxu0 0.0
  %272 = vmatpush1.xpose.msra.mxu0 0.0
  %273 = vmatprep.subr.mxu0 0.0
  %274 = vmatpush1.xpose.msra.mxu0 0.0
  %275 = vmatprep.subr.mxu0 0.0
  %276 = vmatpush1.xpose.msra.mxu0 0.0
  %277 = vmatprep.subr.mxu0 0.0
  %278 = vmatpush1.xpose.msra.mxu0 %v247
  %279 = vmatprep.subr.mxu0 0.0
  %280 = vmatpush1.xpose.msra.mxu0 %v244
  %281 = vmatprep.subr.mxu0 0.0
  %282 = vmatpush2.xpose.msra.mxu0 0.0
  %283 = vmatprep.subr.mxu0 0.0
  %284 = vmatpush2.xpose.msra.mxu0 0.0
  %285 = vmatprep.subr.mxu0 0.0
  %286 = vmatpush2.xpose.msra.mxu0 0.0
  %287 = vmatprep.subr.mxu0 0.0
  %288 = vmatpush2.xpose.msra.mxu0 0.0
  %289 = vmatprep.subr.mxu0 0.0
  %290 = vmatpush2.xpose.msra.mxu0 0.0
  %291 = vmatprep.subr.mxu0 0.0
  %292 = vmatpush2.xpose.msra.mxu0 0.0
  %293 = vmatprep.subr.mxu0 0.0
  %294 = vmatpush2.xpose.msra.mxu0 0.0
  %295 = vmatprep.subr.mxu0 0.0
  %296 = vmatpush2.xpose.msra.mxu0 0.0
  %297 = vmatprep.subr.mxu0 0.0
  %298 = vmatpush2.xpose.msra.mxu0 0.0
  %299 = vmatprep.subr.mxu0 0.0
  %300 = vmatpush2.xpose.msra.mxu0 0.0
  %301 = vmatprep.subr.mxu0 0.0
  %302 = vmatpush2.xpose.msra.mxu0 0.0
  %303 = vmatprep.subr.mxu0 0.0
  %304 = vmatpush2.xpose.msra.mxu0 0.0
  %305 = vmatprep.subr.mxu0 0.0
  %306 = vmatpush2.xpose.msra.mxu0 0.0
  %307 = vmatprep.subr.mxu0 0.0
  %308 = vmatpush2.xpose.msra.mxu0 0.0
  %309 = vmatprep.subr.mxu0 0.0
  %310 = vmatpush2.xpose.msra.mxu0 0.0
  %311 = vmatprep.subr.mxu0 0.0
  %312 = vmatpush2.xpose.msra.mxu0 0.0
  %313 = vmatprep.mubr.f32.mxu0 0.0
  %314 = vmatmul.mubr.f32.gmra.mxu0 %v238
  %v315 = vpop.f32.mrf.mxu0
  %v316 = vadd.f32 0.0, %v315
  %v317 = vpop.f32.mrf.mxu0
  %318 = vmatprep.mubr.f32.mxu0 0.0
  %319 = vmatmul.mubr.f32.gmra.mxu0 %v241
  %v320 = vpop.f32.mrf.mxu0
  %v321 = vadd.f32 0.0, %v320
  %v322 = vpop.f32.mrf.mxu0
  %323 = vdwg.mxu0
  %v325 = vsel %vm62, %v20, 0
  %v328 = vsel %vm62, %v21, 0
  %v331 = vsel %vm62, %v36, 0
  %v334 = vsel %vm62, %v37, 0
  %336 = vmatprep.subr.mxu0 0.0
  %337 = vmatpush1.xpose.msra.mxu0 0.0
  %338 = vmatprep.subr.mxu0 0.0
  %339 = vmatpush1.xpose.msra.mxu0 0.0
  %340 = vmatprep.subr.mxu0 0.0
  %341 = vmatpush1.xpose.msra.mxu0 0.0
  %342 = vmatprep.subr.mxu0 0.0
  %343 = vmatpush1.xpose.msra.mxu0 0.0
  %344 = vmatprep.subr.mxu0 0.0
  %345 = vmatpush1.xpose.msra.mxu0 0.0
  %346 = vmatprep.subr.mxu0 0.0
  %347 = vmatpush1.xpose.msra.mxu0 0.0
  %348 = vmatprep.subr.mxu0 0.0
  %349 = vmatpush1.xpose.msra.mxu0 0.0
  %350 = vmatprep.subr.mxu0 0.0
  %351 = vmatpush1.xpose.msra.mxu0 0.0
  %352 = vmatprep.subr.mxu0 0.0
  %353 = vmatpush1.xpose.msra.mxu0 0.0
  %354 = vmatprep.subr.mxu0 0.0
  %355 = vmatpush1.xpose.msra.mxu0 0.0
  %356 = vmatprep.subr.mxu0 0.0
  %357 = vmatpush1.xpose.msra.mxu0 0.0
  %358 = vmatprep.subr.mxu0 0.0
  %359 = vmatpush1.xpose.msra.mxu0 0.0
  %360 = vmatprep.subr.mxu0 0.0
  %361 = vmatpush1.xpose.msra.mxu0 0.0
  %362 = vmatprep.subr.mxu0 0.0
  %363 = vmatpush1.xpose.msra.mxu0 0.0
  %364 = vmatprep.subr.mxu0 0.0
  %365 = vmatpush1.xpose.msra.mxu0 %v334
  %366 = vmatprep.subr.mxu0 0.0
  %367 = vmatpush1.xpose.msra.mxu0 %v331
  %368 = vmatprep.subr.mxu0 0.0
  %369 = vmatpush2.xpose.msra.mxu0 0.0
  %370 = vmatprep.subr.mxu0 0.0
  %371 = vmatpush2.xpose.msra.mxu0 0.0
  %372 = vmatprep.subr.mxu0 0.0
  %373 = vmatpush2.xpose.msra.mxu0 0.0
  %374 = vmatprep.subr.mxu0 0.0
  %375 = vmatpush2.xpose.msra.mxu0 0.0
  %376 = vmatprep.subr.mxu0 0.0
  %377 = vmatpush2.xpose.msra.mxu0 0.0
  %378 = vmatprep.subr.mxu0 0.0
  %379 = vmatpush2.xpose.msra.mxu0 0.0
  %380 = vmatprep.subr.mxu0 0.0
  %381 = vmatpush2.xpose.msra.mxu0 0.0
  %382 = vmatprep.subr.mxu0 0.0
  %383 = vmatpush2.xpose.msra.mxu0 0.0
  %384 = vmatprep.subr.mxu0 0.0
  %385 = vmatpush2.xpose.msra.mxu0 0.0
  %386 = vmatprep.subr.mxu0 0.0
  %387 = vmatpush2.xpose.msra.mxu0 0.0
  %388 = vmatprep.subr.mxu0 0.0
  %389 = vmatpush2.xpose.msra.mxu0 0.0
  %390 = vmatprep.subr.mxu0 0.0
  %391 = vmatpush2.xpose.msra.mxu0 0.0
  %392 = vmatprep.subr.mxu0 0.0
  %393 = vmatpush2.xpose.msra.mxu0 0.0
  %394 = vmatprep.subr.mxu0 0.0
  %395 = vmatpush2.xpose.msra.mxu0 0.0
  %396 = vmatprep.subr.mxu0 0.0
  %397 = vmatpush2.xpose.msra.mxu0 0.0
  %398 = vmatprep.subr.mxu0 0.0
  %399 = vmatpush2.xpose.msra.mxu0 0.0
  %400 = vmatprep.mubr.f32.mxu0 0.0
  %401 = vmatmul.mubr.f32.gmra.mxu0 %v325
  %v402 = vpop.f32.mrf.mxu0
  %v403 = vadd.f32 0.0, %v402
  %v404 = vpop.f32.mrf.mxu0
  %405 = vmatprep.mubr.f32.mxu0 0.0
  %406 = vmatmul.mubr.f32.gmra.mxu0 %v328
  %v407 = vpop.f32.mrf.mxu0
  %v408 = vadd.f32 0.0, %v407
  %v409 = vpop.f32.mrf.mxu0
  %410 = vdwg.mxu0
  %v412 = vsel %vm62, %v22, 0
  %v415 = vsel %vm62, %v23, 0
  %v418 = vsel %vm62, %v38, 0
  %v421 = vsel %vm62, %v39, 0
  %423 = vmatprep.subr.mxu0 0.0
  %424 = vmatpush1.xpose.msra.mxu0 0.0
  %425 = vmatprep.subr.mxu0 0.0
  %426 = vmatpush1.xpose.msra.mxu0 0.0
  %427 = vmatprep.subr.mxu0 0.0
  %428 = vmatpush1.xpose.msra.mxu0 0.0
  %429 = vmatprep.subr.mxu0 0.0
  %430 = vmatpush1.xpose.msra.mxu0 0.0
  %431 = vmatprep.subr.mxu0 0.0
  %432 = vmatpush1.xpose.msra.mxu0 0.0
  %433 = vmatprep.subr.mxu0 0.0
  %434 = vmatpush1.xpose.msra.mxu0 0.0
  %435 = vmatprep.subr.mxu0 0.0
  %436 = vmatpush1.xpose.msra.mxu0 0.0
  %437 = vmatprep.subr.mxu0 0.0
  %438 = vmatpush1.xpose.msra.mxu0 0.0
  %439 = vmatprep.subr.mxu0 0.0
  %440 = vmatpush1.xpose.msra.mxu0 0.0
  %441 = vmatprep.subr.mxu0 0.0
  %442 = vmatpush1.xpose.msra.mxu0 0.0
  %443 = vmatprep.subr.mxu0 0.0
  %444 = vmatpush1.xpose.msra.mxu0 0.0
  %445 = vmatprep.subr.mxu0 0.0
  %446 = vmatpush1.xpose.msra.mxu0 0.0
  %447 = vmatprep.subr.mxu0 0.0
  %448 = vmatpush1.xpose.msra.mxu0 0.0
  %449 = vmatprep.subr.mxu0 0.0
  %450 = vmatpush1.xpose.msra.mxu0 0.0
  %451 = vmatprep.subr.mxu0 0.0
  %452 = vmatpush1.xpose.msra.mxu0 %v421
  %453 = vmatprep.subr.mxu0 0.0
  %454 = vmatpush1.xpose.msra.mxu0 %v418
  %455 = vmatprep.subr.mxu0 0.0
  %456 = vmatpush2.xpose.msra.mxu0 0.0
  %457 = vmatprep.subr.mxu0 0.0
  %458 = vmatpush2.xpose.msra.mxu0 0.0
  %459 = vmatprep.subr.mxu0 0.0
  %460 = vmatpush2.xpose.msra.mxu0 0.0
  %461 = vmatprep.subr.mxu0 0.0
  %462 = vmatpush2.xpose.msra.mxu0 0.0
  %463 = vmatprep.subr.mxu0 0.0
  %464 = vmatpush2.xpose.msra.mxu0 0.0
  %465 = vmatprep.subr.mxu0 0.0
  %466 = vmatpush2.xpose.msra.mxu0 0.0
  %467 = vmatprep.subr.mxu0 0.0
  %468 = vmatpush2.xpose.msra.mxu0 0.0
  %469 = vmatprep.subr.mxu0 0.0
  %470 = vmatpush2.xpose.msra.mxu0 0.0
  %471 = vmatprep.subr.mxu0 0.0
  %472 = vmatpush2.xpose.msra.mxu0 0.0
  %473 = vmatprep.subr.mxu0 0.0
  %474 = vmatpush2.xpose.msra.mxu0 0.0
  %475 = vmatprep.subr.mxu0 0.0
  %476 = vmatpush2.xpose.msra.mxu0 0.0
  %477 = vmatprep.subr.mxu0 0.0
  %478 = vmatpush2.xpose.msra.mxu0 0.0
  %479 = vmatprep.subr.mxu0 0.0
  %480 = vmatpush2.xpose.msra.mxu0 0.0
  %481 = vmatprep.subr.mxu0 0.0
  %482 = vmatpush2.xpose.msra.mxu0 0.0
  %483 = vmatprep.subr.mxu0 0.0
  %484 = vmatpush2.xpose.msra.mxu0 0.0
  %485 = vmatprep.subr.mxu0 0.0
  %486 = vmatpush2.xpose.msra.mxu0 0.0
  %487 = vmatprep.mubr.f32.mxu0 0.0
  %488 = vmatmul.mubr.f32.gmra.mxu0 %v412
  %v489 = vpop.f32.mrf.mxu0
  %v490 = vadd.f32 0.0, %v489
  %v491 = vpop.f32.mrf.mxu0
  %492 = vmatprep.mubr.f32.mxu0 0.0
  %493 = vmatmul.mubr.f32.gmra.mxu0 %v415
  %v494 = vpop.f32.mrf.mxu0
  %v495 = vadd.f32 0.0, %v494
  %v496 = vpop.f32.mrf.mxu0
  %497 = vdwg.mxu0
  %v499 = vsel %vm62, %v24, 0
  %v502 = vsel %vm62, %v25, 0
  %v505 = vsel %vm62, %v40, 0
  %v508 = vsel %vm62, %v41, 0
  %510 = vmatprep.subr.mxu0 0.0
  %511 = vmatpush1.xpose.msra.mxu0 0.0
  %512 = vmatprep.subr.mxu0 0.0
  %513 = vmatpush1.xpose.msra.mxu0 0.0
  %514 = vmatprep.subr.mxu0 0.0
  %515 = vmatpush1.xpose.msra.mxu0 0.0
  %516 = vmatprep.subr.mxu0 0.0
  %517 = vmatpush1.xpose.msra.mxu0 0.0
  %518 = vmatprep.subr.mxu0 0.0
  %519 = vmatpush1.xpose.msra.mxu0 0.0
  %520 = vmatprep.subr.mxu0 0.0
  %521 = vmatpush1.xpose.msra.mxu0 0.0
  %522 = vmatprep.subr.mxu0 0.0
  %523 = vmatpush1.xpose.msra.mxu0 0.0
  %524 = vmatprep.subr.mxu0 0.0
  %525 = vmatpush1.xpose.msra.mxu0 0.0
  %526 = vmatprep.subr.mxu0 0.0
  %527 = vmatpush1.xpose.msra.mxu0 0.0
  %528 = vmatprep.subr.mxu0 0.0
  %529 = vmatpush1.xpose.msra.mxu0 0.0
  %530 = vmatprep.subr.mxu0 0.0
  %531 = vmatpush1.xpose.msra.mxu0 0.0
  %532 = vmatprep.subr.mxu0 0.0
  %533 = vmatpush1.xpose.msra.mxu0 0.0
  %534 = vmatprep.subr.mxu0 0.0
  %535 = vmatpush1.xpose.msra.mxu0 0.0
  %536 = vmatprep.subr.mxu0 0.0
  %537 = vmatpush1.xpose.msra.mxu0 0.0
  %538 = vmatprep.subr.mxu0 0.0
  %539 = vmatpush1.xpose.msra.mxu0 %v508
  %540 = vmatprep.subr.mxu0 0.0
  %541 = vmatpush1.xpose.msra.mxu0 %v505
  %542 = vmatprep.subr.mxu0 0.0
  %543 = vmatpush2.xpose.msra.mxu0 0.0
  %544 = vmatprep.subr.mxu0 0.0
  %545 = vmatpush2.xpose.msra.mxu0 0.0
  %546 = vmatprep.subr.mxu0 0.0
  %547 = vmatpush2.xpose.msra.mxu0 0.0
  %548 = vmatprep.subr.mxu0 0.0
  %549 = vmatpush2.xpose.msra.mxu0 0.0
  %550 = vmatprep.subr.mxu0 0.0
  %551 = vmatpush2.xpose.msra.mxu0 0.0
  %552 = vmatprep.subr.mxu0 0.0
  %553 = vmatpush2.xpose.msra.mxu0 0.0
  %554 = vmatprep.subr.mxu0 0.0
  %555 = vmatpush2.xpose.msra.mxu0 0.0
  %556 = vmatprep.subr.mxu0 0.0
  %557 = vmatpush2.xpose.msra.mxu0 0.0
  %558 = vmatprep.subr.mxu0 0.0
  %559 = vmatpush2.xpose.msra.mxu0 0.0
  %560 = vmatprep.subr.mxu0 0.0
  %561 = vmatpush2.xpose.msra.mxu0 0.0
  %562 = vmatprep.subr.mxu0 0.0
  %563 = vmatpush2.xpose.msra.mxu0 0.0
  %564 = vmatprep.subr.mxu0 0.0
  %565 = vmatpush2.xpose.msra.mxu0 0.0
  %566 = vmatprep.subr.mxu0 0.0
  %567 = vmatpush2.xpose.msra.mxu0 0.0
  %568 = vmatprep.subr.mxu0 0.0
  %569 = vmatpush2.xpose.msra.mxu0 0.0
  %570 = vmatprep.subr.mxu0 0.0
  %571 = vmatpush2.xpose.msra.mxu0 0.0
  %572 = vmatprep.subr.mxu0 0.0
  %573 = vmatpush2.xpose.msra.mxu0 0.0
  %574 = vmatprep.mubr.f32.mxu0 0.0
  %575 = vmatmul.mubr.f32.gmra.mxu0 %v499
  %v576 = vpop.f32.mrf.mxu0
  %v577 = vadd.f32 0.0, %v576
  %v578 = vpop.f32.mrf.mxu0
  %579 = vmatprep.mubr.f32.mxu0 0.0
  %580 = vmatmul.mubr.f32.gmra.mxu0 %v502
  %v581 = vpop.f32.mrf.mxu0
  %v582 = vadd.f32 0.0, %v581
  %v583 = vpop.f32.mrf.mxu0
  %584 = vdwg.mxu0
  %v586 = vsel %vm62, %v26, 0
  %v589 = vsel %vm62, %v27, 0
  %v592 = vsel %vm62, %v42, 0
  %v595 = vsel %vm62, %v43, 0
  %597 = vmatprep.subr.mxu0 0.0
  %598 = vmatpush1.xpose.msra.mxu0 0.0
  %599 = vmatprep.subr.mxu0 0.0
  %600 = vmatpush1.xpose.msra.mxu0 0.0
  %601 = vmatprep.subr.mxu0 0.0
  %602 = vmatpush1.xpose.msra.mxu0 0.0
  %603 = vmatprep.subr.mxu0 0.0
  %604 = vmatpush1.xpose.msra.mxu0 0.0
  %605 = vmatprep.subr.mxu0 0.0
  %606 = vmatpush1.xpose.msra.mxu0 0.0
  %607 = vmatprep.subr.mxu0 0.0
  %608 = vmatpush1.xpose.msra.mxu0 0.0
  %609 = vmatprep.subr.mxu0 0.0
  %610 = vmatpush1.xpose.msra.mxu0 0.0
  %611 = vmatprep.subr.mxu0 0.0
  %612 = vmatpush1.xpose.msra.mxu0 0.0
  %613 = vmatprep.subr.mxu0 0.0
  %614 = vmatpush1.xpose.msra.mxu0 0.0
  %615 = vmatprep.subr.mxu0 0.0
  %616 = vmatpush1.xpose.msra.mxu0 0.0
  %617 = vmatprep.subr.mxu0 0.0
  %618 = vmatpush1.xpose.msra.mxu0 0.0
  %619 = vmatprep.subr.mxu0 0.0
  %620 = vmatpush1.xpose.msra.mxu0 0.0
  %621 = vmatprep.subr.mxu0 0.0
  %622 = vmatpush1.xpose.msra.mxu0 0.0
  %623 = vmatprep.subr.mxu0 0.0
  %624 = vmatpush1.xpose.msra.mxu0 0.0
  %625 = vmatprep.subr.mxu0 0.0
  %626 = vmatpush1.xpose.msra.mxu0 %v595
  %627 = vmatprep.subr.mxu0 0.0
  %628 = vmatpush1.xpose.msra.mxu0 %v592
  %629 = vmatprep.subr.mxu0 0.0
  %630 = vmatpush2.xpose.msra.mxu0 0.0
  %631 = vmatprep.subr.mxu0 0.0
  %632 = vmatpush2.xpose.msra.mxu0 0.0
  %633 = vmatprep.subr.mxu0 0.0
  %634 = vmatpush2.xpose.msra.mxu0 0.0
  %635 = vmatprep.subr.mxu0 0.0
  %636 = vmatpush2.xpose.msra.mxu0 0.0
  %637 = vmatprep.subr.mxu0 0.0
  %638 = vmatpush2.xpose.msra.mxu0 0.0
  %639 = vmatprep.subr.mxu0 0.0
  %640 = vmatpush2.xpose.msra.mxu0 0.0
  %641 = vmatprep.subr.mxu0 0.0
  %642 = vmatpush2.xpose.msra.mxu0 0.0
  %643 = vmatprep.subr.mxu0 0.0
  %644 = vmatpush2.xpose.msra.mxu0 0.0
  %645 = vmatprep.subr.mxu0 0.0
  %646 = vmatpush2.xpose.msra.mxu0 0.0
  %647 = vmatprep.subr.mxu0 0.0
  %648 = vmatpush2.xpose.msra.mxu0 0.0
  %649 = vmatprep.subr.mxu0 0.0
  %650 = vmatpush2.xpose.msra.mxu0 0.0
  %651 = vmatprep.subr.mxu0 0.0
  %652 = vmatpush2.xpose.msra.mxu0 0.0
  %653 = vmatprep.subr.mxu0 0.0
  %654 = vmatpush2.xpose.msra.mxu0 0.0
  %655 = vmatprep.subr.mxu0 0.0
  %656 = vmatpush2.xpose.msra.mxu0 0.0
  %657 = vmatprep.subr.mxu0 0.0
  %658 = vmatpush2.xpose.msra.mxu0 0.0
  %659 = vmatprep.subr.mxu0 0.0
  %660 = vmatpush2.xpose.msra.mxu0 0.0
  %661 = vmatprep.mubr.f32.mxu0 0.0
  %662 = vmatmul.mubr.f32.gmra.mxu0 %v586
  %v663 = vpop.f32.mrf.mxu0
  %v664 = vadd.f32 0.0, %v663
  %v665 = vpop.f32.mrf.mxu0
  %666 = vmatprep.mubr.f32.mxu0 0.0
  %667 = vmatmul.mubr.f32.gmra.mxu0 %v589
  %v668 = vpop.f32.mrf.mxu0
  %v669 = vadd.f32 0.0, %v668
  %v670 = vpop.f32.mrf.mxu0
  %671 = vdwg.mxu0
  %v673 = vsel %vm62, %v28, 0
  %v676 = vsel %vm62, %v29, 0
  %v679 = vsel %vm62, %v44, 0
  %v682 = vsel %vm62, %v45, 0
  %684 = vmatprep.subr.mxu0 0.0
  %685 = vmatpush1.xpose.msra.mxu0 0.0
  %686 = vmatprep.subr.mxu0 0.0
  %687 = vmatpush1.xpose.msra.mxu0 0.0
  %688 = vmatprep.subr.mxu0 0.0
  %689 = vmatpush1.xpose.msra.mxu0 0.0
  %690 = vmatprep.subr.mxu0 0.0
  %691 = vmatpush1.xpose.msra.mxu0 0.0
  %692 = vmatprep.subr.mxu0 0.0
  %693 = vmatpush1.xpose.msra.mxu0 0.0
  %694 = vmatprep.subr.mxu0 0.0
  %695 = vmatpush1.xpose.msra.mxu0 0.0
  %696 = vmatprep.subr.mxu0 0.0
  %697 = vmatpush1.xpose.msra.mxu0 0.0
  %698 = vmatprep.subr.mxu0 0.0
  %699 = vmatpush1.xpose.msra.mxu0 0.0
  %700 = vmatprep.subr.mxu0 0.0
  %701 = vmatpush1.xpose.msra.mxu0 0.0
  %702 = vmatprep.subr.mxu0 0.0
  %703 = vmatpush1.xpose.msra.mxu0 0.0
  %704 = vmatprep.subr.mxu0 0.0
  %705 = vmatpush1.xpose.msra.mxu0 0.0
  %706 = vmatprep.subr.mxu0 0.0
  %707 = vmatpush1.xpose.msra.mxu0 0.0
  %708 = vmatprep.subr.mxu0 0.0
  %709 = vmatpush1.xpose.msra.mxu0 0.0
  %710 = vmatprep.subr.mxu0 0.0
  %711 = vmatpush1.xpose.msra.mxu0 0.0
  %712 = vmatprep.subr.mxu0 0.0
  %713 = vmatpush1.xpose.msra.mxu0 %v682
  %714 = vmatprep.subr.mxu0 0.0
  %715 = vmatpush1.xpose.msra.mxu0 %v679
  %716 = vmatprep.subr.mxu0 0.0
  %717 = vmatpush2.xpose.msra.mxu0 0.0
  %718 = vmatprep.subr.mxu0 0.0
  %719 = vmatpush2.xpose.msra.mxu0 0.0
  %720 = vmatprep.subr.mxu0 0.0
  %721 = vmatpush2.xpose.msra.mxu0 0.0
  %722 = vmatprep.subr.mxu0 0.0
  %723 = vmatpush2.xpose.msra.mxu0 0.0
  %724 = vmatprep.subr.mxu0 0.0
  %725 = vmatpush2.xpose.msra.mxu0 0.0
  %726 = vmatprep.subr.mxu0 0.0
  %727 = vmatpush2.xpose.msra.mxu0 0.0
  %728 = vmatprep.subr.mxu0 0.0
  %729 = vmatpush2.xpose.msra.mxu0 0.0
  %730 = vmatprep.subr.mxu0 0.0
  %731 = vmatpush2.xpose.msra.mxu0 0.0
  %732 = vmatprep.subr.mxu0 0.0
  %733 = vmatpush2.xpose.msra.mxu0 0.0
  %734 = vmatprep.subr.mxu0 0.0
  %735 = vmatpush2.xpose.msra.mxu0 0.0
  %736 = vmatprep.subr.mxu0 0.0
  %737 = vmatpush2.xpose.msra.mxu0 0.0
  %738 = vmatprep.subr.mxu0 0.0
  %739 = vmatpush2.xpose.msra.mxu0 0.0
  %740 = vmatprep.subr.mxu0 0.0
  %741 = vmatpush2.xpose.msra.mxu0 0.0
  %742 = vmatprep.subr.mxu0 0.0
  %743 = vmatpush2.xpose.msra.mxu0 0.0
  %744 = vmatprep.subr.mxu0 0.0
  %745 = vmatpush2.xpose.msra.mxu0 0.0
  %746 = vmatprep.subr.mxu0 0.0
  %747 = vmatpush2.xpose.msra.mxu0 0.0
  %748 = vmatprep.mubr.f32.mxu0 0.0
  %749 = vmatmul.mubr.f32.gmra.mxu0 %v673
  %v750 = vpop.f32.mrf.mxu0
  %v751 = vadd.f32 0.0, %v750
  %v752 = vpop.f32.mrf.mxu0
  %753 = vmatprep.mubr.f32.mxu0 0.0
  %754 = vmatmul.mubr.f32.gmra.mxu0 %v676
  %v755 = vpop.f32.mrf.mxu0
  %v756 = vadd.f32 0.0, %v755
  %v757 = vpop.f32.mrf.mxu0
  %758 = vdwg.mxu0
  %vm759 = vcmask 130048
  %v760 = vsel %vm759, %v142, -inf
  %761 = vmax.xlane.f32.xlu0 %v760
  %v762 = vpop.xlane.xlu0 %761
  %v763 = vsel %vm759, %v147, -inf
  %764 = vmax.xlane.f32.xlu0 %v763
  %v765 = vpop.xlane.xlu0 %764
  %v766 = vsel %vm759, %v229, -inf
  %767 = vmax.xlane.f32.xlu0 %v766
  %v768 = vpop.xlane.xlu0 %767
  %v769 = vsel %vm759, %v234, -inf
  %770 = vmax.xlane.f32.xlu0 %v769
  %v771 = vpop.xlane.xlu0 %770
  %v772 = vsel %vm759, %v316, -inf
  %773 = vmax.xlane.f32.xlu0 %v772
  %v774 = vpop.xlane.xlu0 %773
  %v775 = vsel %vm759, %v321, -inf
  %776 = vmax.xlane.f32.xlu0 %v775
  %v777 = vpop.xlane.xlu0 %776
  %v778 = vsel %vm759, %v403, -inf
  %779 = vmax.xlane.f32.xlu0 %v778
  %v780 = vpop.xlane.xlu0 %779
  %v781 = vsel %vm759, %v408, -inf
  %782 = vmax.xlane.f32.xlu0 %v781
  %v783 = vpop.xlane.xlu0 %782
  %v784 = vsel %vm759, %v490, -inf
  %785 = vmax.xlane.f32.xlu0 %v784
  %v786 = vpop.xlane.xlu0 %785
  %v787 = vsel %vm759, %v495, -inf
  %788 = vmax.xlane.f32.xlu0 %v787
  %v789 = vpop.xlane.xlu0 %788
  %v790 = vsel %vm759, %v577, -inf
  %791 = vmax.xlane.f32.xlu0 %v790
  %v792 = vpop.xlane.xlu0 %791
  %v793 = vsel %vm759, %v582, -inf
  %794 = vmax.xlane.f32.xlu0 %v793
  %v795 = vpop.xlane.xlu0 %794
  %v796 = vsel %vm759, %v664, -inf
  %797 = vmax.xlane.f32.xlu0 %v796
  %v798 = vpop.xlane.xlu0 %797
  %v799 = vsel %vm759, %v669, -inf
  %800 = vmax.xlane.f32.xlu0 %v799
  %v801 = vpop.xlane.xlu0 %800
  %v802 = vsel %vm759, %v751, -inf
  %803 = vmax.xlane.f32.xlu0 %v802
  %v804 = vpop.xlane.xlu0 %803
  %v805 = vsel %vm759, %v756, -inf
  %806 = vmax.xlane.f32.xlu0 %v805
  %v807 = vpop.xlane.xlu0 %806
  %v808 = vsub.f32 %v142, %v762
  %v809 = vsub.f32 %v147, %v765
  %v810 = vsub.f32 %v229, %v768
  %v811 = vsub.f32 %v234, %v771
  %v812 = vsub.f32 %v316, %v774
  %v813 = vsub.f32 %v321, %v777
  %v814 = vsub.f32 %v403, %v780
  %v815 = vsub.f32 %v408, %v783
  %v816 = vsub.f32 %v490, %v786
  %v817 = vsub.f32 %v495, %v789
  %v818 = vsub.f32 %v577, %v792
  %v819 = vsub.f32 %v582, %v795
  %v820 = vsub.f32 %v664, %v798
  %v821 = vsub.f32 %v669, %v801
  %v822 = vsub.f32 %v751, %v804
  %v823 = vsub.f32 %v756, %v807
  %v824 = vmul.f32 %v808, 1.442695
  %v825 = vpow.pop %v824
  %v826 = vmul.f32 %v809, 1.442695
  %v827 = vpow.pop %v826
  %v828 = vmul.f32 %v810, 1.442695
  %v829 = vpow.pop %v828
  %v830 = vmul.f32 %v811, 1.442695
  %v831 = vpow.pop %v830
  %v832 = vmul.f32 %v812, 1.442695
  %v833 = vpow.pop %v832
  %v834 = vmul.f32 %v813, 1.442695
  %v835 = vpow.pop %v834
  %v836 = vmul.f32 %v814, 1.442695
  %v837 = vpow.pop %v836
  %v838 = vmul.f32 %v815, 1.442695
  %v839 = vpow.pop %v838
  %v840 = vmul.f32 %v816, 1.442695
  %v841 = vpow.pop %v840
  %v842 = vmul.f32 %v817, 1.442695
  %v843 = vpow.pop %v842
  %v844 = vmul.f32 %v818, 1.442695
  %v845 = vpow.pop %v844
  %v846 = vmul.f32 %v819, 1.442695
  %v847 = vpow.pop %v846
  %v848 = vmul.f32 %v820, 1.442695
  %v849 = vpow.pop %v848
  %v850 = vmul.f32 %v821, 1.442695
  %v851 = vpow.pop %v850
  %v852 = vmul.f32 %v822, 1.442695
  %v853 = vpow.pop %v852
  %v854 = vmul.f32 %v823, 1.442695
  %v855 = vpow.pop %v854
  %v856 = vsel %vm759, %v825, 0.0
  %857 = vadd.xlane.f32.xlu0 %v856
  %v858 = vpop.xlane.xlu0 %857
  %v859 = vsel %vm759, %v827, 0.0
  %860 = vadd.xlane.f32.xlu0 %v859
  %v861 = vpop.xlane.xlu0 %860
  %v862 = vsel %vm759, %v829, 0.0
  %863 = vadd.xlane.f32.xlu0 %v862
  %v864 = vpop.xlane.xlu0 %863
  %v865 = vsel %vm759, %v831, 0.0
  %866 = vadd.xlane.f32.xlu0 %v865
  %v867 = vpop.xlane.xlu0 %866
  %v868 = vsel %vm759, %v833, 0.0
  %869 = vadd.xlane.f32.xlu0 %v868
  %v870 = vpop.xlane.xlu0 %869
  %v871 = vsel %vm759, %v835, 0.0
  %872 = vadd.xlane.f32.xlu0 %v871
  %v873 = vpop.xlane.xlu0 %872
  %v874 = vsel %vm759, %v837, 0.0
  %875 = vadd.xlane.f32.xlu0 %v874
  %v876 = vpop.xlane.xlu0 %875
  %v877 = vsel %vm759, %v839, 0.0
  %878 = vadd.xlane.f32.xlu0 %v877
  %v879 = vpop.xlane.xlu0 %878
  %v880 = vsel %vm759, %v841, 0.0
  %881 = vadd.xlane.f32.xlu0 %v880
  %v882 = vpop.xlane.xlu0 %881
  %v883 = vsel %vm759, %v843, 0.0
  %884 = vadd.xlane.f32.xlu0 %v883
  %v885 = vpop.xlane.xlu0 %884
  %v886 = vsel %vm759, %v845, 0.0
  %887 = vadd.xlane.f32.xlu0 %v886
  %v888 = vpop.xlane.xlu0 %887
  %v889 = vsel %vm759, %v847, 0.0
  %890 = vadd.xlane.f32.xlu0 %v889
  %v891 = vpop.xlane.xlu0 %890
  %v892 = vsel %vm759, %v849, 0.0
  %893 = vadd.xlane.f32.xlu0 %v892
  %v894 = vpop.xlane.xlu0 %893
  %v895 = vsel %vm759, %v851, 0.0
  %896 = vadd.xlane.f32.xlu0 %v895
  %v897 = vpop.xlane.xlu0 %896
  %v898 = vsel %vm759, %v853, 0.0
  %899 = vadd.xlane.f32.xlu0 %v898
  %v900 = vpop.xlane.xlu0 %899
  %v901 = vsel %vm759, %v855, 0.0
  %902 = vadd.xlane.f32.xlu0 %v901
  %v903 = vpop.xlane.xlu0 %902
  %v904 = vrcp.pop %v858
  %v905 = vrcp.pop %v861
  %v906 = vrcp.pop %v864
  %v907 = vrcp.pop %v867
  %v908 = vrcp.pop %v870
  %v909 = vrcp.pop %v873
  %v910 = vrcp.pop %v876
  %v911 = vrcp.pop %v879
  %v912 = vrcp.pop %v882
  %v913 = vrcp.pop %v885
  %v914 = vrcp.pop %v888
  %v915 = vrcp.pop %v891
  %v916 = vrcp.pop %v894
  %v917 = vrcp.pop %v897
  %v918 = vrcp.pop %v900
  %v919 = vrcp.pop %v903
  %v920 = vmul.f32 %v825, %v904
  %v921 = vmul.f32 %v827, %v905
  %v922 = vmul.f32 %v829, %v906
  %v923 = vmul.f32 %v831, %v907
  %v924 = vmul.f32 %v833, %v908
  %v925 = vmul.f32 %v835, %v909
  %v926 = vmul.f32 %v837, %v910
  %v927 = vmul.f32 %v839, %v911
  %v928 = vmul.f32 %v841, %v912
  %v929 = vmul.f32 %v843, %v913
  %v930 = vmul.f32 %v845, %v914
  %v931 = vmul.f32 %v847, %v915
  %v932 = vmul.f32 %v849, %v916
  %v933 = vmul.f32 %v851, %v917
  %v934 = vmul.f32 %v853, %v918
  %v935 = vmul.f32 %v855, %v919
  %v937 = vsel %vm759, %v920, 0
  %v940 = vsel %vm759, %v921, 0
  %942 = vmatprep.subr.mxu0 0.0
  %943 = vmatpush1.msra.mxu0 0.0
  %944 = vmatprep.subr.mxu0 0.0
  %945 = vmatpush1.msra.mxu0 0.0
  %946 = vmatprep.subr.mxu0 0.0
  %947 = vmatpush1.msra.mxu0 0.0
  %948 = vmatprep.subr.mxu0 0.0
  %949 = vmatpush1.msra.mxu0 0.0
  %950 = vmatprep.subr.mxu0 0.0
  %951 = vmatpush1.msra.mxu0 0.0
  %952 = vmatprep.subr.mxu0 0.0
  %953 = vmatpush1.msra.mxu0 0.0
  %954 = vmatprep.subr.mxu0 0.0
  %955 = vmatpush1.msra.mxu0 0.0
  %956 = vmatprep.subr.mxu0 0.0
  %957 = vmatpush1.msra.mxu0 0.0
  %958 = vmatprep.subr.mxu0 0.0
  %959 = vmatpush1.msra.mxu0 0.0
  %960 = vmatprep.subr.mxu0 0.0
  %961 = vmatpush1.msra.mxu0 0.0
  %962 = vmatprep.subr.mxu0 0.0
  %963 = vmatpush1.msra.mxu0 0.0
  %964 = vmatprep.subr.mxu0 0.0
  %965 = vmatpush1.msra.mxu0 0.0
  %966 = vmatprep.subr.mxu0 0.0
  %967 = vmatpush1.msra.mxu0 0.0
  %968 = vmatprep.subr.mxu0 0.0
  %969 = vmatpush1.msra.mxu0 0.0
  %970 = vmatprep.subr.mxu0 0.0
  %971 = vmatpush1.msra.mxu0 %v47
  %972 = vmatprep.subr.mxu0 0.0
  %973 = vmatpush1.msra.mxu0 %v46
  %974 = vmatprep.subr.mxu0 0.0
  %975 = vmatpush2.msra.mxu0 0.0
  %976 = vmatprep.subr.mxu0 0.0
  %977 = vmatpush2.msra.mxu0 0.0
  %978 = vmatprep.subr.mxu0 0.0
  %979 = vmatpush2.msra.mxu0 0.0
  %980 = vmatprep.subr.mxu0 0.0
  %981 = vmatpush2.msra.mxu0 0.0
  %982 = vmatprep.subr.mxu0 0.0
  %983 = vmatpush2.msra.mxu0 0.0
  %984 = vmatprep.subr.mxu0 0.0
  %985 = vmatpush2.msra.mxu0 0.0
  %986 = vmatprep.subr.mxu0 0.0
  %987 = vmatpush2.msra.mxu0 0.0
  %988 = vmatprep.subr.mxu0 0.0
  %989 = vmatpush2.msra.mxu0 0.0
  %990 = vmatprep.subr.mxu0 0.0
  %991 = vmatpush2.msra.mxu0 0.0
  %992 = vmatprep.subr.mxu0 0.0
  %993 = vmatpush2.msra.mxu0 0.0
  %994 = vmatprep.subr.mxu0 0.0
  %995 = vmatpush2.msra.mxu0 0.0
  %996 = vmatprep.subr.mxu0 0.0
  %997 = vmatpush2.msra.mxu0 0.0
  %998 = vmatprep.subr.mxu0 0.0
  %999 = vmatpush2.msra.mxu0 0.0
  %1000 = vmatprep.subr.mxu0 0.0
  %1001 = vmatpush2.msra.mxu0 0.0
  %1002 = vmatprep.subr.mxu0 0.0
  %1003 = vmatpush2.msra.mxu0 0.0
  %1004 = vmatprep.subr.mxu0 0.0
  %1005 = vmatpush2.msra.mxu0 0.0
  %1006 = vmatprep.mubr.f32.mxu0 0.0
  %1007 = vmatmul.mubr.f32.gmra.mxu0 %v937
  %v1008 = vpop.f32.mrf.mxu0
  %v1009 = vadd.f32 0.0, %v1008
  %v1010 = vpop.f32.mrf.mxu0
  %1011 = vmatprep.mubr.f32.mxu0 0.0
  %1012 = vmatmul.mubr.f32.gmra.mxu0 %v940
  %v1013 = vpop.f32.mrf.mxu0
  %v1014 = vadd.f32 0.0, %v1013
  %v1015 = vpop.f32.mrf.mxu0
  %1016 = vdwg.mxu0
  %v1018 = vsel %vm759, %v922, 0
  %v1021 = vsel %vm759, %v923, 0
  %1023 = vmatprep.subr.mxu0 0.0
  %1024 = vmatpush1.msra.mxu0 0.0
  %1025 = vmatprep.subr.mxu0 0.0
  %1026 = vmatpush1.msra.mxu0 0.0
  %1027 = vmatprep.subr.mxu0 0.0
  %1028 = vmatpush1.msra.mxu0 0.0
  %1029 = vmatprep.subr.mxu0 0.0
  %1030 = vmatpush1.msra.mxu0 0.0
  %1031 = vmatprep.subr.mxu0 0.0
  %1032 = vmatpush1.msra.mxu0 0.0
  %1033 = vmatprep.subr.mxu0 0.0
  %1034 = vmatpush1.msra.mxu0 0.0
  %1035 = vmatprep.subr.mxu0 0.0
  %1036 = vmatpush1.msra.mxu0 0.0
  %1037 = vmatprep.subr.mxu0 0.0
  %1038 = vmatpush1.msra.mxu0 0.0
  %1039 = vmatprep.subr.mxu0 0.0
  %1040 = vmatpush1.msra.mxu0 0.0
  %1041 = vmatprep.subr.mxu0 0.0
  %1042 = vmatpush1.msra.mxu0 0.0
  %1043 = vmatprep.subr.mxu0 0.0
  %1044 = vmatpush1.msra.mxu0 0.0
  %1045 = vmatprep.subr.mxu0 0.0
  %1046 = vmatpush1.msra.mxu0 0.0
  %1047 = vmatprep.subr.mxu0 0.0
  %1048 = vmatpush1.msra.mxu0 0.0
  %1049 = vmatprep.subr.mxu0 0.0
  %1050 = vmatpush1.msra.mxu0 0.0
  %1051 = vmatprep.subr.mxu0 0.0
  %1052 = vmatpush1.msra.mxu0 %v49
  %1053 = vmatprep.subr.mxu0 0.0
  %1054 = vmatpush1.msra.mxu0 %v48
  %1055 = vmatprep.subr.mxu0 0.0
  %1056 = vmatpush2.msra.mxu0 0.0
  %1057 = vmatprep.subr.mxu0 0.0
  %1058 = vmatpush2.msra.mxu0 0.0
  %1059 = vmatprep.subr.mxu0 0.0
  %1060 = vmatpush2.msra.mxu0 0.0
  %1061 = vmatprep.subr.mxu0 0.0
  %1062 = vmatpush2.msra.mxu0 0.0
  %1063 = vmatprep.subr.mxu0 0.0
  %1064 = vmatpush2.msra.mxu0 0.0
  %1065 = vmatprep.subr.mxu0 0.0
  %1066 = vmatpush2.msra.mxu0 0.0
  %1067 = vmatprep.subr.mxu0 0.0
  %1068 = vmatpush2.msra.mxu0 0.0
  %1069 = vmatprep.subr.mxu0 0.0
  %1070 = vmatpush2.msra.mxu0 0.0
  %1071 = vmatprep.subr.mxu0 0.0
  %1072 = vmatpush2.msra.mxu0 0.0
  %1073 = vmatprep.subr.mxu0 0.0
  %1074 = vmatpush2.msra.mxu0 0.0
  %1075 = vmatprep.subr.mxu0 0.0
  %1076 = vmatpush2.msra.mxu0 0.0
  %1077 = vmatprep.subr.mxu0 0.0
  %1078 = vmatpush2.msra.mxu0 0.0
  %1079 = vmatprep.subr.mxu0 0.0
  %1080 = vmatpush2.msra.mxu0 0.0
  %1081 = vmatprep.subr.mxu0 0.0
  %1082 = vmatpush2.msra.mxu0 0.0
  %1083 = vmatprep.subr.mxu0 0.0
  %1084 = vmatpush2.msra.mxu0 0.0
  %1085 = vmatprep.subr.mxu0 0.0
  %1086 = vmatpush2.msra.mxu0 0.0
  %1087 = vmatprep.mubr.f32.mxu0 0.0
  %1088 = vmatmul.mubr.f32.gmra.mxu0 %v1018
  %v1089 = vpop.f32.mrf.mxu0
  %v1090 = vadd.f32 0.0, %v1089
  %v1091 = vpop.f32.mrf.mxu0
  %1092 = vmatprep.mubr.f32.mxu0 0.0
  %1093 = vmatmul.mubr.f32.gmra.mxu0 %v1021
  %v1094 = vpop.f32.mrf.mxu0
  %v1095 = vadd.f32 0.0, %v1094
  %v1096 = vpop.f32.mrf.mxu0
  %1097 = vdwg.mxu0
  %v1099 = vsel %vm759, %v924, 0
  %v1102 = vsel %vm759, %v925, 0
  %1104 = vmatprep.subr.mxu0 0.0
  %1105 = vmatpush1.msra.mxu0 0.0
  %1106 = vmatprep.subr.mxu0 0.0
  %1107 = vmatpush1.msra.mxu0 0.0
  %1108 = vmatprep.subr.mxu0 0.0
  %1109 = vmatpush1.msra.mxu0 0.0
  %1110 = vmatprep.subr.mxu0 0.0
  %1111 = vmatpush1.msra.mxu0 0.0
  %1112 = vmatprep.subr.mxu0 0.0
  %1113 = vmatpush1.msra.mxu0 0.0
  %1114 = vmatprep.subr.mxu0 0.0
  %1115 = vmatpush1.msra.mxu0 0.0
  %1116 = vmatprep.subr.mxu0 0.0
  %1117 = vmatpush1.msra.mxu0 0.0
  %1118 = vmatprep.subr.mxu0 0.0
  %1119 = vmatpush1.msra.mxu0 0.0
  %1120 = vmatprep.subr.mxu0 0.0
  %1121 = vmatpush1.msra.mxu0 0.0
  %1122 = vmatprep.subr.mxu0 0.0
  %1123 = vmatpush1.msra.mxu0 0.0
  %1124 = vmatprep.subr.mxu0 0.0
  %1125 = vmatpush1.msra.mxu0 0.0
  %1126 = vmatprep.subr.mxu0 0.0
  %1127 = vmatpush1.msra.mxu0 0.0
  %1128 = vmatprep.subr.mxu0 0.0
  %1129 = vmatpush1.msra.mxu0 0.0
  %1130 = vmatprep.subr.mxu0 0.0
  %1131 = vmatpush1.msra.mxu0 0.0
  %1132 = vmatprep.subr.mxu0 0.0
  %1133 = vmatpush1.msra.mxu0 %v51
  %1134 = vmatprep.subr.mxu0 0.0
  %1135 = vmatpush1.msra.mxu0 %v50
  %1136 = vmatprep.subr.mxu0 0.0
  %1137 = vmatpush2.msra.mxu0 0.0
  %1138 = vmatprep.subr.mxu0 0.0
  %1139 = vmatpush2.msra.mxu0 0.0
  %1140 = vmatprep.subr.mxu0 0.0
  %1141 = vmatpush2.msra.mxu0 0.0
  %1142 = vmatprep.subr.mxu0 0.0
  %1143 = vmatpush2.msra.mxu0 0.0
  %1144 = vmatprep.subr.mxu0 0.0
  %1145 = vmatpush2.msra.mxu0 0.0
  %1146 = vmatprep.subr.mxu0 0.0
  %1147 = vmatpush2.msra.mxu0 0.0
  %1148 = vmatprep.subr.mxu0 0.0
  %1149 = vmatpush2.msra.mxu0 0.0
  %1150 = vmatprep.subr.mxu0 0.0
  %1151 = vmatpush2.msra.mxu0 0.0
  %1152 = vmatprep.subr.mxu0 0.0
  %1153 = vmatpush2.msra.mxu0 0.0
  %1154 = vmatprep.subr.mxu0 0.0
  %1155 = vmatpush2.msra.mxu0 0.0
  %1156 = vmatprep.subr.mxu0 0.0
  %1157 = vmatpush2.msra.mxu0 0.0
  %1158 = vmatprep.subr.mxu0 0.0
  %1159 = vmatpush2.msra.mxu0 0.0
  %1160 = vmatprep.subr.mxu0 0.0
  %1161 = vmatpush2.msra.mxu0 0.0
  %1162 = vmatprep.subr.mxu0 0.0
  %1163 = vmatpush2.msra.mxu0 0.0
  %1164 = vmatprep.subr.mxu0 0.0
  %1165 = vmatpush2.msra.mxu0 0.0
  %1166 = vmatprep.subr.mxu0 0.0
  %1167 = vmatpush2.msra.mxu0 0.0
  %1168 = vmatprep.mubr.f32.mxu0 0.0
  %1169 = vmatmul.mubr.f32.gmra.mxu0 %v1099
  %v1170 = vpop.f32.mrf.mxu0
  %v1171 = vadd.f32 0.0, %v1170
  %v1172 = vpop.f32.mrf.mxu0
  %1173 = vmatprep.mubr.f32.mxu0 0.0
  %1174 = vmatmul.mubr.f32.gmra.mxu0 %v1102
  %v1175 = vpop.f32.mrf.mxu0
  %v1176 = vadd.f32 0.0, %v1175
  %v1177 = vpop.f32.mrf.mxu0
  %1178 = vdwg.mxu0
  %v1180 = vsel %vm759, %v926, 0
  %v1183 = vsel %vm759, %v927, 0
  %1185 = vmatprep.subr.mxu0 0.0
  %1186 = vmatpush1.msra.mxu0 0.0
  %1187 = vmatprep.subr.mxu0 0.0
  %1188 = vmatpush1.msra.mxu0 0.0
  %1189 = vmatprep.subr.mxu0 0.0
  %1190 = vmatpush1.msra.mxu0 0.0
  %1191 = vmatprep.subr.mxu0 0.0
  %1192 = vmatpush1.msra.mxu0 0.0
  %1193 = vmatprep.subr.mxu0 0.0
  %1194 = vmatpush1.msra.mxu0 0.0
  %1195 = vmatprep.subr.mxu0 0.0
  %1196 = vmatpush1.msra.mxu0 0.0
  %1197 = vmatprep.subr.mxu0 0.0
  %1198 = vmatpush1.msra.mxu0 0.0
  %1199 = vmatprep.subr.mxu0 0.0
  %1200 = vmatpush1.msra.mxu0 0.0
  %1201 = vmatprep.subr.mxu0 0.0
  %1202 = vmatpush1.msra.mxu0 0.0
  %1203 = vmatprep.subr.mxu0 0.0
  %1204 = vmatpush1.msra.mxu0 0.0
  %1205 = vmatprep.subr.mxu0 0.0
  %1206 = vmatpush1.msra.mxu0 0.0
  %1207 = vmatprep.subr.mxu0 0.0
  %1208 = vmatpush1.msra.mxu0 0.0
  %1209 = vmatprep.subr.mxu0 0.0
  %1210 = vmatpush1.msra.mxu0 0.0
  %1211 = vmatprep.subr.mxu0 0.0
  %1212 = vmatpush1.msra.mxu0 0.0
  %1213 = vmatprep.subr.mxu0 0.0
  %1214 = vmatpush1.msra.mxu0 %v53
  %1215 = vmatprep.subr.mxu0 0.0
  %1216 = vmatpush1.msra.mxu0 %v52
  %1217 = vmatprep.subr.mxu0 0.0
  %1218 = vmatpush2.msra.mxu0 0.0
  %1219 = vmatprep.subr.mxu0 0.0
  %1220 = vmatpush2.msra.mxu0 0.0
  %1221 = vmatprep.subr.mxu0 0.0
  %1222 = vmatpush2.msra.mxu0 0.0
  %1223 = vmatprep.subr.mxu0 0.0
  %1224 = vmatpush2.msra.mxu0 0.0
  %1225 = vmatprep.subr.mxu0 0.0
  %1226 = vmatpush2.msra.mxu0 0.0
  %1227 = vmatprep.subr.mxu0 0.0
  %1228 = vmatpush2.msra.mxu0 0.0
  %1229 = vmatprep.subr.mxu0 0.0
  %1230 = vmatpush2.msra.mxu0 0.0
  %1231 = vmatprep.subr.mxu0 0.0
  %1232 = vmatpush2.msra.mxu0 0.0
  %1233 = vmatprep.subr.mxu0 0.0
  %1234 = vmatpush2.msra.mxu0 0.0
  %1235 = vmatprep.subr.mxu0 0.0
  %1236 = vmatpush2.msra.mxu0 0.0
  %1237 = vmatprep.subr.mxu0 0.0
  %1238 = vmatpush2.msra.mxu0 0.0
  %1239 = vmatprep.subr.mxu0 0.0
  %1240 = vmatpush2.msra.mxu0 0.0
  %1241 = vmatprep.subr.mxu0 0.0
  %1242 = vmatpush2.msra.mxu0 0.0
  %1243 = vmatprep.subr.mxu0 0.0
  %1244 = vmatpush2.msra.mxu0 0.0
  %1245 = vmatprep.subr.mxu0 0.0
  %1246 = vmatpush2.msra.mxu0 0.0
  %1247 = vmatprep.subr.mxu0 0.0
  %1248 = vmatpush2.msra.mxu0 0.0
  %1249 = vmatprep.mubr.f32.mxu0 0.0
  %1250 = vmatmul.mubr.f32.gmra.mxu0 %v1180
  %v1251 = vpop.f32.mrf.mxu0
  %v1252 = vadd.f32 0.0, %v1251
  %v1253 = vpop.f32.mrf.mxu0
  %1254 = vmatprep.mubr.f32.mxu0 0.0
  %1255 = vmatmul.mubr.f32.gmra.mxu0 %v1183
  %v1256 = vpop.f32.mrf.mxu0
  %v1257 = vadd.f32 0.0, %v1256
  %v1258 = vpop.f32.mrf.mxu0
  %1259 = vdwg.mxu0
  %v1261 = vsel %vm759, %v928, 0
  %v1264 = vsel %vm759, %v929, 0
  %1266 = vmatprep.subr.mxu0 0.0
  %1267 = vmatpush1.msra.mxu0 0.0
  %1268 = vmatprep.subr.mxu0 0.0
  %1269 = vmatpush1.msra.mxu0 0.0
  %1270 = vmatprep.subr.mxu0 0.0
  %1271 = vmatpush1.msra.mxu0 0.0
  %1272 = vmatprep.subr.mxu0 0.0
  %1273 = vmatpush1.msra.mxu0 0.0
  %1274 = vmatprep.subr.mxu0 0.0
  %1275 = vmatpush1.msra.mxu0 0.0
  %1276 = vmatprep.subr.mxu0 0.0
  %1277 = vmatpush1.msra.mxu0 0.0
  %1278 = vmatprep.subr.mxu0 0.0
  %1279 = vmatpush1.msra.mxu0 0.0
  %1280 = vmatprep.subr.mxu0 0.0
  %1281 = vmatpush1.msra.mxu0 0.0
  %1282 = vmatprep.subr.mxu0 0.0
  %1283 = vmatpush1.msra.mxu0 0.0
  %1284 = vmatprep.subr.mxu0 0.0
  %1285 = vmatpush1.msra.mxu0 0.0
  %1286 = vmatprep.subr.mxu0 0.0
  %1287 = vmatpush1.msra.mxu0 0.0
  %1288 = vmatprep.subr.mxu0 0.0
  %1289 = vmatpush1.msra.mxu0 0.0
  %1290 = vmatprep.subr.mxu0 0.0
  %1291 = vmatpush1.msra.mxu0 0.0
  %1292 = vmatprep.subr.mxu0 0.0
  %1293 = vmatpush1.msra.mxu0 0.0
  %1294 = vmatprep.subr.mxu0 0.0
  %1295 = vmatpush1.msra.mxu0 %v55
  %1296 = vmatprep.subr.mxu0 0.0
  %1297 = vmatpush1.msra.mxu0 %v54
  %1298 = vmatprep.subr.mxu0 0.0
  %1299 = vmatpush2.msra.mxu0 0.0
  %1300 = vmatprep.subr.mxu0 0.0
  %1301 = vmatpush2.msra.mxu0 0.0
  %1302 = vmatprep.subr.mxu0 0.0
  %1303 = vmatpush2.msra.mxu0 0.0
  %1304 = vmatprep.subr.mxu0 0.0
  %1305 = vmatpush2.msra.mxu0 0.0
  %1306 = vmatprep.subr.mxu0 0.0
  %1307 = vmatpush2.msra.mxu0 0.0
  %1308 = vmatprep.subr.mxu0 0.0
  %1309 = vmatpush2.msra.mxu0 0.0
  %1310 = vmatprep.subr.mxu0 0.0
  %1311 = vmatpush2.msra.mxu0 0.0
  %1312 = vmatprep.subr.mxu0 0.0
  %1313 = vmatpush2.msra.mxu0 0.0
  %1314 = vmatprep.subr.mxu0 0.0
  %1315 = vmatpush2.msra.mxu0 0.0
  %1316 = vmatprep.subr.mxu0 0.0
  %1317 = vmatpush2.msra.mxu0 0.0
  %1318 = vmatprep.subr.mxu0 0.0
  %1319 = vmatpush2.msra.mxu0 0.0
  %1320 = vmatprep.subr.mxu0 0.0
  %1321 = vmatpush2.msra.mxu0 0.0
  %1322 = vmatprep.subr.mxu0 0.0
  %1323 = vmatpush2.msra.mxu0 0.0
  %1324 = vmatprep.subr.mxu0 0.0
  %1325 = vmatpush2.msra.mxu0 0.0
  %1326 = vmatprep.subr.mxu0 0.0
  %1327 = vmatpush2.msra.mxu0 0.0
  %1328 = vmatprep.subr.mxu0 0.0
  %1329 = vmatpush2.msra.mxu0 0.0
  %1330 = vmatprep.mubr.f32.mxu0 0.0
  %1331 = vmatmul.mubr.f32.gmra.mxu0 %v1261
  %v1332 = vpop.f32.mrf.mxu0
  %v1333 = vadd.f32 0.0, %v1332
  %v1334 = vpop.f32.mrf.mxu0
  %1335 = vmatprep.mubr.f32.mxu0 0.0
  %1336 = vmatmul.mubr.f32.gmra.mxu0 %v1264
  %v1337 = vpop.f32.mrf.mxu0
  %v1338 = vadd.f32 0.0, %v1337
  %v1339 = vpop.f32.mrf.mxu0
  %1340 = vdwg.mxu0
  %v1342 = vsel %vm759, %v930, 0
  %v1345 = vsel %vm759, %v931, 0
  %1347 = vmatprep.subr.mxu0 0.0
  %1348 = vmatpush1.msra.mxu0 0.0
  %1349 = vmatprep.subr.mxu0 0.0
  %1350 = vmatpush1.msra.mxu0 0.0
  %1351 = vmatprep.subr.mxu0 0.0
  %1352 = vmatpush1.msra.mxu0 0.0
  %1353 = vmatprep.subr.mxu0 0.0
  %1354 = vmatpush1.msra.mxu0 0.0
  %1355 = vmatprep.subr.mxu0 0.0
  %1356 = vmatpush1.msra.mxu0 0.0
  %1357 = vmatprep.subr.mxu0 0.0
  %1358 = vmatpush1.msra.mxu0 0.0
  %1359 = vmatprep.subr.mxu0 0.0
  %1360 = vmatpush1.msra.mxu0 0.0
  %1361 = vmatprep.subr.mxu0 0.0
  %1362 = vmatpush1.msra.mxu0 0.0
  %1363 = vmatprep.subr.mxu0 0.0
  %1364 = vmatpush1.msra.mxu0 0.0
  %1365 = vmatprep.subr.mxu0 0.0
  %1366 = vmatpush1.msra.mxu0 0.0
  %1367 = vmatprep.subr.mxu0 0.0
  %1368 = vmatpush1.msra.mxu0 0.0
  %1369 = vmatprep.subr.mxu0 0.0
  %1370 = vmatpush1.msra.mxu0 0.0
  %1371 = vmatprep.subr.mxu0 0.0
  %1372 = vmatpush1.msra.mxu0 0.0
  %1373 = vmatprep.subr.mxu0 0.0
  %1374 = vmatpush1.msra.mxu0 0.0
  %1375 = vmatprep.subr.mxu0 0.0
  %1376 = vmatpush1.msra.mxu0 %v57
  %1377 = vmatprep.subr.mxu0 0.0
  %1378 = vmatpush1.msra.mxu0 %v56
  %1379 = vmatprep.subr.mxu0 0.0
  %1380 = vmatpush2.msra.mxu0 0.0
  %1381 = vmatprep.subr.mxu0 0.0
  %1382 = vmatpush2.msra.mxu0 0.0
  %1383 = vmatprep.subr.mxu0 0.0
  %1384 = vmatpush2.msra.mxu0 0.0
  %1385 = vmatprep.subr.mxu0 0.0
  %1386 = vmatpush2.msra.mxu0 0.0
  %1387 = vmatprep.subr.mxu0 0.0
  %1388 = vmatpush2.msra.mxu0 0.0
  %1389 = vmatprep.subr.mxu0 0.0
  %1390 = vmatpush2.msra.mxu0 0.0
  %1391 = vmatprep.subr.mxu0 0.0
  %1392 = vmatpush2.msra.mxu0 0.0
  %1393 = vmatprep.subr.mxu0 0.0
  %1394 = vmatpush2.msra.mxu0 0.0
  %1395 = vmatprep.subr.mxu0 0.0
  %1396 = vmatpush2.msra.mxu0 0.0
  %1397 = vmatprep.subr.mxu0 0.0
  %1398 = vmatpush2.msra.mxu0 0.0
  %1399 = vmatprep.subr.mxu0 0.0
  %1400 = vmatpush2.msra.mxu0 0.0
  %1401 = vmatprep.subr.mxu0 0.0
  %1402 = vmatpush2.msra.mxu0 0.0
  %1403 = vmatprep.subr.mxu0 0.0
  %1404 = vmatpush2.msra.mxu0 0.0
  %1405 = vmatprep.subr.mxu0 0.0
  %1406 = vmatpush2.msra.mxu0 0.0
  %1407 = vmatprep.subr.mxu0 0.0
  %1408 = vmatpush2.msra.mxu0 0.0
  %1409 = vmatprep.subr.mxu0 0.0
  %1410 = vmatpush2.msra.mxu0 0.0
  %1411 = vmatprep.mubr.f32.mxu0 0.0
  %1412 = vmatmul.mubr.f32.gmra.mxu0 %v1342
  %v1413 = vpop.f32.mrf.mxu0
  %v1414 = vadd.f32 0.0, %v1413
  %v1415 = vpop.f32.mrf.mxu0
  %1416 = vmatprep.mubr.f32.mxu0 0.0
  %1417 = vmatmul.mubr.f32.gmra.mxu0 %v1345
  %v1418 = vpop.f32.mrf.mxu0
  %v1419 = vadd.f32 0.0, %v1418
  %v1420 = vpop.f32.mrf.mxu0
  %1421 = vdwg.mxu0
  %v1423 = vsel %vm759, %v932, 0
  %v1426 = vsel %vm759, %v933, 0
  %1428 = vmatprep.subr.mxu0 0.0
  %1429 = vmatpush1.msra.mxu0 0.0
  %1430 = vmatprep.subr.mxu0 0.0
  %1431 = vmatpush1.msra.mxu0 0.0
  %1432 = vmatprep.subr.mxu0 0.0
  %1433 = vmatpush1.msra.mxu0 0.0
  %1434 = vmatprep.subr.mxu0 0.0
  %1435 = vmatpush1.msra.mxu0 0.0
  %1436 = vmatprep.subr.mxu0 0.0
  %1437 = vmatpush1.msra.mxu0 0.0
  %1438 = vmatprep.subr.mxu0 0.0
  %1439 = vmatpush1.msra.mxu0 0.0
  %1440 = vmatprep.subr.mxu0 0.0
  %1441 = vmatpush1.msra.mxu0 0.0
  %1442 = vmatprep.subr.mxu0 0.0
  %1443 = vmatpush1.msra.mxu0 0.0
  %1444 = vmatprep.subr.mxu0 0.0
  %1445 = vmatpush1.msra.mxu0 0.0
  %1446 = vmatprep.subr.mxu0 0.0
  %1447 = vmatpush1.msra.mxu0 0.0
  %1448 = vmatprep.subr.mxu0 0.0
  %1449 = vmatpush1.msra.mxu0 0.0
  %1450 = vmatprep.subr.mxu0 0.0
  %1451 = vmatpush1.msra.mxu0 0.0
  %1452 = vmatprep.subr.mxu0 0.0
  %1453 = vmatpush1.msra.mxu0 0.0
  %1454 = vmatprep.subr.mxu0 0.0
  %1455 = vmatpush1.msra.mxu0 0.0
  %1456 = vmatprep.subr.mxu0 0.0
  %1457 = vmatpush1.msra.mxu0 %v59
  %1458 = vmatprep.subr.mxu0 0.0
  %1459 = vmatpush1.msra.mxu0 %v58
  %1460 = vmatprep.subr.mxu0 0.0
  %1461 = vmatpush2.msra.mxu0 0.0
  %1462 = vmatprep.subr.mxu0 0.0
  %1463 = vmatpush2.msra.mxu0 0.0
  %1464 = vmatprep.subr.mxu0 0.0
  %1465 = vmatpush2.msra.mxu0 0.0
  %1466 = vmatprep.subr.mxu0 0.0
  %1467 = vmatpush2.msra.mxu0 0.0
  %1468 = vmatprep.subr.mxu0 0.0
  %1469 = vmatpush2.msra.mxu0 0.0
  %1470 = vmatprep.subr.mxu0 0.0
  %1471 = vmatpush2.msra.mxu0 0.0
  %1472 = vmatprep.subr.mxu0 0.0
  %1473 = vmatpush2.msra.mxu0 0.0
  %1474 = vmatprep.subr.mxu0 0.0
  %1475 = vmatpush2.msra.mxu0 0.0
  %1476 = vmatprep.subr.mxu0 0.0
  %1477 = vmatpush2.msra.mxu0 0.0
  %1478 = vmatprep.subr.mxu0 0.0
  %1479 = vmatpush2.msra.mxu0 0.0
  %1480 = vmatprep.subr.mxu0 0.0
  %1481 = vmatpush2.msra.mxu0 0.0
  %1482 = vmatprep.subr.mxu0 0.0
  %1483 = vmatpush2.msra.mxu0 0.0
  %1484 = vmatprep.subr.mxu0 0.0
  %1485 = vmatpush2.msra.mxu0 0.0
  %1486 = vmatprep.subr.mxu0 0.0
  %1487 = vmatpush2.msra.mxu0 0.0
  %1488 = vmatprep.subr.mxu0 0.0
  %1489 = vmatpush2.msra.mxu0 0.0
  %1490 = vmatprep.subr.mxu0 0.0
  %1491 = vmatpush2.msra.mxu0 0.0
  %1492 = vmatprep.mubr.f32.mxu0 0.0
  %1493 = vmatmul.mubr.f32.gmra.mxu0 %v1423
  %v1494 = vpop.f32.mrf.mxu0
  %v1495 = vadd.f32 0.0, %v1494
  %v1496 = vpop.f32.mrf.mxu0
  %1497 = vmatprep.mubr.f32.mxu0 0.0
  %1498 = vmatmul.mubr.f32.gmra.mxu0 %v1426
  %v1499 = vpop.f32.mrf.mxu0
  %v1500 = vadd.f32 0.0, %v1499
  %v1501 = vpop.f32.mrf.mxu0
  %1502 = vdwg.mxu0
  %v1504 = vsel %vm759, %v934, 0
  %v1507 = vsel %vm759, %v935, 0
  %1509 = vmatprep.subr.mxu0 0.0
  %1510 = vmatpush1.msra.mxu0 0.0
  %1511 = vmatprep.subr.mxu0 0.0
  %1512 = vmatpush1.msra.mxu0 0.0
  %1513 = vmatprep.subr.mxu0 0.0
  %1514 = vmatpush1.msra.mxu0 0.0
  %1515 = vmatprep.subr.mxu0 0.0
  %1516 = vmatpush1.msra.mxu0 0.0
  %1517 = vmatprep.subr.mxu0 0.0
  %1518 = vmatpush1.msra.mxu0 0.0
  %1519 = vmatprep.subr.mxu0 0.0
  %1520 = vmatpush1.msra.mxu0 0.0
  %1521 = vmatprep.subr.mxu0 0.0
  %1522 = vmatpush1.msra.mxu0 0.0
  %1523 = vmatprep.subr.mxu0 0.0
  %1524 = vmatpush1.msra.mxu0 0.0
  %1525 = vmatprep.subr.mxu0 0.0
  %1526 = vmatpush1.msra.mxu0 0.0
  %1527 = vmatprep.subr.mxu0 0.0
  %1528 = vmatpush1.msra.mxu0 0.0
  %1529 = vmatprep.subr.mxu0 0.0
  %1530 = vmatpush1.msra.mxu0 0.0
  %1531 = vmatprep.subr.mxu0 0.0
  %1532 = vmatpush1.msra.mxu0 0.0
  %1533 = vmatprep.subr.mxu0 0.0
  %1534 = vmatpush1.msra.mxu0 0.0
  %1535 = vmatprep.subr.mxu0 0.0
  %1536 = vmatpush1.msra.mxu0 0.0
  %1537 = vmatprep.subr.mxu0 0.0
  %1538 = vmatpush1.msra.mxu0 %v61
  %1539 = vmatprep.subr.mxu0 0.0
  %1540 = vmatpush1.msra.mxu0 %v60
  %1541 = vmatprep.subr.mxu0 0.0
  %1542 = vmatpush2.msra.mxu0 0.0
  %1543 = vmatprep.subr.mxu0 0.0
  %1544 = vmatpush2.msra.mxu0 0.0
  %1545 = vmatprep.subr.mxu0 0.0
  %1546 = vmatpush2.msra.mxu0 0.0
  %1547 = vmatprep.subr.mxu0 0.0
  %1548 = vmatpush2.msra.mxu0 0.0
  %1549 = vmatprep.subr.mxu0 0.0
  %1550 = vmatpush2.msra.mxu0 0.0
  %1551 = vmatprep.subr.mxu0 0.0
  %1552 = vmatpush2.msra.mxu0 0.0
  %1553 = vmatprep.subr.mxu0 0.0
  %1554 = vmatpush2.msra.mxu0 0.0
  %1555 = vmatprep.subr.mxu0 0.0
  %1556 = vmatpush2.msra.mxu0 0.0
  %1557 = vmatprep.subr.mxu0 0.0
  %1558 = vmatpush2.msra.mxu0 0.0
  %1559 = vmatprep.subr.mxu0 0.0
  %1560 = vmatpush2.msra.mxu0 0.0
  %1561 = vmatprep.subr.mxu0 0.0
  %1562 = vmatpush2.msra.mxu0 0.0
  %1563 = vmatprep.subr.mxu0 0.0
  %1564 = vmatpush2.msra.mxu0 0.0
  %1565 = vmatprep.subr.mxu0 0.0
  %1566 = vmatpush2.msra.mxu0 0.0
  %1567 = vmatprep.subr.mxu0 0.0
  %1568 = vmatpush2.msra.mxu0 0.0
  %1569 = vmatprep.subr.mxu0 0.0
  %1570 = vmatpush2.msra.mxu0 0.0
  %1571 = vmatprep.subr.mxu0 0.0
  %1572 = vmatpush2.msra.mxu0 0.0
  %1573 = vmatprep.mubr.f32.mxu0 0.0
  %1574 = vmatmul.mubr.f32.gmra.mxu0 %v1504
  %v1575 = vpop.f32.mrf.mxu0
  %v1576 = vadd.f32 0.0, %v1575
  %v1577 = vpop.f32.mrf.mxu0
  %1578 = vmatprep.mubr.f32.mxu0 0.0
  %1579 = vmatmul.mubr.f32.gmra.mxu0 %v1507
  %v1580 = vpop.f32.mrf.mxu0
  %v1581 = vadd.f32 0.0, %v1580
  %v1582 = vpop.f32.mrf.mxu0
  %1583 = vdwg.mxu0
  %1584 = vst.msk [vmem:[%s3] sm:$0xff] %vm62, %v1009
  %1585 = vst.msk [vmem:[%s3 + $0x8] sm:$0xff] %vm62, %v1014
  %1586 = vst.msk [vmem:[%s3 + $0x10] sm:$0xff] %vm62, %v1090
  %1587 = vst.msk [vmem:[%s3 + $0x18] sm:$0xff] %vm62, %v1095
  %1588 = vst.msk [vmem:[%s3 + $0x20] sm:$0xff] %vm62, %v1171
  %1589 = vst.msk [vmem:[%s3 + $0x28] sm:$0xff] %vm62, %v1176
  %1590 = vst.msk [vmem:[%s3 + $0x30] sm:$0xff] %vm62, %v1252
  %1591 = vst.msk [vmem:[%s3 + $0x38] sm:$0xff] %vm62, %v1257
  %1592 = vst.msk [vmem:[%s3 + $0x40] sm:$0xff] %vm62, %v1333
  %1593 = vst.msk [vmem:[%s3 + $0x48] sm:$0xff] %vm62, %v1338
  %1594 = vst.msk [vmem:[%s3 + $0x50] sm:$0xff] %vm62, %v1414
  %1595 = vst.msk [vmem:[%s3 + $0x58] sm:$0xff] %vm62, %v1419
  %1596 = vst.msk [vmem:[%s3 + $0x60] sm:$0xff] %vm62, %v1495
  %1597 = vst.msk [vmem:[%s3 + $0x68] sm:$0xff] %vm62, %v1500
  %1598 = vst.msk [vmem:[%s3 + $0x70] sm:$0xff] %vm62, %v1576
  %1599 = vst.msk [vmem:[%s3 + $0x78] sm:$0xff] %vm62, %v1581
  // Predicated region
  $region14: #{grtrans_forward.4} parent=0 // pred_check
    _
  $region15: #{grtrans_forward.4} parent=0 // pred_check_branch
    %1601 = sbr.rel (0) target = $region17
  $region16: #{grtrans_forward.4} parent=0 // pred_region
    _
  $region17: #{grtrans_forward.4} parent=0 // pred_fallthru
    _
  // Predicated region
  $region18: #{grtrans_forward.4} parent=0 // pred_check
    _
  $region19: #{grtrans_forward.4} parent=0 // pred_check_branch
    %1603 = sbr.rel (0) target = $region21
  $region20: #{grtrans_forward.4} parent=0 // pred_region
    _
  $region21: #{grtrans_forward.4} parent=0 // pred_fallthru
    _

</llo_original>
